<compile_context>
chip_gen: v5e
topology: v5e:2x2
jax: 0.10.0
libtpu: 0.0.40
codegen_flags: <defaults>
</compile_context>

<pallas_src>
import jax
import jax.numpy as jnp
import numpy as np
from jax import lax
from jax.experimental import pallas as pl
from jax.experimental.pallas import tpu as pltpu

EPS = 1e-5          # PyTorch BatchNorm1d default eps
IN_FC = 256         # in_features of pretrain.fc (small synthetic backbone)
SHAPES = [1024, 1024, 512, 128]   # module default
OUT_PAD = 128       # lane-dense padded width of the 2-wide tasks_out head

# TODO(synk): the real `pretrain` is an arbitrary pretrained CNN; it is modeled
# here as global-average-pool + the replaced Linear (pretrain.fc).


def _round_up(x, m):
    return ((x + m - 1) // m) * m


def _pick_batch_tile(B):
    """Batch tile size per the perf review (generation-agnostic policy)."""
    if B < 256:
        # bf16 activations pack 16 sublane rows per vreg; 16-align small tiles.
        return max(16, _round_up(B, 16))
    if B < 2048:
        # Guarantee >= 2 grid steps so "parallel" semantics can shard batch
        # tiles across v7x's two TensorCores; cap tiles at 256 rows.
        return min(256, max(128, _round_up((B + 1) // 2, 16)))
    # Large batch: bigger tiles amortize per-grid-step overhead; >= 4 steps
    # remain, so each v7x TensorCore still gets >= 2 tiles.
    return 512


# ----------------------------------------------------------------------------
# Kernel: one batch tile (TB rows) through the whole MLP head.
# ----------------------------------------------------------------------------
def stl_vission_kernel(feat_ref,
                       w0_ref, b0_ref,
                       w1_ref, b1_ref,
                       w2_ref, b2_ref,
                       w3_ref, b3_ref,
                       wt_ref, bt_ref,
                       out_ref):
    # BatchNorm for layers 0..2 is already folded into (w, b).
    # feat and weights are bf16; accumulate in f32 on the MXU.
    h = feat_ref[...]                                        # (TB, IN_FC) bf16

    h = jnp.dot(h, w0_ref[...], preferred_element_type=jnp.float32) + b0_ref[...]
    h = jnp.maximum(h, 0.0).astype(jnp.bfloat16)

    h = jnp.dot(h, w1_ref[...], preferred_element_type=jnp.float32) + b1_ref[...]
    h = jnp.maximum(h, 0.0).astype(jnp.bfloat16)

    h = jnp.dot(h, w2_ref[...], preferred_element_type=jnp.float32) + b2_ref[...]
    h = jnp.maximum(h, 0.0).astype(jnp.bfloat16)

    h = jnp.dot(h, w3_ref[...], preferred_element_type=jnp.float32) + b3_ref[...]
    h = jnp.maximum(h, 0.0).astype(jnp.bfloat16)             # F.relu(shared(x))

    t = jnp.dot(h, wt_ref[...], preferred_element_type=jnp.float32) + bt_ref[...]
    out_ref[...] = t.astype(out_ref.dtype)                   # lane-dense (TB,128) bf16


# ----------------------------------------------------------------------------
# Parameter prep: fold BN into Linears, cast weights to bf16, pad tasks_out.
# ----------------------------------------------------------------------------
def prepare_params(params):
    (w0, b0, g0, be0, m0, v0,
     w1, b1, g1, be1, m1, v1,
     w2, b2, g2, be2, m2, v2,
     w3, b3, wt, bt) = params

    def fold(w, b, g, be, m, v):
        s = g * lax.rsqrt(v + EPS)                       # (1, F)
        wf = (w * s).astype(jnp.bfloat16)                # column-wise scale
        bf = (b - m) * s + be                            # f32 bias (post-accum)
        return wf, bf

    w0f, b0f = fold(w0, b0, g0, be0, m0, v0)
    w1f, b1f = fold(w1, b1, g1, be1, m1, v1)
    w2f, b2f = fold(w2, b2, g2, be2, m2, v2)
    w3f = w3.astype(jnp.bfloat16)

    # Pad tasks_out to a lane-dense 128-wide head (zero columns 2..127).
    wt_p = jnp.zeros((wt.shape[0], OUT_PAD), jnp.float32)
    wt_p = wt_p.at[:, :2].set(wt).astype(jnp.bfloat16)
    bt_p = jnp.zeros((1, OUT_PAD), jnp.float32).at[:, :2].set(bt)

    return (w0f, b0f, w1f, b1f, w2f, b2f, w3f, b3, wt_p, bt_p)


# ----------------------------------------------------------------------------
# Forward wrapper.
# ----------------------------------------------------------------------------
def stl_vission_forward(x_img, prepped):
    """x_img: (N, C, H, W) float32 (NCHW like PyTorch). Returns (N, 2) f32."""
    B, C, H, W = x_img.shape
    # Synthetic "pretrain" feature extractor: global average pool, done in XLA
    # (avoids an in-kernel XLU cross-lane reduction + the (B,C,H*W) DMA).
    # Cast to bf16 at the kernel boundary: halves the per-step feat DMA.
    feat = jnp.mean(x_img.reshape(B, C, H * W), axis=-1).astype(jnp.bfloat16)

    TB = _pick_batch_tile(B)
    Bp = _round_up(B, TB)
    if Bp != B:
        feat = jnp.pad(feat, ((0, Bp - B), (0, 0)))
    grid = (Bp // TB,)

    def resident(p):
        # Weights/biases: constant block index -> loaded once, VMEM-resident
        # across batch tiles.  Single-buffered: they are never re-fetched, so
        # the default double buffer would be pure VMEM waste.
        return pl.BlockSpec(p.shape, lambda i: (0, 0),
                            pipeline_mode=pl.Buffered(buffer_count=1))

    in_specs = [pl.BlockSpec((TB, IN_FC), lambda i: (i, 0))] + \
               [resident(p) for p in prepped]
    out_spec = pl.BlockSpec((TB, OUT_PAD), lambda i: (i, 0))

    out_padded = pl.pallas_call(
        stl_vission_kernel,
        out_shape=jax.ShapeDtypeStruct((Bp, OUT_PAD), jnp.bfloat16),
        grid=grid,
        in_specs=in_specs,
        out_specs=out_spec,
        compiler_params=pltpu.CompilerParams(
            dimension_semantics=("parallel",),      # batch tiles independent
            vmem_limit_bytes=24 << 20,              # explicit; covers v5e's 16MiB default
        ),
    )(feat, *prepped)

    return out_padded[:B, :2].astype(jnp.float32)


# ----------------------------------------------------------------------------
# Deterministic synthetic parameters (PyTorch-Linear-style uniform init).
# Linear weights are stored as (in, out); biases / BN vectors as (1, F).
# ----------------------------------------------------------------------------
def init_params(key, in_fc=IN_FC, shapes=SHAPES):
    keys = iter(jax.random.split(key, 32))

    def linear(fan_in, fan_out):
        bound = 1.0 / np.sqrt(fan_in)
        w = jax.random.uniform(next(keys), (fan_in, fan_out), jnp.float32, -bound, bound)
        b = jax.random.uniform(next(keys), (1, fan_out), jnp.float32, -bound, bound)
        return w, b

    def bn(f):
        gamma = jnp.ones((1, f), jnp.float32)
        beta = jnp.zeros((1, f), jnp.float32)
        mean = 0.1 * jax.random.normal(next(keys), (1, f), jnp.float32)
        var = jax.random.uniform(next(keys), (1, f), jnp.float32, 0.5, 1.5)
        return gamma, beta, mean, var

    w0, b0 = linear(in_fc, shapes[0])          # pretrain.fc
    g0, be0, m0, v0 = bn(shapes[0])            # self.bn
    w1, b1 = linear(shapes[0], shapes[1])      # shared.fc1
    g1, be1, m1, v1 = bn(shapes[1])            # shared.bn1
    w2, b2 = linear(shapes[1], shapes[2])      # shared.fc2
    g2, be2, m2, v2 = bn(shapes[2])            # shared.bn2
    w3, b3 = linear(shapes[2], shapes[3])      # shared.fc3
    wt, bt = linear(shapes[3], 2)              # tasks_out

    return (w0, b0, g0, be0, m0, v0,
            w1, b1, g1, be1, m1, v1,
            w2, b2, g2, be2, m2, v2,
            w3, b3,
            wt, bt)


def reference_forward(x_img, params):
    """Pure-JAX f32 reference mirroring the PyTorch module (eval-mode BN)."""
    (w0, b0, g0, be0, m0, v0,
     w1, b1, g1, be1, m1, v1,
     w2, b2, g2, be2, m2, v2,
     w3, b3, wt, bt) = params
    feat = jnp.mean(x_img.reshape(x_img.shape[0], x_img.shape[1], -1), axis=-1)
    h = feat @ w0 + b0
    h = jnp.maximum((h - m0) * lax.rsqrt(v0 + EPS) * g0 + be0, 0.0)
    h = h @ w1 + b1
    h = jnp.maximum((h - m1) * lax.rsqrt(v1 + EPS) * g1 + be1, 0.0)
    h = h @ w2 + b2
    h = jnp.maximum((h - m2) * lax.rsqrt(v2 + EPS) * g2 + be2, 0.0)
    h = jnp.maximum(h @ w3 + b3, 0.0)
    return h @ wt + bt


if __name__ == "__main__":
    key = jax.random.PRNGKey(0)
    k_param, k_x = jax.random.split(key)

    params = init_params(k_param)
    prepped = prepare_params(params)                       # one-time prep
    x = jax.random.normal(k_x, (2, IN_FC, 8, 8), jnp.float32)   # NCHW input

    out = jax.block_until_ready(stl_vission_forward(x, prepped))
    ref = jax.block_until_ready(reference_forward(x, params))

    # bf16 weights/activations/output vs. f32 reference -> looser tolerance.
    np.testing.assert_allclose(np.asarray(out), np.asarray(ref),
                               rtol=3e-2, atol=3e-2)
    assert out.shape == (2, 2)
    print("KERNEL_OK")
</pallas_src>

<mosaic_0001>
module attributes {stable_mosaic.version = 11 : i64} {
  func.func @stl_vission_kernel(%arg0: i32, %arg1: memref<16x256xbf16, #tpu.memory_space<vmem>>, %arg2: memref<256x1024xbf16, #tpu.memory_space<vmem>>, %arg3: memref<1x1024xf32, #tpu.memory_space<vmem>>, %arg4: memref<1024x1024xbf16, #tpu.memory_space<vmem>>, %arg5: memref<1x1024xf32, #tpu.memory_space<vmem>>, %arg6: memref<1024x512xbf16, #tpu.memory_space<vmem>>, %arg7: memref<1x512xf32, #tpu.memory_space<vmem>>, %arg8: memref<512x128xbf16, #tpu.memory_space<vmem>>, %arg9: memref<1x128xf32, #tpu.memory_space<vmem>>, %arg10: memref<128x128xbf16, #tpu.memory_space<vmem>>, %arg11: memref<1x128xf32, #tpu.memory_space<vmem>>, %arg12: memref<16x128xbf16, #tpu.memory_space<vmem>>) attributes {dimension_semantics = [#tpu.dimension_semantics<parallel>], iteration_bounds = array<i64: 1>, scalar_prefetch = 0 : i64, scratch_operands = 0 : i64, tpu.core_type = #tpu.core_type<tc>, window_params = [{transform_indices = @transform_0, window_bounds = array<i64: 16, 256>}, {pipeline_mode = #tpu.pipeline_mode<synchronous>, transform_indices = @transform_1, window_bounds = array<i64: 256, 1024>}, {pipeline_mode = #tpu.pipeline_mode<synchronous>, transform_indices = @transform_2, window_bounds = array<i64: 1, 1024>}, {pipeline_mode = #tpu.pipeline_mode<synchronous>, transform_indices = @transform_3, window_bounds = array<i64: 1024, 1024>}, {pipeline_mode = #tpu.pipeline_mode<synchronous>, transform_indices = @transform_4, window_bounds = array<i64: 1, 1024>}, {pipeline_mode = #tpu.pipeline_mode<synchronous>, transform_indices = @transform_5, window_bounds = array<i64: 1024, 512>}, {pipeline_mode = #tpu.pipeline_mode<synchronous>, transform_indices = @transform_6, window_bounds = array<i64: 1, 512>}, {pipeline_mode = #tpu.pipeline_mode<synchronous>, transform_indices = @transform_7, window_bounds = array<i64: 512, 128>}, {pipeline_mode = #tpu.pipeline_mode<synchronous>, transform_indices = @transform_8, window_bounds = array<i64: 1, 128>}, {pipeline_mode = #tpu.pipeline_mode<synchronous>, transform_indices = @transform_9, window_bounds = array<i64: 128, 128>}, {pipeline_mode = #tpu.pipeline_mode<synchronous>, transform_indices = @transform_10, window_bounds = array<i64: 1, 128>}, {transform_indices = @transform_11, window_bounds = array<i64: 16, 128>}]} {
    %c0 = arith.constant 0 : index
    %c0_0 = arith.constant 0 : index
    %0 = vector.load %arg1[%c0, %c0_0] : memref<16x256xbf16, #tpu.memory_space<vmem>>, vector<16x256xbf16>
    %c0_1 = arith.constant 0 : index
    %c0_2 = arith.constant 0 : index
    %1 = vector.load %arg2[%c0_1, %c0_2] : memref<256x1024xbf16, #tpu.memory_space<vmem>>, vector<256x1024xbf16>
    %cst = arith.constant dense<0.000000e+00> : vector<16x1024xf32>
    %2 = tpu.matmul %0, %1, %cst {dimension_numbers = #tpu.dot_dimension_numbers<[1], [0], [0], [1], [0, 0, 1, 1], [], []>} : vector<16x256xbf16>, vector<256x1024xbf16>, vector<16x1024xf32> -> vector<16x1024xf32>
    %c0_3 = arith.constant 0 : index
    %c0_4 = arith.constant 0 : index
    %3 = vector.load %arg3[%c0_3, %c0_4] : memref<1x1024xf32, #tpu.memory_space<vmem>>, vector<1x1024xf32>
    %4 = vector.broadcast %3 : vector<1x1024xf32> to vector<16x1024xf32>
    %5 = arith.addf %2, %4 : vector<16x1024xf32>
    %cst_5 = arith.constant 0.000000e+00 : f32
    %6 = vector.broadcast %cst_5 : f32 to vector<16x1024xf32>
    %7 = arith.maximumf %5, %6 : vector<16x1024xf32>
    %8 = arith.truncf %7 : vector<16x1024xf32> to vector<16x1024xbf16>
    %c0_6 = arith.constant 0 : index
    %c0_7 = arith.constant 0 : index
    %9 = vector.load %arg4[%c0_6, %c0_7] : memref<1024x1024xbf16, #tpu.memory_space<vmem>>, vector<1024x1024xbf16>
    %cst_8 = arith.constant dense<0.000000e+00> : vector<16x1024xf32>
    %10 = tpu.matmul %8, %9, %cst_8 {dimension_numbers = #tpu.dot_dimension_numbers<[1], [0], [0], [1], [0, 0, 1, 1], [], []>} : vector<16x1024xbf16>, vector<1024x1024xbf16>, vector<16x1024xf32> -> vector<16x1024xf32>
    %c0_9 = arith.constant 0 : index
    %c0_10 = arith.constant 0 : index
    %11 = vector.load %arg5[%c0_9, %c0_10] : memref<1x1024xf32, #tpu.memory_space<vmem>>, vector<1x1024xf32>
    %12 = vector.broadcast %11 : vector<1x1024xf32> to vector<16x1024xf32>
    %13 = arith.addf %10, %12 : vector<16x1024xf32>
    %cst_11 = arith.constant 0.000000e+00 : f32
    %14 = vector.broadcast %cst_11 : f32 to vector<16x1024xf32>
    %15 = arith.maximumf %13, %14 : vector<16x1024xf32>
    %16 = arith.truncf %15 : vector<16x1024xf32> to vector<16x1024xbf16>
    %c0_12 = arith.constant 0 : index
    %c0_13 = arith.constant 0 : index
    %17 = vector.load %arg6[%c0_12, %c0_13] : memref<1024x512xbf16, #tpu.memory_space<vmem>>, vector<1024x512xbf16>
    %cst_14 = arith.constant dense<0.000000e+00> : vector<16x512xf32>
    %18 = tpu.matmul %16, %17, %cst_14 {dimension_numbers = #tpu.dot_dimension_numbers<[1], [0], [0], [1], [0, 0, 1, 1], [], []>} : vector<16x1024xbf16>, vector<1024x512xbf16>, vector<16x512xf32> -> vector<16x512xf32>
    %c0_15 = arith.constant 0 : index
    %c0_16 = arith.constant 0 : index
    %19 = vector.load %arg7[%c0_15, %c0_16] : memref<1x512xf32, #tpu.memory_space<vmem>>, vector<1x512xf32>
    %20 = vector.broadcast %19 : vector<1x512xf32> to vector<16x512xf32>
    %21 = arith.addf %18, %20 : vector<16x512xf32>
    %cst_17 = arith.constant 0.000000e+00 : f32
    %22 = vector.broadcast %cst_17 : f32 to vector<16x512xf32>
    %23 = arith.maximumf %21, %22 : vector<16x512xf32>
    %24 = arith.truncf %23 : vector<16x512xf32> to vector<16x512xbf16>
    %c0_18 = arith.constant 0 : index
    %c0_19 = arith.constant 0 : index
    %25 = vector.load %arg8[%c0_18, %c0_19] : memref<512x128xbf16, #tpu.memory_space<vmem>>, vector<512x128xbf16>
    %cst_20 = arith.constant dense<0.000000e+00> : vector<16x128xf32>
    %26 = tpu.matmul %24, %25, %cst_20 {dimension_numbers = #tpu.dot_dimension_numbers<[1], [0], [0], [1], [0, 0, 1, 1], [], []>} : vector<16x512xbf16>, vector<512x128xbf16>, vector<16x128xf32> -> vector<16x128xf32>
    %c0_21 = arith.constant 0 : index
    %c0_22 = arith.constant 0 : index
    %27 = vector.load %arg9[%c0_21, %c0_22] : memref<1x128xf32, #tpu.memory_space<vmem>>, vector<1x128xf32>
    %28 = vector.broadcast %27 : vector<1x128xf32> to vector<16x128xf32>
    %29 = arith.addf %26, %28 : vector<16x128xf32>
    %cst_23 = arith.constant 0.000000e+00 : f32
    %30 = vector.broadcast %cst_23 : f32 to vector<16x128xf32>
    %31 = arith.maximumf %29, %30 : vector<16x128xf32>
    %32 = arith.truncf %31 : vector<16x128xf32> to vector<16x128xbf16>
    %c0_24 = arith.constant 0 : index
    %c0_25 = arith.constant 0 : index
    %33 = vector.load %arg10[%c0_24, %c0_25] : memref<128x128xbf16, #tpu.memory_space<vmem>>, vector<128x128xbf16>
    %cst_26 = arith.constant dense<0.000000e+00> : vector<16x128xf32>
    %34 = tpu.matmul %32, %33, %cst_26 {dimension_numbers = #tpu.dot_dimension_numbers<[1], [0], [0], [1], [0, 0, 1, 1], [], []>} : vector<16x128xbf16>, vector<128x128xbf16>, vector<16x128xf32> -> vector<16x128xf32>
    %c0_27 = arith.constant 0 : index
    %c0_28 = arith.constant 0 : index
    %35 = vector.load %arg11[%c0_27, %c0_28] : memref<1x128xf32, #tpu.memory_space<vmem>>, vector<1x128xf32>
    %36 = vector.broadcast %35 : vector<1x128xf32> to vector<16x128xf32>
    %37 = arith.addf %34, %36 : vector<16x128xf32>
    %38 = arith.truncf %37 : vector<16x128xf32> to vector<16x128xbf16>
    %c0_29 = arith.constant 0 : index
    %c0_30 = arith.constant 0 : index
    %39 = vector.load %arg12[%c0_29, %c0_30] : memref<16x128xbf16, #tpu.memory_space<vmem>>, vector<16x128xbf16>
    tpu.vector_store %arg12[%c0_29, %c0_30], %38 {strides = array<i32>} : memref<16x128xbf16, #tpu.memory_space<vmem>>, vector<16x128xbf16>,
    return
  }
  func.func @transform_0(%arg0: i32) -> (i32, i32) {
    %c0_i32 = arith.constant 0 : i32
    %c0_i32_0 = arith.constant 0 : i32
    return %arg0, %c0_i32 : i32, i32
  }
  func.func @transform_1(%arg0: i32) -> (i32, i32) {
    %c0_i32 = arith.constant 0 : i32
    %c0_i32_0 = arith.constant 0 : i32
    %c0_i32_1 = arith.constant 0 : i32
    return %c0_i32, %c0_i32_0 : i32, i32
  }
  func.func @transform_2(%arg0: i32) -> (i32, i32) {
    %c0_i32 = arith.constant 0 : i32
    %c0_i32_0 = arith.constant 0 : i32
    %c0_i32_1 = arith.constant 0 : i32
    return %c0_i32, %c0_i32_0 : i32, i32
  }
  func.func @transform_3(%arg0: i32) -> (i32, i32) {
    %c0_i32 = arith.constant 0 : i32
    %c0_i32_0 = arith.constant 0 : i32
    %c0_i32_1 = arith.constant 0 : i32
    return %c0_i32, %c0_i32_0 : i32, i32
  }
  func.func @transform_4(%arg0: i32) -> (i32, i32) {
    %c0_i32 = arith.constant 0 : i32
    %c0_i32_0 = arith.constant 0 : i32
    %c0_i32_1 = arith.constant 0 : i32
    return %c0_i32, %c0_i32_0 : i32, i32
  }
  func.func @transform_5(%arg0: i32) -> (i32, i32) {
    %c0_i32 = arith.constant 0 : i32
    %c0_i32_0 = arith.constant 0 : i32
    %c0_i32_1 = arith.constant 0 : i32
    return %c0_i32, %c0_i32_0 : i32, i32
  }
  func.func @transform_6(%arg0: i32) -> (i32, i32) {
    %c0_i32 = arith.constant 0 : i32
    %c0_i32_0 = arith.constant 0 : i32
    %c0_i32_1 = arith.constant 0 : i32
    return %c0_i32, %c0_i32_0 : i32, i32
  }
  func.func @transform_7(%arg0: i32) -> (i32, i32) {
    %c0_i32 = arith.constant 0 : i32
    %c0_i32_0 = arith.constant 0 : i32
    %c0_i32_1 = arith.constant 0 : i32
    return %c0_i32, %c0_i32_0 : i32, i32
  }
  func.func @transform_8(%arg0: i32) -> (i32, i32) {
    %c0_i32 = arith.constant 0 : i32
    %c0_i32_0 = arith.constant 0 : i32
    %c0_i32_1 = arith.constant 0 : i32
    return %c0_i32, %c0_i32_0 : i32, i32
  }
  func.func @transform_9(%arg0: i32) -> (i32, i32) {
    %c0_i32 = arith.constant 0 : i32
    %c0_i32_0 = arith.constant 0 : i32
    %c0_i32_1 = arith.constant 0 : i32
    return %c0_i32, %c0_i32_0 : i32, i32
  }
  func.func @transform_10(%arg0: i32) -> (i32, i32) {
    %c0_i32 = arith.constant 0 : i32
    %c0_i32_0 = arith.constant 0 : i32
    %c0_i32_1 = arith.constant 0 : i32
    return %c0_i32, %c0_i32_0 : i32, i32
  }
  func.func @transform_11(%arg0: i32) -> (i32, i32) {
    %c0_i32 = arith.constant 0 : i32
    %c0_i32_0 = arith.constant 0 : i32
    return %arg0, %c0_i32 : i32, i32
  }
}

</mosaic_0001>

<llo_original>
// kernel: tpu_custom_call.1
$region0: #{tpu_custom_call.1}
  #allocation0 [shape = 'u32[]', space=smem, size = 0x4, offset = 0x4, fixed_abs, tag = 'smem constant byte address 0x4 - core index']
  #allocation1 [shape = 'u32[72,128]{1,0:T(1,128)}', space=vmem, size = 0x9000, scoped, tag = 'internal scratch']
  %s0 = inlined_call_operand.hbm [shape: bf16[16,256], index: 0, kind: input, shape index: {}]
  %s1 = inlined_call_operand.hbm [shape: bf16[256,1024], index: 1, kind: input, shape index: {}]
  %s2 = inlined_call_operand.hbm [shape: f32[1,1024], index: 2, kind: input, shape index: {}]
  %s3 = inlined_call_operand.hbm [shape: bf16[1024,1024], index: 3, kind: input, shape index: {}]
  %s4 = inlined_call_operand.hbm [shape: f32[1,1024], index: 4, kind: input, shape index: {}]
  %s5 = inlined_call_operand.hbm [shape: bf16[1024,512], index: 5, kind: input, shape index: {}]
  %s6 = inlined_call_operand.hbm [shape: f32[1,512], index: 6, kind: input, shape index: {}]
  %s7 = inlined_call_operand.hbm [shape: bf16[512,128], index: 7, kind: input, shape index: {}]
  %s8 = inlined_call_operand.hbm [shape: f32[1,128], index: 8, kind: input, shape index: {}]
  %s9 = inlined_call_operand.hbm [shape: bf16[128,128], index: 9, kind: input, shape index: {}]
  %s10 = inlined_call_operand.hbm [shape: f32[1,128], index: 10, kind: input, shape index: {}]
  %s11 = inlined_call_operand.hbm [shape: bf16[16,128], index: 11, kind: output, shape index: {}]
  %s12 = sld [smem:[#allocation0]]
  $region98: #{tpu_custom_call.1} parent=0
    _
  %s14 = ssub.s32 1, %s12
  %s15 = scalar_select 0, %s14, %s12
  $region1: #{tpu_custom_call.1} parent=0
    #allocation2 [shape = 'u8[8192]{0}', space=vmem, size = 0x2000, scoped, tag = 'input window, operand 0, single buffered']
    #allocation3 [shape = 's32[1]{0}', space=sflag, size = 0x4, scoped, tag = 'scoped memory for tpu_custom_call.1']
    #allocation4 [shape = 's32[1]{0}', space=sflag, size = 0x4, scoped, tag = 'scoped memory for tpu_custom_call.1']
    #allocation5 [shape = 'u8[524288]{0}', space=vmem, size = 0x80000, scoped, tag = 'input window, operand 1, single buffered']
    #allocation6 [shape = 's32[1]{0}', space=sflag, size = 0x4, scoped, tag = 'scoped memory for tpu_custom_call.1']
    #allocation7 [shape = 'u8[4096]{0}', space=vmem, size = 0x1000, scoped, tag = 'input window, operand 2, single buffered']
    #allocation8 [shape = 'u8[2097152]{0}', space=vmem, size = 0x200000, scoped, tag = 'input window, operand 3, single buffered']
    #allocation9 [shape = 's32[1]{0}', space=sflag, size = 0x4, scoped, tag = 'scoped memory for tpu_custom_call.1']
    #allocation10 [shape = 'u8[4096]{0}', space=vmem, size = 0x1000, scoped, tag = 'input window, operand 4, single buffered']
    #allocation11 [shape = 'u8[1048576]{0}', space=vmem, size = 0x100000, scoped, tag = 'input window, operand 5, single buffered']
    #allocation12 [shape = 's32[1]{0}', space=sflag, size = 0x4, scoped, tag = 'scoped memory for tpu_custom_call.1']
    #allocation13 [shape = 'u8[2048]{0}', space=vmem, size = 0x800, scoped, tag = 'input window, operand 6, single buffered']
    #allocation14 [shape = 'u8[131072]{0}', space=vmem, size = 0x20000, scoped, tag = 'input window, operand 7, single buffered']
    #allocation15 [shape = 's32[1]{0}', space=sflag, size = 0x4, scoped, tag = 'scoped memory for tpu_custom_call.1']
    #allocation16 [shape = 'u8[512]{0}', space=vmem, size = 0x400, scoped, tag = 'input window, operand 8, single buffered']
    #allocation17 [shape = 'u8[32768]{0}', space=vmem, size = 0x8000, scoped, tag = 'input window, operand 9, single buffered']
    #allocation18 [shape = 's32[1]{0}', space=sflag, size = 0x4, scoped, tag = 'scoped memory for tpu_custom_call.1']
    #allocation19 [shape = 'u8[512]{0}', space=vmem, size = 0x400, scoped, tag = 'input window, operand 10, single buffered']
    #allocation20 [shape = 'u8[4096]{0}', space=vmem, size = 0x1000, scoped, tag = 'output window, operand 0, single buffered']
    %16 = vsyncpa [#allocation3], 0
    %17 = vsyncpa [#allocation6], 0
    %18 = vsyncpa [#allocation9], 0
    %19 = vsyncpa [#allocation12], 0
    %20 = vsyncpa [#allocation15], 0
    %21 = vsyncpa [#allocation18], 0
    %22 = vsyncpa [#allocation4], 0
    // Predicated region
    $region2: #{tpu_custom_call.1} parent=1 // pred_check
      _
    $region3: #{tpu_custom_call.1} parent=1 // pred_check_branch
      %24 = sbr.rel (0) target = $region5
    $region4: #{tpu_custom_call.1} parent=1 // pred_region
      %26 = vsyncadd [#allocation3], 0
      %s27 = sshll.u32 %s0, 4
      %s28 = int_to_ptr.hbm [resolvable:$true] %s27
      %s29 = sshll.u32 [#allocation2], 4
      %s30 = int_to_ptr.vmem [resolvable:$true] %s29
      %35 = dma.hbm_to_vmem [thread:$0]  %s28, 256, %s30, [#allocation3], 128, 128, 8
    $region5: #{tpu_custom_call.1} parent=1 // pred_fallthru
      _
    // Predicated region
    $region6: #{tpu_custom_call.1} parent=1 // pred_check
      _
    $region7: #{tpu_custom_call.1} parent=1 // pred_check_branch
      %37 = sbr.rel (0) target = $region9
    $region8: #{tpu_custom_call.1} parent=1 // pred_region
      %39 = vsyncadd [#allocation6], 0
      %s40 = sshll.u32 %s1, 4
      %s41 = int_to_ptr.hbm [resolvable:$true] %s40
      %s42 = sshll.u32 [#allocation5], 4
      %s43 = int_to_ptr.vmem [resolvable:$true] %s42
      %48 = dma.hbm_to_vmem [thread:$0]  %s41, 16384, %s43, [#allocation6], 512, 512, 32
    $region9: #{tpu_custom_call.1} parent=1 // pred_fallthru
      _
    // Predicated region
    $region10: #{tpu_custom_call.1} parent=1 // pred_check
      _
    $region11: #{tpu_custom_call.1} parent=1 // pred_check_branch
      %50 = sbr.rel (0) target = $region13
    $region12: #{tpu_custom_call.1} parent=1 // pred_region
      %52 = vsyncadd [#allocation6], 0
      %s54 = sshll.u32 %s2, 4
      %s55 = int_to_ptr.hbm [resolvable:$true] %s54
      %s56 = sshll.u32 [#allocation7], 4
      %s57 = int_to_ptr.vmem [resolvable:$true] %s56
      %59 = dma.hbm_to_vmem [thread:$0]  %s55, 128, %s57, [#allocation6]
    $region13: #{tpu_custom_call.1} parent=1 // pred_fallthru
      _
    // Predicated region
    $region14: #{tpu_custom_call.1} parent=1 // pred_check
      _
    $region15: #{tpu_custom_call.1} parent=1 // pred_check_branch
      %61 = sbr.rel (0) target = $region17
    $region16: #{tpu_custom_call.1} parent=1 // pred_region
      %63 = vsyncadd [#allocation9], 0
      %s64 = sshll.u32 %s3, 4
      %s65 = int_to_ptr.hbm [resolvable:$true] %s64
      %s66 = sshll.u32 [#allocation8], 4
      %s67 = int_to_ptr.vmem [resolvable:$true] %s66
      %72 = dma.hbm_to_vmem [thread:$0]  %s65, 65536, %s67, [#allocation9], 512, 512, 32
    $region17: #{tpu_custom_call.1} parent=1 // pred_fallthru
      _
    // Predicated region
    $region18: #{tpu_custom_call.1} parent=1 // pred_check
      _
    $region19: #{tpu_custom_call.1} parent=1 // pred_check_branch
      %74 = sbr.rel (0) target = $region21
    $region20: #{tpu_custom_call.1} parent=1 // pred_region
      %76 = vsyncadd [#allocation9], 0
      %s78 = sshll.u32 %s4, 4
      %s79 = int_to_ptr.hbm [resolvable:$true] %s78
      %s80 = sshll.u32 [#allocation10], 4
      %s81 = int_to_ptr.vmem [resolvable:$true] %s80
      %83 = dma.hbm_to_vmem [thread:$0]  %s79, 128, %s81, [#allocation9]
    $region21: #{tpu_custom_call.1} parent=1 // pred_fallthru
      _
    // Predicated region
    $region22: #{tpu_custom_call.1} parent=1 // pred_check
      _
    $region23: #{tpu_custom_call.1} parent=1 // pred_check_branch
      %85 = sbr.rel (0) target = $region25
    $region24: #{tpu_custom_call.1} parent=1 // pred_region
      %87 = vsyncadd [#allocation12], 0
      %s88 = sshll.u32 %s5, 4
      %s89 = int_to_ptr.hbm [resolvable:$true] %s88
      %s90 = sshll.u32 [#allocation11], 4
      %s91 = int_to_ptr.vmem [resolvable:$true] %s90
      %96 = dma.hbm_to_vmem [thread:$0]  %s89, 32768, %s91, [#allocation12], 256, 256, 16
    $region25: #{tpu_custom_call.1} parent=1 // pred_fallthru
      _
    // Predicated region
    $region26: #{tpu_custom_call.1} parent=1 // pred_check
      _
    $region27: #{tpu_custom_call.1} parent=1 // pred_check_branch
      %98 = sbr.rel (0) target = $region29
    $region28: #{tpu_custom_call.1} parent=1 // pred_region
      %100 = vsyncadd [#allocation12], 0
      %s102 = sshll.u32 %s6, 4
      %s103 = int_to_ptr.hbm [resolvable:$true] %s102
      %s104 = sshll.u32 [#allocation13], 4
      %s105 = int_to_ptr.vmem [resolvable:$true] %s104
      %107 = dma.hbm_to_vmem [thread:$0]  %s103, 64, %s105, [#allocation12]
    $region29: #{tpu_custom_call.1} parent=1 // pred_fallthru
      _
    // Predicated region
    $region30: #{tpu_custom_call.1} parent=1 // pred_check
      _
    $region31: #{tpu_custom_call.1} parent=1 // pred_check_branch
      %109 = sbr.rel (0) target = $region33
    $region32: #{tpu_custom_call.1} parent=1 // pred_region
      %111 = vsyncadd [#allocation15], 0
      %s112 = sshll.u32 %s7, 4
      %s113 = int_to_ptr.hbm [resolvable:$true] %s112
      %s114 = sshll.u32 [#allocation14], 4
      %s115 = int_to_ptr.vmem [resolvable:$true] %s114
      %120 = dma.hbm_to_vmem [thread:$0]  %s113, 4096, %s115, [#allocation15], 64, 64, 4
    $region33: #{tpu_custom_call.1} parent=1 // pred_fallthru
      _
    // Predicated region
    $region34: #{tpu_custom_call.1} parent=1 // pred_check
      _
    $region35: #{tpu_custom_call.1} parent=1 // pred_check_branch
      %122 = sbr.rel (0) target = $region37
    $region36: #{tpu_custom_call.1} parent=1 // pred_region
      %124 = vsyncadd [#allocation15], 0
      %s126 = sshll.u32 %s8, 4
      %s127 = int_to_ptr.hbm [resolvable:$true] %s126
      %s128 = sshll.u32 [#allocation16], 4
      %s129 = int_to_ptr.vmem [resolvable:$true] %s128
      %131 = dma.hbm_to_vmem [thread:$0]  %s127, 16, %s129, [#allocation15]
    $region37: #{tpu_custom_call.1} parent=1 // pred_fallthru
      _
    // Predicated region
    $region38: #{tpu_custom_call.1} parent=1 // pred_check
      _
    $region39: #{tpu_custom_call.1} parent=1 // pred_check_branch
      %133 = sbr.rel (0) target = $region41
    $region40: #{tpu_custom_call.1} parent=1 // pred_region
      %135 = vsyncadd [#allocation18], 0
      %s136 = sshll.u32 %s9, 4
      %s137 = int_to_ptr.hbm [resolvable:$true] %s136
      %s138 = sshll.u32 [#allocation17], 4
      %s139 = int_to_ptr.vmem [resolvable:$true] %s138
      %144 = dma.hbm_to_vmem [thread:$0]  %s137, 1024, %s139, [#allocation18], 64, 64, 4
    $region41: #{tpu_custom_call.1} parent=1 // pred_fallthru
      _
    // Predicated region
    $region42: #{tpu_custom_call.1} parent=1 // pred_check
      _
    $region43: #{tpu_custom_call.1} parent=1 // pred_check_branch
      %146 = sbr.rel (0) target = $region45
    $region44: #{tpu_custom_call.1} parent=1 // pred_region
      %148 = vsyncadd [#allocation18], 0
      %s150 = sshll.u32 %s10, 4
      %s151 = int_to_ptr.hbm [resolvable:$true] %s150
      %s152 = sshll.u32 [#allocation19], 4
      %s153 = int_to_ptr.vmem [resolvable:$true] %s152
      %155 = dma.hbm_to_vmem [thread:$0]  %s151, 16, %s153, [#allocation18]
    $region45: #{tpu_custom_call.1} parent=1 // pred_fallthru
      _
    // Predicated region
    $region46: #{tpu_custom_call.1} parent=1 // pred_check
      _
    $region47: #{tpu_custom_call.1} parent=1 // pred_check_branch
      %157 = sbr.rel (0) target = $region49
    $region48: #{tpu_custom_call.1} parent=1 // pred_region
      %159 = dma.done [#allocation3], 256
    $region49: #{tpu_custom_call.1} parent=1 // pred_fallthru
      _
    // Predicated region
    $region50: #{tpu_custom_call.1} parent=1 // pred_check
      _
    $region51: #{tpu_custom_call.1} parent=1 // pred_check_branch
      %161 = sbr.rel (0) target = $region53
    $region52: #{tpu_custom_call.1} parent=1 // pred_region
      %163 = dma.done [#allocation6], 16384
    $region53: #{tpu_custom_call.1} parent=1 // pred_fallthru
      _
    // Predicated region
    $region54: #{tpu_custom_call.1} parent=1 // pred_check
      _
    $region55: #{tpu_custom_call.1} parent=1 // pred_check_branch
      %165 = sbr.rel (0) target = $region57
    $region56: #{tpu_custom_call.1} parent=1 // pred_region
      %167 = dma.done [#allocation6], 128
    $region57: #{tpu_custom_call.1} parent=1 // pred_fallthru
      _
    // Predicated region
    $region58: #{tpu_custom_call.1} parent=1 // pred_check
      _
    $region59: #{tpu_custom_call.1} parent=1 // pred_check_branch
      %169 = sbr.rel (0) target = $region61
    $region60: #{tpu_custom_call.1} parent=1 // pred_region
      %171 = dma.done [#allocation9], 65536
    $region61: #{tpu_custom_call.1} parent=1 // pred_fallthru
      _
    // Predicated region
    $region62: #{tpu_custom_call.1} parent=1 // pred_check
      _
    $region63: #{tpu_custom_call.1} parent=1 // pred_check_branch
      %173 = sbr.rel (0) target = $region65
    $region64: #{tpu_custom_call.1} parent=1 // pred_region
      %175 = dma.done [#allocation9], 128
    $region65: #{tpu_custom_call.1} parent=1 // pred_fallthru
      _
    // Predicated region
    $region66: #{tpu_custom_call.1} parent=1 // pred_check
      _
    $region67: #{tpu_custom_call.1} parent=1 // pred_check_branch
      %177 = sbr.rel (0) target = $region69
    $region68: #{tpu_custom_call.1} parent=1 // pred_region
      %179 = dma.done [#allocation12], 32768
    $region69: #{tpu_custom_call.1} parent=1 // pred_fallthru
      _
    // Predicated region
    $region70: #{tpu_custom_call.1} parent=1 // pred_check
      _
    $region71: #{tpu_custom_call.1} parent=1 // pred_check_branch
      %181 = sbr.rel (0) target = $region73
    $region72: #{tpu_custom_call.1} parent=1 // pred_region
      %183 = dma.done [#allocation12], 64
    $region73: #{tpu_custom_call.1} parent=1 // pred_fallthru
      _
    // Predicated region
    $region74: #{tpu_custom_call.1} parent=1 // pred_check
      _
    $region75: #{tpu_custom_call.1} parent=1 // pred_check_branch
      %185 = sbr.rel (0) target = $region77
    $region76: #{tpu_custom_call.1} parent=1 // pred_region
      %187 = dma.done [#allocation15], 4096
    $region77: #{tpu_custom_call.1} parent=1 // pred_fallthru
      _
    // Predicated region
    $region78: #{tpu_custom_call.1} parent=1 // pred_check
      _
    $region79: #{tpu_custom_call.1} parent=1 // pred_check_branch
      %189 = sbr.rel (0) target = $region81
    $region80: #{tpu_custom_call.1} parent=1 // pred_region
      %191 = dma.done [#allocation15], 16
    $region81: #{tpu_custom_call.1} parent=1 // pred_fallthru
      _
    // Predicated region
    $region82: #{tpu_custom_call.1} parent=1 // pred_check
      _
    $region83: #{tpu_custom_call.1} parent=1 // pred_check_branch
      %193 = sbr.rel (0) target = $region85
    $region84: #{tpu_custom_call.1} parent=1 // pred_region
      %195 = dma.done [#allocation18], 1024
    $region85: #{tpu_custom_call.1} parent=1 // pred_fallthru
      _
    // Predicated region
    $region86: #{tpu_custom_call.1} parent=1 // pred_check
      _
    $region87: #{tpu_custom_call.1} parent=1 // pred_check_branch
      %197 = sbr.rel (0) target = $region89
    $region88: #{tpu_custom_call.1} parent=1 // pred_region
      %199 = dma.done [#allocation18], 16
    $region89: #{tpu_custom_call.1} parent=1 // pred_fallthru
      _
    %v200 = vld [vmem:[#allocation2] sm:$0xff]
    %v201 = vld [vmem:[#allocation2 + $0x8] sm:$0xff]
    %v202 = vld [vmem:[#allocation5] sm:$0xff]
    %v203 = vld [vmem:[#allocation5 + $0x8] sm:$0xff]
    %v204 = vld [vmem:[#allocation5 + $0x10] sm:$0xff]
    %v205 = vld [vmem:[#allocation5 + $0x18] sm:$0xff]
    %v206 = vld [vmem:[#allocation5 + $0x20] sm:$0xff]
    %v207 = vld [vmem:[#allocation5 + $0x28] sm:$0xff]
    %v208 = vld [vmem:[#allocation5 + $0x30] sm:$0xff]
    %v209 = vld [vmem:[#allocation5 + $0x38] sm:$0xff]
    %v210 = vld [vmem:[#allocation5 + $0x40] sm:$0xff]
    %v211 = vld [vmem:[#allocation5 + $0x48] sm:$0xff]
    %v212 = vld [vmem:[#allocation5 + $0x50] sm:$0xff]
    %v213 = vld [vmem:[#allocation5 + $0x58] sm:$0xff]
    %v214 = vld [vmem:[#allocation5 + $0x60] sm:$0xff]
    %v215 = vld [vmem:[#allocation5 + $0x68] sm:$0xff]
    %v216 = vld [vmem:[#allocation5 + $0x70] sm:$0xff]
    %v217 = vld [vmem:[#allocation5 + $0x78] sm:$0xff]
    %v218 = vld [vmem:[#allocation5 + $0x80] sm:$0xff]
    %v219 = vld [vmem:[#allocation5 + $0x88] sm:$0xff]
    %v220 = vld [vmem:[#allocation5 + $0x90] sm:$0xff]
    %v221 = vld [vmem:[#allocation5 + $0x98] sm:$0xff]
    %v222 = vld [vmem:[#allocation5 + $0xa0] sm:$0xff]
    %v223 = vld [vmem:[#allocation5 + $0xa8] sm:$0xff]
    %v224 = vld [vmem:[#allocation5 + $0xb0] sm:$0xff]
    %v225 = vld [vmem:[#allocation5 + $0xb8] sm:$0xff]
    %v226 = vld [vmem:[#allocation5 + $0xc0] sm:$0xff]
    %v227 = vld [vmem:[#allocation5 + $0xc8] sm:$0xff]
    %v228 = vld [vmem:[#allocation5 + $0xd0] sm:$0xff]
    %v229 = vld [vmem:[#allocation5 + $0xd8] sm:$0xff]
    %v230 = vld [vmem:[#allocation5 + $0xe0] sm:$0xff]
    %v231 = vld [vmem:[#allocation5 + $0xe8] sm:$0xff]
    %v232 = vld [vmem:[#allocation5 + $0xf0] sm:$0xff]
    %v233 = vld [vmem:[#allocation5 + $0xf8] sm:$0xff]
    %v234 = vld [vmem:[#allocation5 + $0x100] sm:$0xff]
    %v235 = vld [vmem:[#allocation5 + $0x108] sm:$0xff]
    %v236 = vld [vmem:[#allocation5 + $0x110] sm:$0xff]
    %v237 = vld [vmem:[#allocation5 + $0x118] sm:$0xff]
    %v238 = vld [vmem:[#allocation5 + $0x120] sm:$0xff]
    %v239 = vld [vmem:[#allocation5 + $0x128] sm:$0xff]
    %v240 = vld [vmem:[#allocation5 + $0x130] sm:$0xff]
    %v241 = vld [vmem:[#allocation5 + $0x138] sm:$0xff]
    %v242 = vld [vmem:[#allocation5 + $0x140] sm:$0xff]
    %v243 = vld [vmem:[#allocation5 + $0x148] sm:$0xff]
    %v244 = vld [vmem:[#allocation5 + $0x150] sm:$0xff]
    %v245 = vld [vmem:[#allocation5 + $0x158] sm:$0xff]
    %v246 = vld [vmem:[#allocation5 + $0x160] sm:$0xff]
    %v247 = vld [vmem:[#allocation5 + $0x168] sm:$0xff]
    %v248 = vld [vmem:[#allocation5 + $0x170] sm:$0xff]
    %v249 = vld [vmem:[#allocation5 + $0x178] sm:$0xff]
    %v250 = vld [vmem:[#allocation5 + $0x180] sm:$0xff]
    %v251 = vld [vmem:[#allocation5 + $0x188] sm:$0xff]
    %v252 = vld [vmem:[#allocation5 + $0x190] sm:$0xff]
    %v253 = vld [vmem:[#allocation5 + $0x198] sm:$0xff]
    %v254 = vld [vmem:[#allocation5 + $0x1a0] sm:$0xff]
    %v255 = vld [vmem:[#allocation5 + $0x1a8] sm:$0xff]
    %v256 = vld [vmem:[#allocation5 + $0x1b0] sm:$0xff]
    %v257 = vld [vmem:[#allocation5 + $0x1b8] sm:$0xff]
    %v258 = vld [vmem:[#allocation5 + $0x1c0] sm:$0xff]
    %v259 = vld [vmem:[#allocation5 + $0x1c8] sm:$0xff]
    %v260 = vld [vmem:[#allocation5 + $0x1d0] sm:$0xff]
    %v261 = vld [vmem:[#allocation5 + $0x1d8] sm:$0xff]
    %v262 = vld [vmem:[#allocation5 + $0x1e0] sm:$0xff]
    %v263 = vld [vmem:[#allocation5 + $0x1e8] sm:$0xff]
    %v264 = vld [vmem:[#allocation5 + $0x1f0] sm:$0xff]
    %v265 = vld [vmem:[#allocation5 + $0x1f8] sm:$0xff]
    %v266 = vld [vmem:[#allocation5 + $0x200] sm:$0xff]
    %v267 = vld [vmem:[#allocation5 + $0x208] sm:$0xff]
    %v268 = vld [vmem:[#allocation5 + $0x210] sm:$0xff]
    %v269 = vld [vmem:[#allocation5 + $0x218] sm:$0xff]
    %v270 = vld [vmem:[#allocation5 + $0x220] sm:$0xff]
    %v271 = vld [vmem:[#allocation5 + $0x228] sm:$0xff]
    %v272 = vld [vmem:[#allocation5 + $0x230] sm:$0xff]
    %v273 = vld [vmem:[#allocation5 + $0x238] sm:$0xff]
    %v274 = vld [vmem:[#allocation5 + $0x240] sm:$0xff]
    %v275 = vld [vmem:[#allocation5 + $0x248] sm:$0xff]
    %v276 = vld [vmem:[#allocation5 + $0x250] sm:$0xff]
    %v277 = vld [vmem:[#allocation5 + $0x258] sm:$0xff]
    %v278 = vld [vmem:[#allocation5 + $0x260] sm:$0xff]
    %v279 = vld [vmem:[#allocation5 + $0x268] sm:$0xff]
    %v280 = vld [vmem:[#allocation5 + $0x270] sm:$0xff]
    %v281 = vld [vmem:[#allocation5 + $0x278] sm:$0xff]
    %v282 = vld [vmem:[#allocation5 + $0x280] sm:$0xff]
    %v283 = vld [vmem:[#allocation5 + $0x288] sm:$0xff]
    %v284 = vld [vmem:[#allocation5 + $0x290] sm:$0xff]
    %v285 = vld [vmem:[#allocation5 + $0x298] sm:$0xff]
    %v286 = vld [vmem:[#allocation5 + $0x2a0] sm:$0xff]
    %v287 = vld [vmem:[#allocation5 + $0x2a8] sm:$0xff]
    %v288 = vld [vmem:[#allocation5 + $0x2b0] sm:$0xff]
    %v289 = vld [vmem:[#allocation5 + $0x2b8] sm:$0xff]
    %v290 = vld [vmem:[#allocation5 + $0x2c0] sm:$0xff]
    %v291 = vld [vmem:[#allocation5 + $0x2c8] sm:$0xff]
    %v292 = vld [vmem:[#allocation5 + $0x2d0] sm:$0xff]
    %v293 = vld [vmem:[#allocation5 + $0x2d8] sm:$0xff]
    %v294 = vld [vmem:[#allocation5 + $0x2e0] sm:$0xff]
    %v295 = vld [vmem:[#allocation5 + $0x2e8] sm:$0xff]
    %v296 = vld [vmem:[#allocation5 + $0x2f0] sm:$0xff]
    %v297 = vld [vmem:[#allocation5 + $0x2f8] sm:$0xff]
    %v298 = vld [vmem:[#allocation5 + $0x300] sm:$0xff]
    %v299 = vld [vmem:[#allocation5 + $0x308] sm:$0xff]
    %v300 = vld [vmem:[#allocation5 + $0x310] sm:$0xff]
    %v301 = vld [vmem:[#allocation5 + $0x318] sm:$0xff]
    %v302 = vld [vmem:[#allocation5 + $0x320] sm:$0xff]
    %v303 = vld [vmem:[#allocation5 + $0x328] sm:$0xff]
    %v304 = vld [vmem:[#allocation5 + $0x330] sm:$0xff]
    %v305 = vld [vmem:[#allocation5 + $0x338] sm:$0xff]
    %v306 = vld [vmem:[#allocation5 + $0x340] sm:$0xff]
    %v307 = vld [vmem:[#allocation5 + $0x348] sm:$0xff]
    %v308 = vld [vmem:[#allocation5 + $0x350] sm:$0xff]
    %v309 = vld [vmem:[#allocation5 + $0x358] sm:$0xff]
    %v310 = vld [vmem:[#allocation5 + $0x360] sm:$0xff]
    %v311 = vld [vmem:[#allocation5 + $0x368] sm:$0xff]
    %v312 = vld [vmem:[#allocation5 + $0x370] sm:$0xff]
    %v313 = vld [vmem:[#allocation5 + $0x378] sm:$0xff]
    %v314 = vld [vmem:[#allocation5 + $0x380] sm:$0xff]
    %v315 = vld [vmem:[#allocation5 + $0x388] sm:$0xff]
    %v316 = vld [vmem:[#allocation5 + $0x390] sm:$0xff]
    %v317 = vld [vmem:[#allocation5 + $0x398] sm:$0xff]
    %v318 = vld [vmem:[#allocation5 + $0x3a0] sm:$0xff]
    %v319 = vld [vmem:[#allocation5 + $0x3a8] sm:$0xff]
    %v320 = vld [vmem:[#allocation5 + $0x3b0] sm:$0xff]
    %v321 = vld [vmem:[#allocation5 + $0x3b8] sm:$0xff]
    %v322 = vld [vmem:[#allocation5 + $0x3c0] sm:$0xff]
    %v323 = vld [vmem:[#allocation5 + $0x3c8] sm:$0xff]
    %v324 = vld [vmem:[#allocation5 + $0x3d0] sm:$0xff]
    %v325 = vld [vmem:[#allocation5 + $0x3d8] sm:$0xff]
    %v326 = vld [vmem:[#allocation5 + $0x3e0] sm:$0xff]
    %v327 = vld [vmem:[#allocation5 + $0x3e8] sm:$0xff]
    %v328 = vld [vmem:[#allocation5 + $0x3f0] sm:$0xff]
    %v329 = vld [vmem:[#allocation5 + $0x3f8] sm:$0xff]
    %v330 = vld [vmem:[#allocation7] sm:$0xff]
    %v332 = vperm.slane %v330, 0
    %v333 = vperm.slane %v330, 1
    %v334 = vperm.slane %v330, 2
    %v335 = vperm.slane %v330, 3
    %v336 = vperm.slane %v330, 4
    %v337 = vperm.slane %v330, 5
    %v338 = vperm.slane %v330, 6
    %v339 = vperm.slane %v330, 7
    %v350 = vunpack.c.l.b16 %v200
    %v351 = vunpack.c.h.b16 %v200
    %v352 = vunpack.c.l.b16 %v201
    %v353 = vunpack.c.h.b16 %v201
    %v354 = vpack.c.b16 %v352, %v350
    %v355 = vpack.c.b16 %v353, %v351
    %v486 = vunpack.c.l.b16 %v202
    %v487 = vunpack.c.h.b16 %v202
    %v488 = vunpack.c.l.b16 %v203
    %v489 = vunpack.c.h.b16 %v203
    %v490 = vunpack.c.l.b16 %v204
    %v491 = vunpack.c.h.b16 %v204
    %v492 = vunpack.c.l.b16 %v205
    %v493 = vunpack.c.h.b16 %v205
    %v494 = vunpack.c.l.b16 %v206
    %v495 = vunpack.c.h.b16 %v206
    %v496 = vunpack.c.l.b16 %v207
    %v497 = vunpack.c.h.b16 %v207
    %v498 = vunpack.c.l.b16 %v208
    %v499 = vunpack.c.h.b16 %v208
    %v500 = vunpack.c.l.b16 %v209
    %v501 = vunpack.c.h.b16 %v209
    %v502 = vunpack.c.l.b16 %v210
    %v503 = vunpack.c.h.b16 %v210
    %v504 = vunpack.c.l.b16 %v211
    %v505 = vunpack.c.h.b16 %v211
    %v506 = vunpack.c.l.b16 %v212
    %v507 = vunpack.c.h.b16 %v212
    %v508 = vunpack.c.l.b16 %v213
    %v509 = vunpack.c.h.b16 %v213
    %v510 = vunpack.c.l.b16 %v214
    %v511 = vunpack.c.h.b16 %v214
    %v512 = vunpack.c.l.b16 %v215
    %v513 = vunpack.c.h.b16 %v215
    %v514 = vunpack.c.l.b16 %v216
    %v515 = vunpack.c.h.b16 %v216
    %v516 = vunpack.c.l.b16 %v217
    %v517 = vunpack.c.h.b16 %v217
    %v518 = vunpack.c.l.b16 %v218
    %v519 = vunpack.c.h.b16 %v218
    %v520 = vunpack.c.l.b16 %v219
    %v521 = vunpack.c.h.b16 %v219
    %v522 = vunpack.c.l.b16 %v220
    %v523 = vunpack.c.h.b16 %v220
    %v524 = vunpack.c.l.b16 %v221
    %v525 = vunpack.c.h.b16 %v221
    %v526 = vunpack.c.l.b16 %v222
    %v527 = vunpack.c.h.b16 %v222
    %v528 = vunpack.c.l.b16 %v223
    %v529 = vunpack.c.h.b16 %v223
    %v530 = vunpack.c.l.b16 %v224
    %v531 = vunpack.c.h.b16 %v224
    %v532 = vunpack.c.l.b16 %v225
    %v533 = vunpack.c.h.b16 %v225
    %v534 = vunpack.c.l.b16 %v226
    %v535 = vunpack.c.h.b16 %v226
    %v536 = vunpack.c.l.b16 %v227
    %v537 = vunpack.c.h.b16 %v227
    %v538 = vunpack.c.l.b16 %v228
    %v539 = vunpack.c.h.b16 %v228
    %v540 = vunpack.c.l.b16 %v229
    %v541 = vunpack.c.h.b16 %v229
    %v542 = vunpack.c.l.b16 %v230
    %v543 = vunpack.c.h.b16 %v230
    %v544 = vunpack.c.l.b16 %v231
    %v545 = vunpack.c.h.b16 %v231
    %v546 = vunpack.c.l.b16 %v232
    %v547 = vunpack.c.h.b16 %v232
    %v548 = vunpack.c.l.b16 %v233
    %v549 = vunpack.c.h.b16 %v233
    %v550 = vunpack.c.l.b16 %v234
    %v551 = vunpack.c.h.b16 %v234
    %v552 = vunpack.c.l.b16 %v235
    %v553 = vunpack.c.h.b16 %v235
    %v554 = vunpack.c.l.b16 %v236
    %v555 = vunpack.c.h.b16 %v236
    %v556 = vunpack.c.l.b16 %v237
    %v557 = vunpack.c.h.b16 %v237
    %v558 = vunpack.c.l.b16 %v238
    %v559 = vunpack.c.h.b16 %v238
    %v560 = vunpack.c.l.b16 %v239
    %v561 = vunpack.c.h.b16 %v239
    %v562 = vunpack.c.l.b16 %v240
    %v563 = vunpack.c.h.b16 %v240
    %v564 = vunpack.c.l.b16 %v241
    %v565 = vunpack.c.h.b16 %v241
    %v566 = vunpack.c.l.b16 %v242
    %v567 = vunpack.c.h.b16 %v242
    %v568 = vunpack.c.l.b16 %v243
    %v569 = vunpack.c.h.b16 %v243
    %v570 = vunpack.c.l.b16 %v244
    %v571 = vunpack.c.h.b16 %v244
    %v572 = vunpack.c.l.b16 %v245
    %v573 = vunpack.c.h.b16 %v245
    %v574 = vunpack.c.l.b16 %v246
    %v575 = vunpack.c.h.b16 %v246
    %v576 = vunpack.c.l.b16 %v247
    %v577 = vunpack.c.h.b16 %v247
    %v578 = vunpack.c.l.b16 %v248
    %v579 = vunpack.c.h.b16 %v248
    %v580 = vunpack.c.l.b16 %v249
    %v581 = vunpack.c.h.b16 %v249
    %v582 = vunpack.c.l.b16 %v250
    %v583 = vunpack.c.h.b16 %v250
    %v584 = vunpack.c.l.b16 %v251
    %v585 = vunpack.c.h.b16 %v251
    %v586 = vunpack.c.l.b16 %v252
    %v587 = vunpack.c.h.b16 %v252
    %v588 = vunpack.c.l.b16 %v253
    %v589 = vunpack.c.h.b16 %v253
    %v590 = vunpack.c.l.b16 %v254
    %v591 = vunpack.c.h.b16 %v254
    %v592 = vunpack.c.l.b16 %v255
    %v593 = vunpack.c.h.b16 %v255
    %v594 = vunpack.c.l.b16 %v256
    %v595 = vunpack.c.h.b16 %v256
    %v596 = vunpack.c.l.b16 %v257
    %v597 = vunpack.c.h.b16 %v257
    %v598 = vunpack.c.l.b16 %v258
    %v599 = vunpack.c.h.b16 %v258
    %v600 = vunpack.c.l.b16 %v259
    %v601 = vunpack.c.h.b16 %v259
    %v602 = vunpack.c.l.b16 %v260
    %v603 = vunpack.c.h.b16 %v260
    %v604 = vunpack.c.l.b16 %v261
    %v605 = vunpack.c.h.b16 %v261
    %v606 = vunpack.c.l.b16 %v262
    %v607 = vunpack.c.h.b16 %v262
    %v608 = vunpack.c.l.b16 %v263
    %v609 = vunpack.c.h.b16 %v263
    %v610 = vunpack.c.l.b16 %v264
    %v611 = vunpack.c.h.b16 %v264
    %v612 = vunpack.c.l.b16 %v265
    %v613 = vunpack.c.h.b16 %v265
    %v614 = vunpack.c.l.b16 %v266
    %v615 = vunpack.c.h.b16 %v266
    %v616 = vunpack.c.l.b16 %v267
    %v617 = vunpack.c.h.b16 %v267
    %v618 = vunpack.c.l.b16 %v268
    %v619 = vunpack.c.h.b16 %v268
    %v620 = vunpack.c.l.b16 %v269
    %v621 = vunpack.c.h.b16 %v269
    %v622 = vunpack.c.l.b16 %v270
    %v623 = vunpack.c.h.b16 %v270
    %v624 = vunpack.c.l.b16 %v271
    %v625 = vunpack.c.h.b16 %v271
    %v626 = vunpack.c.l.b16 %v272
    %v627 = vunpack.c.h.b16 %v272
    %v628 = vunpack.c.l.b16 %v273
    %v629 = vunpack.c.h.b16 %v273
    %v630 = vunpack.c.l.b16 %v274
    %v631 = vunpack.c.h.b16 %v274
    %v632 = vunpack.c.l.b16 %v275
    %v633 = vunpack.c.h.b16 %v275
    %v634 = vunpack.c.l.b16 %v276
    %v635 = vunpack.c.h.b16 %v276
    %v636 = vunpack.c.l.b16 %v277
    %v637 = vunpack.c.h.b16 %v277
    %v638 = vunpack.c.l.b16 %v278
    %v639 = vunpack.c.h.b16 %v278
    %v640 = vunpack.c.l.b16 %v279
    %v641 = vunpack.c.h.b16 %v279
    %v642 = vunpack.c.l.b16 %v280
    %v643 = vunpack.c.h.b16 %v280
    %v644 = vunpack.c.l.b16 %v281
    %v645 = vunpack.c.h.b16 %v281
    %v646 = vunpack.c.l.b16 %v282
    %v647 = vunpack.c.h.b16 %v282
    %v648 = vunpack.c.l.b16 %v283
    %v649 = vunpack.c.h.b16 %v283
    %v650 = vunpack.c.l.b16 %v284
    %v651 = vunpack.c.h.b16 %v284
    %v652 = vunpack.c.l.b16 %v285
    %v653 = vunpack.c.h.b16 %v285
    %v654 = vunpack.c.l.b16 %v286
    %v655 = vunpack.c.h.b16 %v286
    %v656 = vunpack.c.l.b16 %v287
    %v657 = vunpack.c.h.b16 %v287
    %v658 = vunpack.c.l.b16 %v288
    %v659 = vunpack.c.h.b16 %v288
    %v660 = vunpack.c.l.b16 %v289
    %v661 = vunpack.c.h.b16 %v289
    %v662 = vunpack.c.l.b16 %v290
    %v663 = vunpack.c.h.b16 %v290
    %v664 = vunpack.c.l.b16 %v291
    %v665 = vunpack.c.h.b16 %v291
    %v666 = vunpack.c.l.b16 %v292
    %v667 = vunpack.c.h.b16 %v292
    %v668 = vunpack.c.l.b16 %v293
    %v669 = vunpack.c.h.b16 %v293
    %v670 = vunpack.c.l.b16 %v294
    %v671 = vunpack.c.h.b16 %v294
    %v672 = vunpack.c.l.b16 %v295
    %v673 = vunpack.c.h.b16 %v295
    %v674 = vunpack.c.l.b16 %v296
    %v675 = vunpack.c.h.b16 %v296
    %v676 = vunpack.c.l.b16 %v297
    %v677 = vunpack.c.h.b16 %v297
    %v678 = vunpack.c.l.b16 %v298
    %v679 = vunpack.c.h.b16 %v298
    %v680 = vunpack.c.l.b16 %v299
    %v681 = vunpack.c.h.b16 %v299
    %v682 = vunpack.c.l.b16 %v300
    %v683 = vunpack.c.h.b16 %v300
    %v684 = vunpack.c.l.b16 %v301
    %v685 = vunpack.c.h.b16 %v301
    %v686 = vunpack.c.l.b16 %v302
    %v687 = vunpack.c.h.b16 %v302
    %v688 = vunpack.c.l.b16 %v303
    %v689 = vunpack.c.h.b16 %v303
    %v690 = vunpack.c.l.b16 %v304
    %v691 = vunpack.c.h.b16 %v304
    %v692 = vunpack.c.l.b16 %v305
    %v693 = vunpack.c.h.b16 %v305
    %v694 = vunpack.c.l.b16 %v306
    %v695 = vunpack.c.h.b16 %v306
    %v696 = vunpack.c.l.b16 %v307
    %v697 = vunpack.c.h.b16 %v307
    %v698 = vunpack.c.l.b16 %v308
    %v699 = vunpack.c.h.b16 %v308
    %v700 = vunpack.c.l.b16 %v309
    %v701 = vunpack.c.h.b16 %v309
    %v702 = vunpack.c.l.b16 %v310
    %v703 = vunpack.c.h.b16 %v310
    %v704 = vunpack.c.l.b16 %v311
    %v705 = vunpack.c.h.b16 %v311
    %v706 = vunpack.c.l.b16 %v312
    %v707 = vunpack.c.h.b16 %v312
    %v708 = vunpack.c.l.b16 %v313
    %v709 = vunpack.c.h.b16 %v313
    %v710 = vunpack.c.l.b16 %v314
    %v711 = vunpack.c.h.b16 %v314
    %v712 = vunpack.c.l.b16 %v315
    %v713 = vunpack.c.h.b16 %v315
    %v714 = vunpack.c.l.b16 %v316
    %v715 = vunpack.c.h.b16 %v316
    %v716 = vunpack.c.l.b16 %v317
    %v717 = vunpack.c.h.b16 %v317
    %v718 = vunpack.c.l.b16 %v318
    %v719 = vunpack.c.h.b16 %v318
    %v720 = vunpack.c.l.b16 %v319
    %v721 = vunpack.c.h.b16 %v319
    %v722 = vunpack.c.l.b16 %v320
    %v723 = vunpack.c.h.b16 %v320
    %v724 = vunpack.c.l.b16 %v321
    %v725 = vunpack.c.h.b16 %v321
    %v726 = vunpack.c.l.b16 %v322
    %v727 = vunpack.c.h.b16 %v322
    %v728 = vunpack.c.l.b16 %v323
    %v729 = vunpack.c.h.b16 %v323
    %v730 = vunpack.c.l.b16 %v324
    %v731 = vunpack.c.h.b16 %v324
    %v732 = vunpack.c.l.b16 %v325
    %v733 = vunpack.c.h.b16 %v325
    %v734 = vunpack.c.l.b16 %v326
    %v735 = vunpack.c.h.b16 %v326
    %v736 = vunpack.c.l.b16 %v327
    %v737 = vunpack.c.h.b16 %v327
    %v738 = vunpack.c.l.b16 %v328
    %v739 = vunpack.c.h.b16 %v328
    %v740 = vunpack.c.l.b16 %v329
    %v741 = vunpack.c.h.b16 %v329
    %v742 = vpack.c.b16 %v494, %v486
    %v743 = vpack.c.b16 %v495, %v487
    %v744 = vpack.c.b16 %v496, %v488
    %v745 = vpack.c.b16 %v497, %v489
    %v746 = vpack.c.b16 %v498, %v490
    %v747 = vpack.c.b16 %v499, %v491
    %v748 = vpack.c.b16 %v500, %v492
    %v749 = vpack.c.b16 %v501, %v493
    %v750 = vpack.c.b16 %v510, %v502
    %v751 = vpack.c.b16 %v511, %v503
    %v752 = vpack.c.b16 %v512, %v504
    %v753 = vpack.c.b16 %v513, %v505
    %v754 = vpack.c.b16 %v514, %v506
    %v755 = vpack.c.b16 %v515, %v507
    %v756 = vpack.c.b16 %v516, %v508
    %v757 = vpack.c.b16 %v517, %v509
    %v758 = vpack.c.b16 %v526, %v518
    %v759 = vpack.c.b16 %v527, %v519
    %v760 = vpack.c.b16 %v528, %v520
    %v761 = vpack.c.b16 %v529, %v521
    %v762 = vpack.c.b16 %v530, %v522
    %v763 = vpack.c.b16 %v531, %v523
    %v764 = vpack.c.b16 %v532, %v524
    %v765 = vpack.c.b16 %v533, %v525
    %v766 = vpack.c.b16 %v542, %v534
    %v767 = vpack.c.b16 %v543, %v535
    %v768 = vpack.c.b16 %v544, %v536
    %v769 = vpack.c.b16 %v545, %v537
    %v770 = vpack.c.b16 %v546, %v538
    %v771 = vpack.c.b16 %v547, %v539
    %v772 = vpack.c.b16 %v548, %v540
    %v773 = vpack.c.b16 %v549, %v541
    %v774 = vpack.c.b16 %v558, %v550
    %v775 = vpack.c.b16 %v559, %v551
    %v776 = vpack.c.b16 %v560, %v552
    %v777 = vpack.c.b16 %v561, %v553
    %v778 = vpack.c.b16 %v562, %v554
    %v779 = vpack.c.b16 %v563, %v555
    %v780 = vpack.c.b16 %v564, %v556
    %v781 = vpack.c.b16 %v565, %v557
    %v782 = vpack.c.b16 %v574, %v566
    %v783 = vpack.c.b16 %v575, %v567
    %v784 = vpack.c.b16 %v576, %v568
    %v785 = vpack.c.b16 %v577, %v569
    %v786 = vpack.c.b16 %v578, %v570
    %v787 = vpack.c.b16 %v579, %v571
    %v788 = vpack.c.b16 %v580, %v572
    %v789 = vpack.c.b16 %v581, %v573
    %v790 = vpack.c.b16 %v590, %v582
    %v791 = vpack.c.b16 %v591, %v583
    %v792 = vpack.c.b16 %v592, %v584
    %v793 = vpack.c.b16 %v593, %v585
    %v794 = vpack.c.b16 %v594, %v586
    %v795 = vpack.c.b16 %v595, %v587
    %v796 = vpack.c.b16 %v596, %v588
    %v797 = vpack.c.b16 %v597, %v589
    %v798 = vpack.c.b16 %v606, %v598
    %v799 = vpack.c.b16 %v607, %v599
    %v800 = vpack.c.b16 %v608, %v600
    %v801 = vpack.c.b16 %v609, %v601
    %v802 = vpack.c.b16 %v610, %v602
    %v803 = vpack.c.b16 %v611, %v603
    %v804 = vpack.c.b16 %v612, %v604
    %v805 = vpack.c.b16 %v613, %v605
    %v806 = vpack.c.b16 %v622, %v614
    %v807 = vpack.c.b16 %v623, %v615
    %v808 = vpack.c.b16 %v624, %v616
    %v809 = vpack.c.b16 %v625, %v617
    %v810 = vpack.c.b16 %v626, %v618
    %v811 = vpack.c.b16 %v627, %v619
    %v812 = vpack.c.b16 %v628, %v620
    %v813 = vpack.c.b16 %v629, %v621
    %v814 = vpack.c.b16 %v638, %v630
    %v815 = vpack.c.b16 %v639, %v631
    %v816 = vpack.c.b16 %v640, %v632
    %v817 = vpack.c.b16 %v641, %v633
    %v818 = vpack.c.b16 %v642, %v634
    %v819 = vpack.c.b16 %v643, %v635
    %v820 = vpack.c.b16 %v644, %v636
    %v821 = vpack.c.b16 %v645, %v637
    %v822 = vpack.c.b16 %v654, %v646
    %v823 = vpack.c.b16 %v655, %v647
    %v824 = vpack.c.b16 %v656, %v648
    %v825 = vpack.c.b16 %v657, %v649
    %v826 = vpack.c.b16 %v658, %v650
    %v827 = vpack.c.b16 %v659, %v651
    %v828 = vpack.c.b16 %v660, %v652
    %v829 = vpack.c.b16 %v661, %v653
    %v830 = vpack.c.b16 %v670, %v662
    %v831 = vpack.c.b16 %v671, %v663
    %v832 = vpack.c.b16 %v672, %v664
    %v833 = vpack.c.b16 %v673, %v665
    %v834 = vpack.c.b16 %v674, %v666
    %v835 = vpack.c.b16 %v675, %v667
    %v836 = vpack.c.b16 %v676, %v668
    %v837 = vpack.c.b16 %v677, %v669
    %v838 = vpack.c.b16 %v686, %v678
    %v839 = vpack.c.b16 %v687, %v679
    %v840 = vpack.c.b16 %v688, %v680
    %v841 = vpack.c.b16 %v689, %v681
    %v842 = vpack.c.b16 %v690, %v682
    %v843 = vpack.c.b16 %v691, %v683
    %v844 = vpack.c.b16 %v692, %v684
    %v845 = vpack.c.b16 %v693, %v685
    %v846 = vpack.c.b16 %v702, %v694
    %v847 = vpack.c.b16 %v703, %v695
    %v848 = vpack.c.b16 %v704, %v696
    %v849 = vpack.c.b16 %v705, %v697
    %v850 = vpack.c.b16 %v706, %v698
    %v851 = vpack.c.b16 %v707, %v699
    %v852 = vpack.c.b16 %v708, %v700
    %v853 = vpack.c.b16 %v709, %v701
    %v854 = vpack.c.b16 %v718, %v710
    %v855 = vpack.c.b16 %v719, %v711
    %v856 = vpack.c.b16 %v720, %v712
    %v857 = vpack.c.b16 %v721, %v713
    %v858 = vpack.c.b16 %v722, %v714
    %v859 = vpack.c.b16 %v723, %v715
    %v860 = vpack.c.b16 %v724, %v716
    %v861 = vpack.c.b16 %v725, %v717
    %v862 = vpack.c.b16 %v734, %v726
    %v863 = vpack.c.b16 %v735, %v727
    %v864 = vpack.c.b16 %v736, %v728
    %v865 = vpack.c.b16 %v737, %v729
    %v866 = vpack.c.b16 %v738, %v730
    %v867 = vpack.c.b16 %v739, %v731
    %v868 = vpack.c.b16 %v740, %v732
    %v869 = vpack.c.b16 %v741, %v733
    %998 = vmatpush.bf16.msra.mxu0 %v798
    %999 = vmatpush.bf16.msra.mxu0 %v790
    %1000 = vmatpush.bf16.msra.mxu0 %v782
    %1001 = vmatpush.bf16.msra.mxu0 %v774
    %1002 = vmatpush.bf16.msra.mxu0 %v766
    %1003 = vmatpush.bf16.msra.mxu0 %v758
    %1004 = vmatpush.bf16.msra.mxu0 %v750
    %1005 = vmatpush.bf16.msra.mxu0 %v742
    %1006 = vmatmul.bf16.gmra.mxu0 %v354
    %v1007 = vpop.f32.mrf.mxu0
    %v1008 = vadd.f32 %v332, %v1007
    %v1009 = vpop.f32.mrf.mxu0
    %v1010 = vadd.f32 %v332, %v1009
    %1011 = vdwg.mxu0
    %1012 = vmatpush.bf16.msra.mxu0 %v862
    %1013 = vmatpush.bf16.msra.mxu0 %v854
    %1014 = vmatpush.bf16.msra.mxu0 %v846
    %1015 = vmatpush.bf16.msra.mxu0 %v838
    %1016 = vmatpush.bf16.msra.mxu0 %v830
    %1017 = vmatpush.bf16.msra.mxu0 %v822
    %1018 = vmatpush.bf16.msra.mxu0 %v814
    %1019 = vmatpush.bf16.msra.mxu0 %v806
    %1020 = vmatmul.bf16.gmra.mxu0 %v355
    %v1021 = vpop.f32.mrf.mxu0
    %v1022 = vadd.f32 %v1008, %v1021
    %v1023 = vpop.f32.mrf.mxu0
    %v1024 = vadd.f32 %v1010, %v1023
    %1025 = vdwg.mxu0
    %1026 = vmatpush.bf16.msra.mxu0 %v799
    %1027 = vmatpush.bf16.msra.mxu0 %v791
    %1028 = vmatpush.bf16.msra.mxu0 %v783
    %1029 = vmatpush.bf16.msra.mxu0 %v775
    %1030 = vmatpush.bf16.msra.mxu0 %v767
    %1031 = vmatpush.bf16.msra.mxu0 %v759
    %1032 = vmatpush.bf16.msra.mxu0 %v751
    %1033 = vmatpush.bf16.msra.mxu0 %v743
    %1034 = vmatmul.bf16.gmra.mxu0 %v354
    %v1035 = vpop.f32.mrf.mxu0
    %v1036 = vadd.f32 %v333, %v1035
    %v1037 = vpop.f32.mrf.mxu0
    %v1038 = vadd.f32 %v333, %v1037
    %1039 = vdwg.mxu0
    %1040 = vmatpush.bf16.msra.mxu0 %v863
    %1041 = vmatpush.bf16.msra.mxu0 %v855
    %1042 = vmatpush.bf16.msra.mxu0 %v847
    %1043 = vmatpush.bf16.msra.mxu0 %v839
    %1044 = vmatpush.bf16.msra.mxu0 %v831
    %1045 = vmatpush.bf16.msra.mxu0 %v823
    %1046 = vmatpush.bf16.msra.mxu0 %v815
    %1047 = vmatpush.bf16.msra.mxu0 %v807
    %1048 = vmatmul.bf16.gmra.mxu0 %v355
    %v1049 = vpop.f32.mrf.mxu0
    %v1050 = vadd.f32 %v1036, %v1049
    %v1051 = vpop.f32.mrf.mxu0
    %v1052 = vadd.f32 %v1038, %v1051
    %1053 = vdwg.mxu0
    %1054 = vmatpush.bf16.msra.mxu0 %v800
    %1055 = vmatpush.bf16.msra.mxu0 %v792
    %1056 = vmatpush.bf16.msra.mxu0 %v784
    %1057 = vmatpush.bf16.msra.mxu0 %v776
    %1058 = vmatpush.bf16.msra.mxu0 %v768
    %1059 = vmatpush.bf16.msra.mxu0 %v760
    %1060 = vmatpush.bf16.msra.mxu0 %v752
    %1061 = vmatpush.bf16.msra.mxu0 %v744
    %1062 = vmatmul.bf16.gmra.mxu0 %v354
    %v1063 = vpop.f32.mrf.mxu0
    %v1064 = vadd.f32 %v334, %v1063
    %v1065 = vpop.f32.mrf.mxu0
    %v1066 = vadd.f32 %v334, %v1065
    %1067 = vdwg.mxu0
    %1068 = vmatpush.bf16.msra.mxu0 %v864
    %1069 = vmatpush.bf16.msra.mxu0 %v856
    %1070 = vmatpush.bf16.msra.mxu0 %v848
    %1071 = vmatpush.bf16.msra.mxu0 %v840
    %1072 = vmatpush.bf16.msra.mxu0 %v832
    %1073 = vmatpush.bf16.msra.mxu0 %v824
    %1074 = vmatpush.bf16.msra.mxu0 %v816
    %1075 = vmatpush.bf16.msra.mxu0 %v808
    %1076 = vmatmul.bf16.gmra.mxu0 %v355
    %v1077 = vpop.f32.mrf.mxu0
    %v1078 = vadd.f32 %v1064, %v1077
    %v1079 = vpop.f32.mrf.mxu0
    %v1080 = vadd.f32 %v1066, %v1079
    %1081 = vdwg.mxu0
    %1082 = vmatpush.bf16.msra.mxu0 %v801
    %1083 = vmatpush.bf16.msra.mxu0 %v793
    %1084 = vmatpush.bf16.msra.mxu0 %v785
    %1085 = vmatpush.bf16.msra.mxu0 %v777
    %1086 = vmatpush.bf16.msra.mxu0 %v769
    %1087 = vmatpush.bf16.msra.mxu0 %v761
    %1088 = vmatpush.bf16.msra.mxu0 %v753
    %1089 = vmatpush.bf16.msra.mxu0 %v745
    %1090 = vmatmul.bf16.gmra.mxu0 %v354
    %v1091 = vpop.f32.mrf.mxu0
    %v1092 = vadd.f32 %v335, %v1091
    %v1093 = vpop.f32.mrf.mxu0
    %v1094 = vadd.f32 %v335, %v1093
    %1095 = vdwg.mxu0
    %1096 = vmatpush.bf16.msra.mxu0 %v865
    %1097 = vmatpush.bf16.msra.mxu0 %v857
    %1098 = vmatpush.bf16.msra.mxu0 %v849
    %1099 = vmatpush.bf16.msra.mxu0 %v841
    %1100 = vmatpush.bf16.msra.mxu0 %v833
    %1101 = vmatpush.bf16.msra.mxu0 %v825
    %1102 = vmatpush.bf16.msra.mxu0 %v817
    %1103 = vmatpush.bf16.msra.mxu0 %v809
    %1104 = vmatmul.bf16.gmra.mxu0 %v355
    %v1105 = vpop.f32.mrf.mxu0
    %v1106 = vadd.f32 %v1092, %v1105
    %v1107 = vpop.f32.mrf.mxu0
    %v1108 = vadd.f32 %v1094, %v1107
    %1109 = vdwg.mxu0
    %1110 = vmatpush.bf16.msra.mxu0 %v802
    %1111 = vmatpush.bf16.msra.mxu0 %v794
    %1112 = vmatpush.bf16.msra.mxu0 %v786
    %1113 = vmatpush.bf16.msra.mxu0 %v778
    %1114 = vmatpush.bf16.msra.mxu0 %v770
    %1115 = vmatpush.bf16.msra.mxu0 %v762
    %1116 = vmatpush.bf16.msra.mxu0 %v754
    %1117 = vmatpush.bf16.msra.mxu0 %v746
    %1118 = vmatmul.bf16.gmra.mxu0 %v354
    %v1119 = vpop.f32.mrf.mxu0
    %v1120 = vadd.f32 %v336, %v1119
    %v1121 = vpop.f32.mrf.mxu0
    %v1122 = vadd.f32 %v336, %v1121
    %1123 = vdwg.mxu0
    %1124 = vmatpush.bf16.msra.mxu0 %v866
    %1125 = vmatpush.bf16.msra.mxu0 %v858
    %1126 = vmatpush.bf16.msra.mxu0 %v850
    %1127 = vmatpush.bf16.msra.mxu0 %v842
    %1128 = vmatpush.bf16.msra.mxu0 %v834
    %1129 = vmatpush.bf16.msra.mxu0 %v826
    %1130 = vmatpush.bf16.msra.mxu0 %v818
    %1131 = vmatpush.bf16.msra.mxu0 %v810
    %1132 = vmatmul.bf16.gmra.mxu0 %v355
    %v1133 = vpop.f32.mrf.mxu0
    %v1134 = vadd.f32 %v1120, %v1133
    %v1135 = vpop.f32.mrf.mxu0
    %v1136 = vadd.f32 %v1122, %v1135
    %1137 = vdwg.mxu0
    %1138 = vmatpush.bf16.msra.mxu0 %v803
    %1139 = vmatpush.bf16.msra.mxu0 %v795
    %1140 = vmatpush.bf16.msra.mxu0 %v787
    %1141 = vmatpush.bf16.msra.mxu0 %v779
    %1142 = vmatpush.bf16.msra.mxu0 %v771
    %1143 = vmatpush.bf16.msra.mxu0 %v763
    %1144 = vmatpush.bf16.msra.mxu0 %v755
    %1145 = vmatpush.bf16.msra.mxu0 %v747
    %1146 = vmatmul.bf16.gmra.mxu0 %v354
    %v1147 = vpop.f32.mrf.mxu0
    %v1148 = vadd.f32 %v337, %v1147
    %v1149 = vpop.f32.mrf.mxu0
    %v1150 = vadd.f32 %v337, %v1149
    %1151 = vdwg.mxu0
    %1152 = vmatpush.bf16.msra.mxu0 %v867
    %1153 = vmatpush.bf16.msra.mxu0 %v859
    %1154 = vmatpush.bf16.msra.mxu0 %v851
    %1155 = vmatpush.bf16.msra.mxu0 %v843
    %1156 = vmatpush.bf16.msra.mxu0 %v835
    %1157 = vmatpush.bf16.msra.mxu0 %v827
    %1158 = vmatpush.bf16.msra.mxu0 %v819
    %1159 = vmatpush.bf16.msra.mxu0 %v811
    %1160 = vmatmul.bf16.gmra.mxu0 %v355
    %v1161 = vpop.f32.mrf.mxu0
    %v1162 = vadd.f32 %v1148, %v1161
    %v1163 = vpop.f32.mrf.mxu0
    %v1164 = vadd.f32 %v1150, %v1163
    %1165 = vdwg.mxu0
    %1166 = vmatpush.bf16.msra.mxu0 %v804
    %1167 = vmatpush.bf16.msra.mxu0 %v796
    %1168 = vmatpush.bf16.msra.mxu0 %v788
    %1169 = vmatpush.bf16.msra.mxu0 %v780
    %1170 = vmatpush.bf16.msra.mxu0 %v772
    %1171 = vmatpush.bf16.msra.mxu0 %v764
    %1172 = vmatpush.bf16.msra.mxu0 %v756
    %1173 = vmatpush.bf16.msra.mxu0 %v748
    %1174 = vmatmul.bf16.gmra.mxu0 %v354
    %v1175 = vpop.f32.mrf.mxu0
    %v1176 = vadd.f32 %v338, %v1175
    %v1177 = vpop.f32.mrf.mxu0
    %v1178 = vadd.f32 %v338, %v1177
    %1179 = vdwg.mxu0
    %1180 = vmatpush.bf16.msra.mxu0 %v868
    %1181 = vmatpush.bf16.msra.mxu0 %v860
    %1182 = vmatpush.bf16.msra.mxu0 %v852
    %1183 = vmatpush.bf16.msra.mxu0 %v844
    %1184 = vmatpush.bf16.msra.mxu0 %v836
    %1185 = vmatpush.bf16.msra.mxu0 %v828
    %1186 = vmatpush.bf16.msra.mxu0 %v820
    %1187 = vmatpush.bf16.msra.mxu0 %v812
    %1188 = vmatmul.bf16.gmra.mxu0 %v355
    %v1189 = vpop.f32.mrf.mxu0
    %v1190 = vadd.f32 %v1176, %v1189
    %v1191 = vpop.f32.mrf.mxu0
    %v1192 = vadd.f32 %v1178, %v1191
    %1193 = vdwg.mxu0
    %1194 = vmatpush.bf16.msra.mxu0 %v805
    %1195 = vmatpush.bf16.msra.mxu0 %v797
    %1196 = vmatpush.bf16.msra.mxu0 %v789
    %1197 = vmatpush.bf16.msra.mxu0 %v781
    %1198 = vmatpush.bf16.msra.mxu0 %v773
    %1199 = vmatpush.bf16.msra.mxu0 %v765
    %1200 = vmatpush.bf16.msra.mxu0 %v757
    %1201 = vmatpush.bf16.msra.mxu0 %v749
    %1202 = vmatmul.bf16.gmra.mxu0 %v354
    %v1203 = vpop.f32.mrf.mxu0
    %v1204 = vadd.f32 %v339, %v1203
    %v1205 = vpop.f32.mrf.mxu0
    %v1206 = vadd.f32 %v339, %v1205
    %1207 = vdwg.mxu0
    %1208 = vmatpush.bf16.msra.mxu0 %v869
    %1209 = vmatpush.bf16.msra.mxu0 %v861
    %1210 = vmatpush.bf16.msra.mxu0 %v853
    %1211 = vmatpush.bf16.msra.mxu0 %v845
    %1212 = vmatpush.bf16.msra.mxu0 %v837
    %1213 = vmatpush.bf16.msra.mxu0 %v829
    %1214 = vmatpush.bf16.msra.mxu0 %v821
    %1215 = vmatpush.bf16.msra.mxu0 %v813
    %1216 = vmatmul.bf16.gmra.mxu0 %v355
    %v1217 = vpop.f32.mrf.mxu0
    %v1218 = vadd.f32 %v1204, %v1217
    %v1219 = vpop.f32.mrf.mxu0
    %v1220 = vadd.f32 %v1206, %v1219
    %1221 = vdwg.mxu0
    %v1222 = vmax.f32 %v1022, 0.0
    %v1223 = vmax.f32 %v1050, 0.0
    %v1224 = vmax.f32 %v1078, 0.0
    %v1225 = vmax.f32 %v1106, 0.0
    %v1226 = vmax.f32 %v1134, 0.0
    %v1227 = vmax.f32 %v1162, 0.0
    %v1228 = vmax.f32 %v1190, 0.0
    %v1229 = vmax.f32 %v1218, 0.0
    %v1230 = vmax.f32 %v1024, 0.0
    %v1231 = vmax.f32 %v1052, 0.0
    %v1232 = vmax.f32 %v1080, 0.0
    %v1233 = vmax.f32 %v1108, 0.0
    %v1234 = vmax.f32 %v1136, 0.0
    %v1235 = vmax.f32 %v1164, 0.0
    %v1236 = vmax.f32 %v1192, 0.0
    %v1237 = vmax.f32 %v1220, 0.0
    %v1238 = vpack.c.bf16 %v1230, %v1222
    %v1239 = vpack.c.bf16 %v1231, %v1223
    %v1240 = vpack.c.bf16 %v1232, %v1224
    %v1241 = vpack.c.bf16 %v1233, %v1225
    %v1242 = vpack.c.bf16 %v1234, %v1226
    %v1243 = vpack.c.bf16 %v1235, %v1227
    %v1244 = vpack.c.bf16 %v1236, %v1228
    %v1245 = vpack.c.bf16 %v1237, %v1229
    %v1246 = vld [vmem:[#allocation8] sm:$0xff]
    %v1247 = vld [vmem:[#allocation8 + $0x8] sm:$0xff]
    %v1248 = vld [vmem:[#allocation8 + $0x10] sm:$0xff]
    %v1249 = vld [vmem:[#allocation8 + $0x18] sm:$0xff]
    %v1250 = vld [vmem:[#allocation8 + $0x20] sm:$0xff]
    %v1251 = vld [vmem:[#allocation8 + $0x28] sm:$0xff]
    %v1252 = vld [vmem:[#allocation8 + $0x30] sm:$0xff]
    %v1253 = vld [vmem:[#allocation8 + $0x38] sm:$0xff]
    %v1254 = vld [vmem:[#allocation8 + $0x40] sm:$0xff]
    %v1255 = vld [vmem:[#allocation8 + $0x48] sm:$0xff]
    %v1256 = vld [vmem:[#allocation8 + $0x50] sm:$0xff]
    %v1257 = vld [vmem:[#allocation8 + $0x58] sm:$0xff]
    %v1258 = vld [vmem:[#allocation8 + $0x60] sm:$0xff]
    %v1259 = vld [vmem:[#allocation8 + $0x68] sm:$0xff]
    %v1260 = vld [vmem:[#allocation8 + $0x70] sm:$0xff]
    %v1261 = vld [vmem:[#allocation8 + $0x78] sm:$0xff]
    %v1262 = vld [vmem:[#allocation8 + $0x80] sm:$0xff]
    %v1263 = vld [vmem:[#allocation8 + $0x88] sm:$0xff]
    %v1264 = vld [vmem:[#allocation8 + $0x90] sm:$0xff]
    %v1265 = vld [vmem:[#allocation8 + $0x98] sm:$0xff]
    %v1266 = vld [vmem:[#allocation8 + $0xa0] sm:$0xff]
    %v1267 = vld [vmem:[#allocation8 + $0xa8] sm:$0xff]
    %v1268 = vld [vmem:[#allocation8 + $0xb0] sm:$0xff]
    %v1269 = vld [vmem:[#allocation8 + $0xb8] sm:$0xff]
    %v1270 = vld [vmem:[#allocation8 + $0xc0] sm:$0xff]
    %v1271 = vld [vmem:[#allocation8 + $0xc8] sm:$0xff]
    %v1272 = vld [vmem:[#allocation8 + $0xd0] sm:$0xff]
    %v1273 = vld [vmem:[#allocation8 + $0xd8] sm:$0xff]
    %v1274 = vld [vmem:[#allocation8 + $0xe0] sm:$0xff]
    %v1275 = vld [vmem:[#allocation8 + $0xe8] sm:$0xff]
    %v1276 = vld [vmem:[#allocation8 + $0xf0] sm:$0xff]
    %v1277 = vld [vmem:[#allocation8 + $0xf8] sm:$0xff]
    %v1278 = vld [vmem:[#allocation8 + $0x100] sm:$0xff]
    %v1279 = vld [vmem:[#allocation8 + $0x108] sm:$0xff]
    %v1280 = vld [vmem:[#allocation8 + $0x110] sm:$0xff]
    %v1281 = vld [vmem:[#allocation8 + $0x118] sm:$0xff]
    %v1282 = vld [vmem:[#allocation8 + $0x120] sm:$0xff]
    %v1283 = vld [vmem:[#allocation8 + $0x128] sm:$0xff]
    %v1284 = vld [vmem:[#allocation8 + $0x130] sm:$0xff]
    %v1285 = vld [vmem:[#allocation8 + $0x138] sm:$0xff]
    %v1286 = vld [vmem:[#allocation8 + $0x140] sm:$0xff]
    %v1287 = vld [vmem:[#allocation8 + $0x148] sm:$0xff]
    %v1288 = vld [vmem:[#allocation8 + $0x150] sm:$0xff]
    %v1289 = vld [vmem:[#allocation8 + $0x158] sm:$0xff]
    %v1290 = vld [vmem:[#allocation8 + $0x160] sm:$0xff]
    %v1291 = vld [vmem:[#allocation8 + $0x168] sm:$0xff]
    %v1292 = vld [vmem:[#allocation8 + $0x170] sm:$0xff]
    %v1293 = vld [vmem:[#allocation8 + $0x178] sm:$0xff]
    %v1294 = vld [vmem:[#allocation8 + $0x180] sm:$0xff]
    %v1295 = vld [vmem:[#allocation8 + $0x188] sm:$0xff]
    %v1296 = vld [vmem:[#allocation8 + $0x190] sm:$0xff]
    %v1297 = vld [vmem:[#allocation8 + $0x198] sm:$0xff]
    %v1298 = vld [vmem:[#allocation8 + $0x1a0] sm:$0xff]
    %v1299 = vld [vmem:[#allocation8 + $0x1a8] sm:$0xff]
    %v1300 = vld [vmem:[#allocation8 + $0x1b0] sm:$0xff]
    %v1301 = vld [vmem:[#allocation8 + $0x1b8] sm:$0xff]
    %v1302 = vld [vmem:[#allocation8 + $0x1c0] sm:$0xff]
    %v1303 = vld [vmem:[#allocation8 + $0x1c8] sm:$0xff]
    %v1304 = vld [vmem:[#allocation8 + $0x1d0] sm:$0xff]
    %v1305 = vld [vmem:[#allocation8 + $0x1d8] sm:$0xff]
    %v1306 = vld [vmem:[#allocation8 + $0x1e0] sm:$0xff]
    %v1307 = vld [vmem:[#allocation8 + $0x1e8] sm:$0xff]
    %v1308 = vld [vmem:[#allocation8 + $0x1f0] sm:$0xff]
    %v1309 = vld [vmem:[#allocation8 + $0x1f8] sm:$0xff]
    %v1310 = vld [vmem:[#allocation8 + $0x200] sm:$0xff]
    %v1311 = vld [vmem:[#allocation8 + $0x208] sm:$0xff]
    %v1312 = vld [vmem:[#allocation8 + $0x210] sm:$0xff]
    %v1313 = vld [vmem:[#allocation8 + $0x218] sm:$0xff]
    %v1314 = vld [vmem:[#allocation8 + $0x220] sm:$0xff]
    %v1315 = vld [vmem:[#allocation8 + $0x228] sm:$0xff]
    %v1316 = vld [vmem:[#allocation8 + $0x230] sm:$0xff]
    %v1317 = vld [vmem:[#allocation8 + $0x238] sm:$0xff]
    %v1318 = vld [vmem:[#allocation8 + $0x240] sm:$0xff]
    %v1319 = vld [vmem:[#allocation8 + $0x248] sm:$0xff]
    %v1320 = vld [vmem:[#allocation8 + $0x250] sm:$0xff]
    %v1321 = vld [vmem:[#allocation8 + $0x258] sm:$0xff]
    %v1322 = vld [vmem:[#allocation8 + $0x260] sm:$0xff]
    %v1323 = vld [vmem:[#allocation8 + $0x268] sm:$0xff]
    %v1324 = vld [vmem:[#allocation8 + $0x270] sm:$0xff]
    %v1325 = vld [vmem:[#allocation8 + $0x278] sm:$0xff]
    %v1326 = vld [vmem:[#allocation8 + $0x280] sm:$0xff]
    %v1327 = vld [vmem:[#allocation8 + $0x288] sm:$0xff]
    %v1328 = vld [vmem:[#allocation8 + $0x290] sm:$0xff]
    %v1329 = vld [vmem:[#allocation8 + $0x298] sm:$0xff]
    %v1330 = vld [vmem:[#allocation8 + $0x2a0] sm:$0xff]
    %v1331 = vld [vmem:[#allocation8 + $0x2a8] sm:$0xff]
    %v1332 = vld [vmem:[#allocation8 + $0x2b0] sm:$0xff]
    %v1333 = vld [vmem:[#allocation8 + $0x2b8] sm:$0xff]
    %v1334 = vld [vmem:[#allocation8 + $0x2c0] sm:$0xff]
    %v1335 = vld [vmem:[#allocation8 + $0x2c8] sm:$0xff]
    %v1336 = vld [vmem:[#allocation8 + $0x2d0] sm:$0xff]
    %v1337 = vld [vmem:[#allocation8 + $0x2d8] sm:$0xff]
    %v1338 = vld [vmem:[#allocation8 + $0x2e0] sm:$0xff]
    %v1339 = vld [vmem:[#allocation8 + $0x2e8] sm:$0xff]
    %v1340 = vld [vmem:[#allocation8 + $0x2f0] sm:$0xff]
    %v1341 = vld [vmem:[#allocation8 + $0x2f8] sm:$0xff]
    %v1342 = vld [vmem:[#allocation8 + $0x300] sm:$0xff]
    %v1343 = vld [vmem:[#allocation8 + $0x308] sm:$0xff]
    %v1344 = vld [vmem:[#allocation8 + $0x310] sm:$0xff]
    %v1345 = vld [vmem:[#allocation8 + $0x318] sm:$0xff]
    %v1346 = vld [vmem:[#allocation8 + $0x320] sm:$0xff]
    %v1347 = vld [vmem:[#allocation8 + $0x328] sm:$0xff]
    %v1348 = vld [vmem:[#allocation8 + $0x330] sm:$0xff]
    %v1349 = vld [vmem:[#allocation8 + $0x338] sm:$0xff]
    %v1350 = vld [vmem:[#allocation8 + $0x340] sm:$0xff]
    %v1351 = vld [vmem:[#allocation8 + $0x348] sm:$0xff]
    %v1352 = vld [vmem:[#allocation8 + $0x350] sm:$0xff]
    %v1353 = vld [vmem:[#allocation8 + $0x358] sm:$0xff]
    %v1354 = vld [vmem:[#allocation8 + $0x360] sm:$0xff]
    %v1355 = vld [vmem:[#allocation8 + $0x368] sm:$0xff]
    %v1356 = vld [vmem:[#allocation8 + $0x370] sm:$0xff]
    %v1357 = vld [vmem:[#allocation8 + $0x378] sm:$0xff]
    %v1358 = vld [vmem:[#allocation8 + $0x380] sm:$0xff]
    %v1359 = vld [vmem:[#allocation8 + $0x388] sm:$0xff]
    %v1360 = vld [vmem:[#allocation8 + $0x390] sm:$0xff]
    %v1361 = vld [vmem:[#allocation8 + $0x398] sm:$0xff]
    %v1362 = vld [vmem:[#allocation8 + $0x3a0] sm:$0xff]
    %v1363 = vld [vmem:[#allocation8 + $0x3a8] sm:$0xff]
    %v1364 = vld [vmem:[#allocation8 + $0x3b0] sm:$0xff]
    %v1365 = vld [vmem:[#allocation8 + $0x3b8] sm:$0xff]
    %v1366 = vld [vmem:[#allocation8 + $0x3c0] sm:$0xff]
    %v1367 = vld [vmem:[#allocation8 + $0x3c8] sm:$0xff]
    %v1368 = vld [vmem:[#allocation8 + $0x3d0] sm:$0xff]
    %v1369 = vld [vmem:[#allocation8 + $0x3d8] sm:$0xff]
    %v1370 = vld [vmem:[#allocation8 + $0x3e0] sm:$0xff]
    %v1371 = vld [vmem:[#allocation8 + $0x3e8] sm:$0xff]
    %v1372 = vld [vmem:[#allocation8 + $0x3f0] sm:$0xff]
    %v1373 = vld [vmem:[#allocation8 + $0x3f8] sm:$0xff]
    %v1374 = vld [vmem:[#allocation8 + $0x400] sm:$0xff]
    %v1375 = vld [vmem:[#allocation8 + $0x408] sm:$0xff]
    %v1376 = vld [vmem:[#allocation8 + $0x410] sm:$0xff]
    %v1377 = vld [vmem:[#allocation8 + $0x418] sm:$0xff]
    %v1378 = vld [vmem:[#allocation8 + $0x420] sm:$0xff]
    %v1379 = vld [vmem:[#allocation8 + $0x428] sm:$0xff]
    %v1380 = vld [vmem:[#allocation8 + $0x430] sm:$0xff]
    %v1381 = vld [vmem:[#allocation8 + $0x438] sm:$0xff]
    %v1382 = vld [vmem:[#allocation8 + $0x440] sm:$0xff]
    %v1383 = vld [vmem:[#allocation8 + $0x448] sm:$0xff]
    %v1384 = vld [vmem:[#allocation8 + $0x450] sm:$0xff]
    %v1385 = vld [vmem:[#allocation8 + $0x458] sm:$0xff]
    %v1386 = vld [vmem:[#allocation8 + $0x460] sm:$0xff]
    %v1387 = vld [vmem:[#allocation8 + $0x468] sm:$0xff]
    %v1388 = vld [vmem:[#allocation8 + $0x470] sm:$0xff]
    %v1389 = vld [vmem:[#allocation8 + $0x478] sm:$0xff]
    %v1390 = vld [vmem:[#allocation8 + $0x480] sm:$0xff]
    %v1391 = vld [vmem:[#allocation8 + $0x488] sm:$0xff]
    %v1392 = vld [vmem:[#allocation8 + $0x490] sm:$0xff]
    %v1393 = vld [vmem:[#allocation8 + $0x498] sm:$0xff]
    %v1394 = vld [vmem:[#allocation8 + $0x4a0] sm:$0xff]
    %v1395 = vld [vmem:[#allocation8 + $0x4a8] sm:$0xff]
    %v1396 = vld [vmem:[#allocation8 + $0x4b0] sm:$0xff]
    %v1397 = vld [vmem:[#allocation8 + $0x4b8] sm:$0xff]
    %v1398 = vld [vmem:[#allocation8 + $0x4c0] sm:$0xff]
    %v1399 = vld [vmem:[#allocation8 + $0x4c8] sm:$0xff]
    %v1400 = vld [vmem:[#allocation8 + $0x4d0] sm:$0xff]
    %v1401 = vld [vmem:[#allocation8 + $0x4d8] sm:$0xff]
    %v1402 = vld [vmem:[#allocation8 + $0x4e0] sm:$0xff]
    %v1403 = vld [vmem:[#allocation8 + $0x4e8] sm:$0xff]
    %v1404 = vld [vmem:[#allocation8 + $0x4f0] sm:$0xff]
    %v1405 = vld [vmem:[#allocation8 + $0x4f8] sm:$0xff]
    %v1406 = vld [vmem:[#allocation8 + $0x500] sm:$0xff]
    %v1407 = vld [vmem:[#allocation8 + $0x508] sm:$0xff]
    %v1408 = vld [vmem:[#allocation8 + $0x510] sm:$0xff]
    %v1409 = vld [vmem:[#allocation8 + $0x518] sm:$0xff]
    %v1410 = vld [vmem:[#allocation8 + $0x520] sm:$0xff]
    %v1411 = vld [vmem:[#allocation8 + $0x528] sm:$0xff]
    %v1412 = vld [vmem:[#allocation8 + $0x530] sm:$0xff]
    %v1413 = vld [vmem:[#allocation8 + $0x538] sm:$0xff]
    %v1414 = vld [vmem:[#allocation8 + $0x540] sm:$0xff]
    %v1415 = vld [vmem:[#allocation8 + $0x548] sm:$0xff]
    %v1416 = vld [vmem:[#allocation8 + $0x550] sm:$0xff]
    %v1417 = vld [vmem:[#allocation8 + $0x558] sm:$0xff]
    %v1418 = vld [vmem:[#allocation8 + $0x560] sm:$0xff]
    %v1419 = vld [vmem:[#allocation8 + $0x568] sm:$0xff]
    %v1420 = vld [vmem:[#allocation8 + $0x570] sm:$0xff]
    %v1421 = vld [vmem:[#allocation8 + $0x578] sm:$0xff]
    %v1422 = vld [vmem:[#allocation8 + $0x580] sm:$0xff]
    %v1423 = vld [vmem:[#allocation8 + $0x588] sm:$0xff]
    %v1424 = vld [vmem:[#allocation8 + $0x590] sm:$0xff]
    %v1425 = vld [vmem:[#allocation8 + $0x598] sm:$0xff]
    %v1426 = vld [vmem:[#allocation8 + $0x5a0] sm:$0xff]
    %v1427 = vld [vmem:[#allocation8 + $0x5a8] sm:$0xff]
    %v1428 = vld [vmem:[#allocation8 + $0x5b0] sm:$0xff]
    %v1429 = vld [vmem:[#allocation8 + $0x5b8] sm:$0xff]
    %v1430 = vld [vmem:[#allocation8 + $0x5c0] sm:$0xff]
    %v1431 = vld [vmem:[#allocation8 + $0x5c8] sm:$0xff]
    %v1432 = vld [vmem:[#allocation8 + $0x5d0] sm:$0xff]
    %v1433 = vld [vmem:[#allocation8 + $0x5d8] sm:$0xff]
    %v1434 = vld [vmem:[#allocation8 + $0x5e0] sm:$0xff]
    %v1435 = vld [vmem:[#allocation8 + $0x5e8] sm:$0xff]
    %v1436 = vld [vmem:[#allocation8 + $0x5f0] sm:$0xff]
    %v1437 = vld [vmem:[#allocation8 + $0x5f8] sm:$0xff]
    %v1438 = vld [vmem:[#allocation8 + $0x600] sm:$0xff]
    %v1439 = vld [vmem:[#allocation8 + $0x608] sm:$0xff]
    %v1440 = vld [vmem:[#allocation8 + $0x610] sm:$0xff]
    %v1441 = vld [vmem:[#allocation8 + $0x618] sm:$0xff]
    %v1442 = vld [vmem:[#allocation8 + $0x620] sm:$0xff]
    %v1443 = vld [vmem:[#allocation8 + $0x628] sm:$0xff]
    %v1444 = vld [vmem:[#allocation8 + $0x630] sm:$0xff]
    %v1445 = vld [vmem:[#allocation8 + $0x638] sm:$0xff]
    %v1446 = vld [vmem:[#allocation8 + $0x640] sm:$0xff]
    %v1447 = vld [vmem:[#allocation8 + $0x648] sm:$0xff]
    %v1448 = vld [vmem:[#allocation8 + $0x650] sm:$0xff]
    %v1449 = vld [vmem:[#allocation8 + $0x658] sm:$0xff]
    %v1450 = vld [vmem:[#allocation8 + $0x660] sm:$0xff]
    %v1451 = vld [vmem:[#allocation8 + $0x668] sm:$0xff]
    %v1452 = vld [vmem:[#allocation8 + $0x670] sm:$0xff]
    %v1453 = vld [vmem:[#allocation8 + $0x678] sm:$0xff]
    %v1454 = vld [vmem:[#allocation8 + $0x680] sm:$0xff]
    %v1455 = vld [vmem:[#allocation8 + $0x688] sm:$0xff]
    %v1456 = vld [vmem:[#allocation8 + $0x690] sm:$0xff]
    %v1457 = vld [vmem:[#allocation8 + $0x698] sm:$0xff]
    %v1458 = vld [vmem:[#allocation8 + $0x6a0] sm:$0xff]
    %v1459 = vld [vmem:[#allocation8 + $0x6a8] sm:$0xff]
    %v1460 = vld [vmem:[#allocation8 + $0x6b0] sm:$0xff]
    %v1461 = vld [vmem:[#allocation8 + $0x6b8] sm:$0xff]
    %v1462 = vld [vmem:[#allocation8 + $0x6c0] sm:$0xff]
    %v1463 = vld [vmem:[#allocation8 + $0x6c8] sm:$0xff]
    %v1464 = vld [vmem:[#allocation8 + $0x6d0] sm:$0xff]
    %v1465 = vld [vmem:[#allocation8 + $0x6d8] sm:$0xff]
    %v1466 = vld [vmem:[#allocation8 + $0x6e0] sm:$0xff]
    %v1467 = vld [vmem:[#allocation8 + $0x6e8] sm:$0xff]
    %v1468 = vld [vmem:[#allocation8 + $0x6f0] sm:$0xff]
    %v1469 = vld [vmem:[#allocation8 + $0x6f8] sm:$0xff]
    %v1470 = vld [vmem:[#allocation8 + $0x700] sm:$0xff]
    %v1471 = vld [vmem:[#allocation8 + $0x708] sm:$0xff]
    %v1472 = vld [vmem:[#allocation8 + $0x710] sm:$0xff]
    %v1473 = vld [vmem:[#allocation8 + $0x718] sm:$0xff]
    %v1474 = vld [vmem:[#allocation8 + $0x720] sm:$0xff]
    %v1475 = vld [vmem:[#allocation8 + $0x728] sm:$0xff]
    %v1476 = vld [vmem:[#allocation8 + $0x730] sm:$0xff]
    %v1477 = vld [vmem:[#allocation8 + $0x738] sm:$0xff]
    %v1478 = vld [vmem:[#allocation8 + $0x740] sm:$0xff]
    %v1479 = vld [vmem:[#allocation8 + $0x748] sm:$0xff]
    %v1480 = vld [vmem:[#allocation8 + $0x750] sm:$0xff]
    %v1481 = vld [vmem:[#allocation8 + $0x758] sm:$0xff]
    %v1482 = vld [vmem:[#allocation8 + $0x760] sm:$0xff]
    %v1483 = vld [vmem:[#allocation8 + $0x768] sm:$0xff]
    %v1484 = vld [vmem:[#allocation8 + $0x770] sm:$0xff]
    %v1485 = vld [vmem:[#allocation8 + $0x778] sm:$0xff]
    %v1486 = vld [vmem:[#allocation8 + $0x780] sm:$0xff]
    %v1487 = vld [vmem:[#allocation8 + $0x788] sm:$0xff]
    %v1488 = vld [vmem:[#allocation8 + $0x790] sm:$0xff]
    %v1489 = vld [vmem:[#allocation8 + $0x798] sm:$0xff]
    %v1490 = vld [vmem:[#allocation8 + $0x7a0] sm:$0xff]
    %v1491 = vld [vmem:[#allocation8 + $0x7a8] sm:$0xff]
    %v1492 = vld [vmem:[#allocation8 + $0x7b0] sm:$0xff]
    %v1493 = vld [vmem:[#allocation8 + $0x7b8] sm:$0xff]
    %v1494 = vld [vmem:[#allocation8 + $0x7c0] sm:$0xff]
    %v1495 = vld [vmem:[#allocation8 + $0x7c8] sm:$0xff]
    %v1496 = vld [vmem:[#allocation8 + $0x7d0] sm:$0xff]
    %v1497 = vld [vmem:[#allocation8 + $0x7d8] sm:$0xff]
    %v1498 = vld [vmem:[#allocation8 + $0x7e0] sm:$0xff]
    %v1499 = vld [vmem:[#allocation8 + $0x7e8] sm:$0xff]
    %v1500 = vld [vmem:[#allocation8 + $0x7f0] sm:$0xff]
    %v1501 = vld [vmem:[#allocation8 + $0x7f8] sm:$0xff]
    %v1502 = vld [vmem:[#allocation8 + $0x800] sm:$0xff]
    %v1503 = vld [vmem:[#allocation8 + $0x808] sm:$0xff]
    %v1504 = vld [vmem:[#allocation8 + $0x810] sm:$0xff]
    %v1505 = vld [vmem:[#allocation8 + $0x818] sm:$0xff]
    %v1506 = vld [vmem:[#allocation8 + $0x820] sm:$0xff]
    %v1507 = vld [vmem:[#allocation8 + $0x828] sm:$0xff]
    %v1508 = vld [vmem:[#allocation8 + $0x830] sm:$0xff]
    %v1509 = vld [vmem:[#allocation8 + $0x838] sm:$0xff]
    %v1510 = vld [vmem:[#allocation8 + $0x840] sm:$0xff]
    %v1511 = vld [vmem:[#allocation8 + $0x848] sm:$0xff]
    %v1512 = vld [vmem:[#allocation8 + $0x850] sm:$0xff]
    %v1513 = vld [vmem:[#allocation8 + $0x858] sm:$0xff]
    %v1514 = vld [vmem:[#allocation8 + $0x860] sm:$0xff]
    %v1515 = vld [vmem:[#allocation8 + $0x868] sm:$0xff]
    %v1516 = vld [vmem:[#allocation8 + $0x870] sm:$0xff]
    %v1517 = vld [vmem:[#allocation8 + $0x878] sm:$0xff]
    %v1518 = vld [vmem:[#allocation8 + $0x880] sm:$0xff]
    %v1519 = vld [vmem:[#allocation8 + $0x888] sm:$0xff]
    %v1520 = vld [vmem:[#allocation8 + $0x890] sm:$0xff]
    %v1521 = vld [vmem:[#allocation8 + $0x898] sm:$0xff]
    %v1522 = vld [vmem:[#allocation8 + $0x8a0] sm:$0xff]
    %v1523 = vld [vmem:[#allocation8 + $0x8a8] sm:$0xff]
    %v1524 = vld [vmem:[#allocation8 + $0x8b0] sm:$0xff]
    %v1525 = vld [vmem:[#allocation8 + $0x8b8] sm:$0xff]
    %v1526 = vld [vmem:[#allocation8 + $0x8c0] sm:$0xff]
    %v1527 = vld [vmem:[#allocation8 + $0x8c8] sm:$0xff]
    %v1528 = vld [vmem:[#allocation8 + $0x8d0] sm:$0xff]
    %v1529 = vld [vmem:[#allocation8 + $0x8d8] sm:$0xff]
    %v1530 = vld [vmem:[#allocation8 + $0x8e0] sm:$0xff]
    %v1531 = vld [vmem:[#allocation8 + $0x8e8] sm:$0xff]
    %v1532 = vld [vmem:[#allocation8 + $0x8f0] sm:$0xff]
    %v1533 = vld [vmem:[#allocation8 + $0x8f8] sm:$0xff]
    %v1534 = vld [vmem:[#allocation8 + $0x900] sm:$0xff]
    %v1535 = vld [vmem:[#allocation8 + $0x908] sm:$0xff]
    %v1536 = vld [vmem:[#allocation8 + $0x910] sm:$0xff]
    %v1537 = vld [vmem:[#allocation8 + $0x918] sm:$0xff]
    %v1538 = vld [vmem:[#allocation8 + $0x920] sm:$0xff]
    %v1539 = vld [vmem:[#allocation8 + $0x928] sm:$0xff]
    %v1540 = vld [vmem:[#allocation8 + $0x930] sm:$0xff]
    %v1541 = vld [vmem:[#allocation8 + $0x938] sm:$0xff]
    %v1542 = vld [vmem:[#allocation8 + $0x940] sm:$0xff]
    %v1543 = vld [vmem:[#allocation8 + $0x948] sm:$0xff]
    %v1544 = vld [vmem:[#allocation8 + $0x950] sm:$0xff]
    %v1545 = vld [vmem:[#allocation8 + $0x958] sm:$0xff]
    %v1546 = vld [vmem:[#allocation8 + $0x960] sm:$0xff]
    %v1547 = vld [vmem:[#allocation8 + $0x968] sm:$0xff]
    %v1548 = vld [vmem:[#allocation8 + $0x970] sm:$0xff]
    %v1549 = vld [vmem:[#allocation8 + $0x978] sm:$0xff]
    %v1550 = vld [vmem:[#allocation8 + $0x980] sm:$0xff]
    %v1551 = vld [vmem:[#allocation8 + $0x988] sm:$0xff]
    %v1552 = vld [vmem:[#allocation8 + $0x990] sm:$0xff]
    %v1553 = vld [vmem:[#allocation8 + $0x998] sm:$0xff]
    %v1554 = vld [vmem:[#allocation8 + $0x9a0] sm:$0xff]
    %v1555 = vld [vmem:[#allocation8 + $0x9a8] sm:$0xff]
    %v1556 = vld [vmem:[#allocation8 + $0x9b0] sm:$0xff]
    %v1557 = vld [vmem:[#allocation8 + $0x9b8] sm:$0xff]
    %v1558 = vld [vmem:[#allocation8 + $0x9c0] sm:$0xff]
    %v1559 = vld [vmem:[#allocation8 + $0x9c8] sm:$0xff]
    %v1560 = vld [vmem:[#allocation8 + $0x9d0] sm:$0xff]
    %v1561 = vld [vmem:[#allocation8 + $0x9d8] sm:$0xff]
    %v1562 = vld [vmem:[#allocation8 + $0x9e0] sm:$0xff]
    %v1563 = vld [vmem:[#allocation8 + $0x9e8] sm:$0xff]
    %v1564 = vld [vmem:[#allocation8 + $0x9f0] sm:$0xff]
    %v1565 = vld [vmem:[#allocation8 + $0x9f8] sm:$0xff]
    %v1566 = vld [vmem:[#allocation8 + $0xa00] sm:$0xff]
    %v1567 = vld [vmem:[#allocation8 + $0xa08] sm:$0xff]
    %v1568 = vld [vmem:[#allocation8 + $0xa10] sm:$0xff]
    %v1569 = vld [vmem:[#allocation8 + $0xa18] sm:$0xff]
    %v1570 = vld [vmem:[#allocation8 + $0xa20] sm:$0xff]
    %v1571 = vld [vmem:[#allocation8 + $0xa28] sm:$0xff]
    %v1572 = vld [vmem:[#allocation8 + $0xa30] sm:$0xff]
    %v1573 = vld [vmem:[#allocation8 + $0xa38] sm:$0xff]
    %v1574 = vld [vmem:[#allocation8 + $0xa40] sm:$0xff]
    %v1575 = vld [vmem:[#allocation8 + $0xa48] sm:$0xff]
    %v1576 = vld [vmem:[#allocation8 + $0xa50] sm:$0xff]
    %v1577 = vld [vmem:[#allocation8 + $0xa58] sm:$0xff]
    %v1578 = vld [vmem:[#allocation8 + $0xa60] sm:$0xff]
    %v1579 = vld [vmem:[#allocation8 + $0xa68] sm:$0xff]
    %v1580 = vld [vmem:[#allocation8 + $0xa70] sm:$0xff]
    %v1581 = vld [vmem:[#allocation8 + $0xa78] sm:$0xff]
    %v1582 = vld [vmem:[#allocation8 + $0xa80] sm:$0xff]
    %v1583 = vld [vmem:[#allocation8 + $0xa88] sm:$0xff]
    %v1584 = vld [vmem:[#allocation8 + $0xa90] sm:$0xff]
    %v1585 = vld [vmem:[#allocation8 + $0xa98] sm:$0xff]
    %v1586 = vld [vmem:[#allocation8 + $0xaa0] sm:$0xff]
    %v1587 = vld [vmem:[#allocation8 + $0xaa8] sm:$0xff]
    %v1588 = vld [vmem:[#allocation8 + $0xab0] sm:$0xff]
    %v1589 = vld [vmem:[#allocation8 + $0xab8] sm:$0xff]
    %v1590 = vld [vmem:[#allocation8 + $0xac0] sm:$0xff]
    %v1591 = vld [vmem:[#allocation8 + $0xac8] sm:$0xff]
    %v1592 = vld [vmem:[#allocation8 + $0xad0] sm:$0xff]
    %v1593 = vld [vmem:[#allocation8 + $0xad8] sm:$0xff]
    %v1594 = vld [vmem:[#allocation8 + $0xae0] sm:$0xff]
    %v1595 = vld [vmem:[#allocation8 + $0xae8] sm:$0xff]
    %v1596 = vld [vmem:[#allocation8 + $0xaf0] sm:$0xff]
    %v1597 = vld [vmem:[#allocation8 + $0xaf8] sm:$0xff]
    %v1598 = vld [vmem:[#allocation8 + $0xb00] sm:$0xff]
    %v1599 = vld [vmem:[#allocation8 + $0xb08] sm:$0xff]
    %v1600 = vld [vmem:[#allocation8 + $0xb10] sm:$0xff]
    %v1601 = vld [vmem:[#allocation8 + $0xb18] sm:$0xff]
    %v1602 = vld [vmem:[#allocation8 + $0xb20] sm:$0xff]
    %v1603 = vld [vmem:[#allocation8 + $0xb28] sm:$0xff]
    %v1604 = vld [vmem:[#allocation8 + $0xb30] sm:$0xff]
    %v1605 = vld [vmem:[#allocation8 + $0xb38] sm:$0xff]
    %v1606 = vld [vmem:[#allocation8 + $0xb40] sm:$0xff]
    %v1607 = vld [vmem:[#allocation8 + $0xb48] sm:$0xff]
    %v1608 = vld [vmem:[#allocation8 + $0xb50] sm:$0xff]
    %v1609 = vld [vmem:[#allocation8 + $0xb58] sm:$0xff]
    %v1610 = vld [vmem:[#allocation8 + $0xb60] sm:$0xff]
    %v1611 = vld [vmem:[#allocation8 + $0xb68] sm:$0xff]
    %v1612 = vld [vmem:[#allocation8 + $0xb70] sm:$0xff]
    %v1613 = vld [vmem:[#allocation8 + $0xb78] sm:$0xff]
    %v1614 = vld [vmem:[#allocation8 + $0xb80] sm:$0xff]
    %v1615 = vld [vmem:[#allocation8 + $0xb88] sm:$0xff]
    %v1616 = vld [vmem:[#allocation8 + $0xb90] sm:$0xff]
    %v1617 = vld [vmem:[#allocation8 + $0xb98] sm:$0xff]
    %v1618 = vld [vmem:[#allocation8 + $0xba0] sm:$0xff]
    %v1619 = vld [vmem:[#allocation8 + $0xba8] sm:$0xff]
    %v1620 = vld [vmem:[#allocation8 + $0xbb0] sm:$0xff]
    %v1621 = vld [vmem:[#allocation8 + $0xbb8] sm:$0xff]
    %v1622 = vld [vmem:[#allocation8 + $0xbc0] sm:$0xff]
    %v1623 = vld [vmem:[#allocation8 + $0xbc8] sm:$0xff]
    %v1624 = vld [vmem:[#allocation8 + $0xbd0] sm:$0xff]
    %v1625 = vld [vmem:[#allocation8 + $0xbd8] sm:$0xff]
    %v1626 = vld [vmem:[#allocation8 + $0xbe0] sm:$0xff]
    %v1627 = vld [vmem:[#allocation8 + $0xbe8] sm:$0xff]
    %v1628 = vld [vmem:[#allocation8 + $0xbf0] sm:$0xff]
    %v1629 = vld [vmem:[#allocation8 + $0xbf8] sm:$0xff]
    %v1630 = vld [vmem:[#allocation8 + $0xc00] sm:$0xff]
    %v1631 = vld [vmem:[#allocation8 + $0xc08] sm:$0xff]
    %v1632 = vld [vmem:[#allocation8 + $0xc10] sm:$0xff]
    %v1633 = vld [vmem:[#allocation8 + $0xc18] sm:$0xff]
    %v1634 = vld [vmem:[#allocation8 + $0xc20] sm:$0xff]
    %v1635 = vld [vmem:[#allocation8 + $0xc28] sm:$0xff]
    %v1636 = vld [vmem:[#allocation8 + $0xc30] sm:$0xff]
    %v1637 = vld [vmem:[#allocation8 + $0xc38] sm:$0xff]
    %v1638 = vld [vmem:[#allocation8 + $0xc40] sm:$0xff]
    %v1639 = vld [vmem:[#allocation8 + $0xc48] sm:$0xff]
    %v1640 = vld [vmem:[#allocation8 + $0xc50] sm:$0xff]
    %v1641 = vld [vmem:[#allocation8 + $0xc58] sm:$0xff]
    %v1642 = vld [vmem:[#allocation8 + $0xc60] sm:$0xff]
    %v1643 = vld [vmem:[#allocation8 + $0xc68] sm:$0xff]
    %v1644 = vld [vmem:[#allocation8 + $0xc70] sm:$0xff]
    %v1645 = vld [vmem:[#allocation8 + $0xc78] sm:$0xff]
    %v1646 = vld [vmem:[#allocation8 + $0xc80] sm:$0xff]
    %v1647 = vld [vmem:[#allocation8 + $0xc88] sm:$0xff]
    %v1648 = vld [vmem:[#allocation8 + $0xc90] sm:$0xff]
    %v1649 = vld [vmem:[#allocation8 + $0xc98] sm:$0xff]
    %v1650 = vld [vmem:[#allocation8 + $0xca0] sm:$0xff]
    %v1651 = vld [vmem:[#allocation8 + $0xca8] sm:$0xff]
    %v1652 = vld [vmem:[#allocation8 + $0xcb0] sm:$0xff]
    %v1653 = vld [vmem:[#allocation8 + $0xcb8] sm:$0xff]
    %v1654 = vld [vmem:[#allocation8 + $0xcc0] sm:$0xff]
    %v1655 = vld [vmem:[#allocation8 + $0xcc8] sm:$0xff]
    %v1656 = vld [vmem:[#allocation8 + $0xcd0] sm:$0xff]
    %v1657 = vld [vmem:[#allocation8 + $0xcd8] sm:$0xff]
    %v1658 = vld [vmem:[#allocation8 + $0xce0] sm:$0xff]
    %v1659 = vld [vmem:[#allocation8 + $0xce8] sm:$0xff]
    %v1660 = vld [vmem:[#allocation8 + $0xcf0] sm:$0xff]
    %v1661 = vld [vmem:[#allocation8 + $0xcf8] sm:$0xff]
    %v1662 = vld [vmem:[#allocation8 + $0xd00] sm:$0xff]
    %v1663 = vld [vmem:[#allocation8 + $0xd08] sm:$0xff]
    %v1664 = vld [vmem:[#allocation8 + $0xd10] sm:$0xff]
    %v1665 = vld [vmem:[#allocation8 + $0xd18] sm:$0xff]
    %v1666 = vld [vmem:[#allocation8 + $0xd20] sm:$0xff]
    %v1667 = vld [vmem:[#allocation8 + $0xd28] sm:$0xff]
    %v1668 = vld [vmem:[#allocation8 + $0xd30] sm:$0xff]
    %v1669 = vld [vmem:[#allocation8 + $0xd38] sm:$0xff]
    %v1670 = vld [vmem:[#allocation8 + $0xd40] sm:$0xff]
    %v1671 = vld [vmem:[#allocation8 + $0xd48] sm:$0xff]
    %v1672 = vld [vmem:[#allocation8 + $0xd50] sm:$0xff]
    %v1673 = vld [vmem:[#allocation8 + $0xd58] sm:$0xff]
    %v1674 = vld [vmem:[#allocation8 + $0xd60] sm:$0xff]
    %v1675 = vld [vmem:[#allocation8 + $0xd68] sm:$0xff]
    %v1676 = vld [vmem:[#allocation8 + $0xd70] sm:$0xff]
    %v1677 = vld [vmem:[#allocation8 + $0xd78] sm:$0xff]
    %v1678 = vld [vmem:[#allocation8 + $0xd80] sm:$0xff]
    %v1679 = vld [vmem:[#allocation8 + $0xd88] sm:$0xff]
    %v1680 = vld [vmem:[#allocation8 + $0xd90] sm:$0xff]
    %v1681 = vld [vmem:[#allocation8 + $0xd98] sm:$0xff]
    %v1682 = vld [vmem:[#allocation8 + $0xda0] sm:$0xff]
    %v1683 = vld [vmem:[#allocation8 + $0xda8] sm:$0xff]
    %v1684 = vld [vmem:[#allocation8 + $0xdb0] sm:$0xff]
    %v1685 = vld [vmem:[#allocation8 + $0xdb8] sm:$0xff]
    %v1686 = vld [vmem:[#allocation8 + $0xdc0] sm:$0xff]
    %v1687 = vld [vmem:[#allocation8 + $0xdc8] sm:$0xff]
    %v1688 = vld [vmem:[#allocation8 + $0xdd0] sm:$0xff]
    %v1689 = vld [vmem:[#allocation8 + $0xdd8] sm:$0xff]
    %v1690 = vld [vmem:[#allocation8 + $0xde0] sm:$0xff]
    %v1691 = vld [vmem:[#allocation8 + $0xde8] sm:$0xff]
    %v1692 = vld [vmem:[#allocation8 + $0xdf0] sm:$0xff]
    %v1693 = vld [vmem:[#allocation8 + $0xdf8] sm:$0xff]
    %v1694 = vld [vmem:[#allocation8 + $0xe00] sm:$0xff]
    %v1695 = vld [vmem:[#allocation8 + $0xe08] sm:$0xff]
    %v1696 = vld [vmem:[#allocation8 + $0xe10] sm:$0xff]
    %v1697 = vld [vmem:[#allocation8 + $0xe18] sm:$0xff]
    %v1698 = vld [vmem:[#allocation8 + $0xe20] sm:$0xff]
    %v1699 = vld [vmem:[#allocation8 + $0xe28] sm:$0xff]
    %v1700 = vld [vmem:[#allocation8 + $0xe30] sm:$0xff]
    %v1701 = vld [vmem:[#allocation8 + $0xe38] sm:$0xff]
    %v1702 = vld [vmem:[#allocation8 + $0xe40] sm:$0xff]
    %v1703 = vld [vmem:[#allocation8 + $0xe48] sm:$0xff]
    %v1704 = vld [vmem:[#allocation8 + $0xe50] sm:$0xff]
    %v1705 = vld [vmem:[#allocation8 + $0xe58] sm:$0xff]
    %v1706 = vld [vmem:[#allocation8 + $0xe60] sm:$0xff]
    %v1707 = vld [vmem:[#allocation8 + $0xe68] sm:$0xff]
    %v1708 = vld [vmem:[#allocation8 + $0xe70] sm:$0xff]
    %v1709 = vld [vmem:[#allocation8 + $0xe78] sm:$0xff]
    %v1710 = vld [vmem:[#allocation8 + $0xe80] sm:$0xff]
    %v1711 = vld [vmem:[#allocation8 + $0xe88] sm:$0xff]
    %v1712 = vld [vmem:[#allocation8 + $0xe90] sm:$0xff]
    %v1713 = vld [vmem:[#allocation8 + $0xe98] sm:$0xff]
    %v1714 = vld [vmem:[#allocation8 + $0xea0] sm:$0xff]
    %v1715 = vld [vmem:[#allocation8 + $0xea8] sm:$0xff]
    %v1716 = vld [vmem:[#allocation8 + $0xeb0] sm:$0xff]
    %v1717 = vld [vmem:[#allocation8 + $0xeb8] sm:$0xff]
    %v1718 = vld [vmem:[#allocation8 + $0xec0] sm:$0xff]
    %v1719 = vld [vmem:[#allocation8 + $0xec8] sm:$0xff]
    %v1720 = vld [vmem:[#allocation8 + $0xed0] sm:$0xff]
    %v1721 = vld [vmem:[#allocation8 + $0xed8] sm:$0xff]
    %v1722 = vld [vmem:[#allocation8 + $0xee0] sm:$0xff]
    %v1723 = vld [vmem:[#allocation8 + $0xee8] sm:$0xff]
    %v1724 = vld [vmem:[#allocation8 + $0xef0] sm:$0xff]
    %v1725 = vld [vmem:[#allocation8 + $0xef8] sm:$0xff]
    %v1726 = vld [vmem:[#allocation8 + $0xf00] sm:$0xff]
    %v1727 = vld [vmem:[#allocation8 + $0xf08] sm:$0xff]
    %v1728 = vld [vmem:[#allocation8 + $0xf10] sm:$0xff]
    %v1729 = vld [vmem:[#allocation8 + $0xf18] sm:$0xff]
    %v1730 = vld [vmem:[#allocation8 + $0xf20] sm:$0xff]
    %v1731 = vld [vmem:[#allocation8 + $0xf28] sm:$0xff]
    %v1732 = vld [vmem:[#allocation8 + $0xf30] sm:$0xff]
    %v1733 = vld [vmem:[#allocation8 + $0xf38] sm:$0xff]
    %v1734 = vld [vmem:[#allocation8 + $0xf40] sm:$0xff]
    %v1735 = vld [vmem:[#allocation8 + $0xf48] sm:$0xff]
    %v1736 = vld [vmem:[#allocation8 + $0xf50] sm:$0xff]
    %v1737 = vld [vmem:[#allocation8 + $0xf58] sm:$0xff]
    %v1738 = vld [vmem:[#allocation8 + $0xf60] sm:$0xff]
    %v1739 = vld [vmem:[#allocation8 + $0xf68] sm:$0xff]
    %v1740 = vld [vmem:[#allocation8 + $0xf70] sm:$0xff]
    %v1741 = vld [vmem:[#allocation8 + $0xf78] sm:$0xff]
    %v1742 = vld [vmem:[#allocation8 + $0xf80] sm:$0xff]
    %v1743 = vld [vmem:[#allocation8 + $0xf88] sm:$0xff]
    %v1744 = vld [vmem:[#allocation8 + $0xf90] sm:$0xff]
    %v1745 = vld [vmem:[#allocation8 + $0xf98] sm:$0xff]
    %v1746 = vld [vmem:[#allocation8 + $0xfa0] sm:$0xff]
    %v1747 = vld [vmem:[#allocation8 + $0xfa8] sm:$0xff]
    %v1748 = vld [vmem:[#allocation8 + $0xfb0] sm:$0xff]
    %v1749 = vld [vmem:[#allocation8 + $0xfb8] sm:$0xff]
    %v1750 = vld [vmem:[#allocation8 + $0xfc0] sm:$0xff]
    %v1751 = vld [vmem:[#allocation8 + $0xfc8] sm:$0xff]
    %v1752 = vld [vmem:[#allocation8 + $0xfd0] sm:$0xff]
    %v1753 = vld [vmem:[#allocation8 + $0xfd8] sm:$0xff]
    %v1754 = vld [vmem:[#allocation8 + $0xfe0] sm:$0xff]
    %v1755 = vld [vmem:[#allocation8 + $0xfe8] sm:$0xff]
    %v1756 = vld [vmem:[#allocation8 + $0xff0] sm:$0xff]
    %v1757 = vld [vmem:[#allocation8 + $0xff8] sm:$0xff]
    %v1758 = vld [vmem:[#allocation10] sm:$0xff]
    %v1760 = vperm.slane %v1758, 0
    %v1761 = vperm.slane %v1758, 1
    %v1762 = vperm.slane %v1758, 2
    %v1763 = vperm.slane %v1758, 3
    %v1764 = vperm.slane %v1758, 4
    %v1765 = vperm.slane %v1758, 5
    %v1766 = vperm.slane %v1758, 6
    %v1767 = vperm.slane %v1758, 7
    %v2288 = vunpack.c.l.b16 %v1246
    %v2289 = vunpack.c.h.b16 %v1246
    %v2290 = vunpack.c.l.b16 %v1247
    %v2291 = vunpack.c.h.b16 %v1247
    %v2292 = vunpack.c.l.b16 %v1248
    %v2293 = vunpack.c.h.b16 %v1248
    %v2294 = vunpack.c.l.b16 %v1249
    %v2295 = vunpack.c.h.b16 %v1249
    %v2296 = vunpack.c.l.b16 %v1250
    %v2297 = vunpack.c.h.b16 %v1250
    %v2298 = vunpack.c.l.b16 %v1251
    %v2299 = vunpack.c.h.b16 %v1251
    %v2300 = vunpack.c.l.b16 %v1252
    %v2301 = vunpack.c.h.b16 %v1252
    %v2302 = vunpack.c.l.b16 %v1253
    %v2303 = vunpack.c.h.b16 %v1253
    %v2304 = vunpack.c.l.b16 %v1254
    %v2305 = vunpack.c.h.b16 %v1254
    %v2306 = vunpack.c.l.b16 %v1255
    %v2307 = vunpack.c.h.b16 %v1255
    %v2308 = vunpack.c.l.b16 %v1256
    %v2309 = vunpack.c.h.b16 %v1256
    %v2310 = vunpack.c.l.b16 %v1257
    %v2311 = vunpack.c.h.b16 %v1257
    %v2312 = vunpack.c.l.b16 %v1258
    %v2313 = vunpack.c.h.b16 %v1258
    %v2314 = vunpack.c.l.b16 %v1259
    %v2315 = vunpack.c.h.b16 %v1259
    %v2316 = vunpack.c.l.b16 %v1260
    %v2317 = vunpack.c.h.b16 %v1260
    %v2318 = vunpack.c.l.b16 %v1261
    %v2319 = vunpack.c.h.b16 %v1261
    %v2320 = vunpack.c.l.b16 %v1262
    %v2321 = vunpack.c.h.b16 %v1262
    %v2322 = vunpack.c.l.b16 %v1263
    %v2323 = vunpack.c.h.b16 %v1263
    %v2324 = vunpack.c.l.b16 %v1264
    %v2325 = vunpack.c.h.b16 %v1264
    %v2326 = vunpack.c.l.b16 %v1265
    %v2327 = vunpack.c.h.b16 %v1265
    %v2328 = vunpack.c.l.b16 %v1266
    %v2329 = vunpack.c.h.b16 %v1266
    %v2330 = vunpack.c.l.b16 %v1267
    %v2331 = vunpack.c.h.b16 %v1267
    %v2332 = vunpack.c.l.b16 %v1268
    %v2333 = vunpack.c.h.b16 %v1268
    %v2334 = vunpack.c.l.b16 %v1269
    %v2335 = vunpack.c.h.b16 %v1269
    %v2336 = vunpack.c.l.b16 %v1270
    %v2337 = vunpack.c.h.b16 %v1270
    %v2338 = vunpack.c.l.b16 %v1271
    %v2339 = vunpack.c.h.b16 %v1271
    %v2340 = vunpack.c.l.b16 %v1272
    %v2341 = vunpack.c.h.b16 %v1272
    %v2342 = vunpack.c.l.b16 %v1273
    %v2343 = vunpack.c.h.b16 %v1273
    %v2344 = vunpack.c.l.b16 %v1274
    %v2345 = vunpack.c.h.b16 %v1274
    %v2346 = vunpack.c.l.b16 %v1275
    %v2347 = vunpack.c.h.b16 %v1275
    %v2348 = vunpack.c.l.b16 %v1276
    %v2349 = vunpack.c.h.b16 %v1276
    %v2350 = vunpack.c.l.b16 %v1277
    %v2351 = vunpack.c.h.b16 %v1277
    %v2352 = vunpack.c.l.b16 %v1278
    %v2353 = vunpack.c.h.b16 %v1278
    %v2354 = vunpack.c.l.b16 %v1279
    %v2355 = vunpack.c.h.b16 %v1279
    %v2356 = vunpack.c.l.b16 %v1280
    %v2357 = vunpack.c.h.b16 %v1280
    %v2358 = vunpack.c.l.b16 %v1281
    %v2359 = vunpack.c.h.b16 %v1281
    %v2360 = vunpack.c.l.b16 %v1282
    %v2361 = vunpack.c.h.b16 %v1282
    %v2362 = vunpack.c.l.b16 %v1283
    %v2363 = vunpack.c.h.b16 %v1283
    %v2364 = vunpack.c.l.b16 %v1284
    %v2365 = vunpack.c.h.b16 %v1284
    %v2366 = vunpack.c.l.b16 %v1285
    %v2367 = vunpack.c.h.b16 %v1285
    %v2368 = vunpack.c.l.b16 %v1286
    %v2369 = vunpack.c.h.b16 %v1286
    %v2370 = vunpack.c.l.b16 %v1287
    %v2371 = vunpack.c.h.b16 %v1287
    %v2372 = vunpack.c.l.b16 %v1288
    %v2373 = vunpack.c.h.b16 %v1288
    %v2374 = vunpack.c.l.b16 %v1289
    %v2375 = vunpack.c.h.b16 %v1289
    %v2376 = vunpack.c.l.b16 %v1290
    %v2377 = vunpack.c.h.b16 %v1290
    %v2378 = vunpack.c.l.b16 %v1291
    %v2379 = vunpack.c.h.b16 %v1291
    %v2380 = vunpack.c.l.b16 %v1292
    %v2381 = vunpack.c.h.b16 %v1292
    %v2382 = vunpack.c.l.b16 %v1293
    %v2383 = vunpack.c.h.b16 %v1293
    %v2384 = vunpack.c.l.b16 %v1294
    %v2385 = vunpack.c.h.b16 %v1294
    %v2386 = vunpack.c.l.b16 %v1295
    %v2387 = vunpack.c.h.b16 %v1295
    %v2388 = vunpack.c.l.b16 %v1296
    %v2389 = vunpack.c.h.b16 %v1296
    %v2390 = vunpack.c.l.b16 %v1297
    %v2391 = vunpack.c.h.b16 %v1297
    %v2392 = vunpack.c.l.b16 %v1298
    %v2393 = vunpack.c.h.b16 %v1298
    %v2394 = vunpack.c.l.b16 %v1299
    %v2395 = vunpack.c.h.b16 %v1299
    %v2396 = vunpack.c.l.b16 %v1300
    %v2397 = vunpack.c.h.b16 %v1300
    %v2398 = vunpack.c.l.b16 %v1301
    %v2399 = vunpack.c.h.b16 %v1301
    %v2400 = vunpack.c.l.b16 %v1302
    %v2401 = vunpack.c.h.b16 %v1302
    %v2402 = vunpack.c.l.b16 %v1303
    %v2403 = vunpack.c.h.b16 %v1303
    %v2404 = vunpack.c.l.b16 %v1304
    %v2405 = vunpack.c.h.b16 %v1304
    %v2406 = vunpack.c.l.b16 %v1305
    %v2407 = vunpack.c.h.b16 %v1305
    %v2408 = vunpack.c.l.b16 %v1306
    %v2409 = vunpack.c.h.b16 %v1306
    %v2410 = vunpack.c.l.b16 %v1307
    %v2411 = vunpack.c.h.b16 %v1307
    %v2412 = vunpack.c.l.b16 %v1308
    %v2413 = vunpack.c.h.b16 %v1308
    %v2414 = vunpack.c.l.b16 %v1309
    %v2415 = vunpack.c.h.b16 %v1309
    %v2416 = vunpack.c.l.b16 %v1310
    %v2417 = vunpack.c.h.b16 %v1310
    %v2418 = vunpack.c.l.b16 %v1311
    %v2419 = vunpack.c.h.b16 %v1311
    %v2420 = vunpack.c.l.b16 %v1312
    %v2421 = vunpack.c.h.b16 %v1312
    %v2422 = vunpack.c.l.b16 %v1313
    %v2423 = vunpack.c.h.b16 %v1313
    %v2424 = vunpack.c.l.b16 %v1314
    %v2425 = vunpack.c.h.b16 %v1314
    %v2426 = vunpack.c.l.b16 %v1315
    %v2427 = vunpack.c.h.b16 %v1315
    %v2428 = vunpack.c.l.b16 %v1316
    %v2429 = vunpack.c.h.b16 %v1316
    %v2430 = vunpack.c.l.b16 %v1317
    %v2431 = vunpack.c.h.b16 %v1317
    %v2432 = vunpack.c.l.b16 %v1318
    %v2433 = vunpack.c.h.b16 %v1318
    %v2434 = vunpack.c.l.b16 %v1319
    %v2435 = vunpack.c.h.b16 %v1319
    %v2436 = vunpack.c.l.b16 %v1320
    %v2437 = vunpack.c.h.b16 %v1320
    %v2438 = vunpack.c.l.b16 %v1321
    %v2439 = vunpack.c.h.b16 %v1321
    %v2440 = vunpack.c.l.b16 %v1322
    %v2441 = vunpack.c.h.b16 %v1322
    %v2442 = vunpack.c.l.b16 %v1323
    %v2443 = vunpack.c.h.b16 %v1323
    %v2444 = vunpack.c.l.b16 %v1324
    %v2445 = vunpack.c.h.b16 %v1324
    %v2446 = vunpack.c.l.b16 %v1325
    %v2447 = vunpack.c.h.b16 %v1325
    %v2448 = vunpack.c.l.b16 %v1326
    %v2449 = vunpack.c.h.b16 %v1326
    %v2450 = vunpack.c.l.b16 %v1327
    %v2451 = vunpack.c.h.b16 %v1327
    %v2452 = vunpack.c.l.b16 %v1328
    %v2453 = vunpack.c.h.b16 %v1328
    %v2454 = vunpack.c.l.b16 %v1329
    %v2455 = vunpack.c.h.b16 %v1329
    %v2456 = vunpack.c.l.b16 %v1330
    %v2457 = vunpack.c.h.b16 %v1330
    %v2458 = vunpack.c.l.b16 %v1331
    %v2459 = vunpack.c.h.b16 %v1331
    %v2460 = vunpack.c.l.b16 %v1332
    %v2461 = vunpack.c.h.b16 %v1332
    %v2462 = vunpack.c.l.b16 %v1333
    %v2463 = vunpack.c.h.b16 %v1333
    %v2464 = vunpack.c.l.b16 %v1334
    %v2465 = vunpack.c.h.b16 %v1334
    %v2466 = vunpack.c.l.b16 %v1335
    %v2467 = vunpack.c.h.b16 %v1335
    %v2468 = vunpack.c.l.b16 %v1336
    %v2469 = vunpack.c.h.b16 %v1336
    %v2470 = vunpack.c.l.b16 %v1337
    %v2471 = vunpack.c.h.b16 %v1337
    %v2472 = vunpack.c.l.b16 %v1338
    %v2473 = vunpack.c.h.b16 %v1338
    %v2474 = vunpack.c.l.b16 %v1339
    %v2475 = vunpack.c.h.b16 %v1339
    %v2476 = vunpack.c.l.b16 %v1340
    %v2477 = vunpack.c.h.b16 %v1340
    %v2478 = vunpack.c.l.b16 %v1341
    %v2479 = vunpack.c.h.b16 %v1341
    %v2480 = vunpack.c.l.b16 %v1342
    %v2481 = vunpack.c.h.b16 %v1342
    %v2482 = vunpack.c.l.b16 %v1343
    %v2483 = vunpack.c.h.b16 %v1343
    %v2484 = vunpack.c.l.b16 %v1344
    %v2485 = vunpack.c.h.b16 %v1344
    %v2486 = vunpack.c.l.b16 %v1345
    %v2487 = vunpack.c.h.b16 %v1345
    %v2488 = vunpack.c.l.b16 %v1346
    %v2489 = vunpack.c.h.b16 %v1346
    %v2490 = vunpack.c.l.b16 %v1347
    %v2491 = vunpack.c.h.b16 %v1347
    %v2492 = vunpack.c.l.b16 %v1348
    %v2493 = vunpack.c.h.b16 %v1348
    %v2494 = vunpack.c.l.b16 %v1349
    %v2495 = vunpack.c.h.b16 %v1349
    %v2496 = vunpack.c.l.b16 %v1350
    %v2497 = vunpack.c.h.b16 %v1350
    %v2498 = vunpack.c.l.b16 %v1351
    %v2499 = vunpack.c.h.b16 %v1351
    %v2500 = vunpack.c.l.b16 %v1352
    %v2501 = vunpack.c.h.b16 %v1352
    %v2502 = vunpack.c.l.b16 %v1353
    %v2503 = vunpack.c.h.b16 %v1353
    %v2504 = vunpack.c.l.b16 %v1354
    %v2505 = vunpack.c.h.b16 %v1354
    %v2506 = vunpack.c.l.b16 %v1355
    %v2507 = vunpack.c.h.b16 %v1355
    %v2508 = vunpack.c.l.b16 %v1356
    %v2509 = vunpack.c.h.b16 %v1356
    %v2510 = vunpack.c.l.b16 %v1357
    %v2511 = vunpack.c.h.b16 %v1357
    %v2512 = vunpack.c.l.b16 %v1358
    %v2513 = vunpack.c.h.b16 %v1358
    %v2514 = vunpack.c.l.b16 %v1359
    %v2515 = vunpack.c.h.b16 %v1359
    %v2516 = vunpack.c.l.b16 %v1360
    %v2517 = vunpack.c.h.b16 %v1360
    %v2518 = vunpack.c.l.b16 %v1361
    %v2519 = vunpack.c.h.b16 %v1361
    %v2520 = vunpack.c.l.b16 %v1362
    %v2521 = vunpack.c.h.b16 %v1362
    %v2522 = vunpack.c.l.b16 %v1363
    %v2523 = vunpack.c.h.b16 %v1363
    %v2524 = vunpack.c.l.b16 %v1364
    %v2525 = vunpack.c.h.b16 %v1364
    %v2526 = vunpack.c.l.b16 %v1365
    %v2527 = vunpack.c.h.b16 %v1365
    %v2528 = vunpack.c.l.b16 %v1366
    %v2529 = vunpack.c.h.b16 %v1366
    %v2530 = vunpack.c.l.b16 %v1367
    %v2531 = vunpack.c.h.b16 %v1367
    %v2532 = vunpack.c.l.b16 %v1368
    %v2533 = vunpack.c.h.b16 %v1368
    %v2534 = vunpack.c.l.b16 %v1369
    %v2535 = vunpack.c.h.b16 %v1369
    %v2536 = vunpack.c.l.b16 %v1370
    %v2537 = vunpack.c.h.b16 %v1370
    %v2538 = vunpack.c.l.b16 %v1371
    %v2539 = vunpack.c.h.b16 %v1371
    %v2540 = vunpack.c.l.b16 %v1372
    %v2541 = vunpack.c.h.b16 %v1372
    %v2542 = vunpack.c.l.b16 %v1373
    %v2543 = vunpack.c.h.b16 %v1373
    %v2544 = vunpack.c.l.b16 %v1374
    %v2545 = vunpack.c.h.b16 %v1374
    %v2546 = vunpack.c.l.b16 %v1375
    %v2547 = vunpack.c.h.b16 %v1375
    %v2548 = vunpack.c.l.b16 %v1376
    %v2549 = vunpack.c.h.b16 %v1376
    %v2550 = vunpack.c.l.b16 %v1377
    %v2551 = vunpack.c.h.b16 %v1377
    %v2552 = vunpack.c.l.b16 %v1378
    %v2553 = vunpack.c.h.b16 %v1378
    %v2554 = vunpack.c.l.b16 %v1379
    %v2555 = vunpack.c.h.b16 %v1379
    %v2556 = vunpack.c.l.b16 %v1380
    %v2557 = vunpack.c.h.b16 %v1380
    %v2558 = vunpack.c.l.b16 %v1381
    %v2559 = vunpack.c.h.b16 %v1381
    %v2560 = vunpack.c.l.b16 %v1382
    %v2561 = vunpack.c.h.b16 %v1382
    %v2562 = vunpack.c.l.b16 %v1383
    %v2563 = vunpack.c.h.b16 %v1383
    %v2564 = vunpack.c.l.b16 %v1384
    %v2565 = vunpack.c.h.b16 %v1384
    %v2566 = vunpack.c.l.b16 %v1385
    %v2567 = vunpack.c.h.b16 %v1385
    %v2568 = vunpack.c.l.b16 %v1386
    %v2569 = vunpack.c.h.b16 %v1386
    %v2570 = vunpack.c.l.b16 %v1387
    %v2571 = vunpack.c.h.b16 %v1387
    %v2572 = vunpack.c.l.b16 %v1388
    %v2573 = vunpack.c.h.b16 %v1388
    %v2574 = vunpack.c.l.b16 %v1389
    %v2575 = vunpack.c.h.b16 %v1389
    %v2576 = vunpack.c.l.b16 %v1390
    %v2577 = vunpack.c.h.b16 %v1390
    %v2578 = vunpack.c.l.b16 %v1391
    %v2579 = vunpack.c.h.b16 %v1391
    %v2580 = vunpack.c.l.b16 %v1392
    %v2581 = vunpack.c.h.b16 %v1392
    %v2582 = vunpack.c.l.b16 %v1393
    %v2583 = vunpack.c.h.b16 %v1393
    %v2584 = vunpack.c.l.b16 %v1394
    %v2585 = vunpack.c.h.b16 %v1394
    %v2586 = vunpack.c.l.b16 %v1395
    %v2587 = vunpack.c.h.b16 %v1395
    %v2588 = vunpack.c.l.b16 %v1396
    %v2589 = vunpack.c.h.b16 %v1396
    %v2590 = vunpack.c.l.b16 %v1397
    %v2591 = vunpack.c.h.b16 %v1397
    %v2592 = vunpack.c.l.b16 %v1398
    %v2593 = vunpack.c.h.b16 %v1398
    %v2594 = vunpack.c.l.b16 %v1399
    %v2595 = vunpack.c.h.b16 %v1399
    %v2596 = vunpack.c.l.b16 %v1400
    %v2597 = vunpack.c.h.b16 %v1400
    %v2598 = vunpack.c.l.b16 %v1401
    %v2599 = vunpack.c.h.b16 %v1401
    %v2600 = vunpack.c.l.b16 %v1402
    %v2601 = vunpack.c.h.b16 %v1402
    %v2602 = vunpack.c.l.b16 %v1403
    %v2603 = vunpack.c.h.b16 %v1403
    %v2604 = vunpack.c.l.b16 %v1404
    %v2605 = vunpack.c.h.b16 %v1404
    %v2606 = vunpack.c.l.b16 %v1405
    %v2607 = vunpack.c.h.b16 %v1405
    %v2608 = vunpack.c.l.b16 %v1406
    %v2609 = vunpack.c.h.b16 %v1406
    %v2610 = vunpack.c.l.b16 %v1407
    %v2611 = vunpack.c.h.b16 %v1407
    %v2612 = vunpack.c.l.b16 %v1408
    %v2613 = vunpack.c.h.b16 %v1408
    %v2614 = vunpack.c.l.b16 %v1409
    %v2615 = vunpack.c.h.b16 %v1409
    %v2616 = vunpack.c.l.b16 %v1410
    %v2617 = vunpack.c.h.b16 %v1410
    %v2618 = vunpack.c.l.b16 %v1411
    %v2619 = vunpack.c.h.b16 %v1411
    %v2620 = vunpack.c.l.b16 %v1412
    %v2621 = vunpack.c.h.b16 %v1412
    %v2622 = vunpack.c.l.b16 %v1413
    %v2623 = vunpack.c.h.b16 %v1413
    %v2624 = vunpack.c.l.b16 %v1414
    %v2625 = vunpack.c.h.b16 %v1414
    %v2626 = vunpack.c.l.b16 %v1415
    %v2627 = vunpack.c.h.b16 %v1415
    %v2628 = vunpack.c.l.b16 %v1416
    %v2629 = vunpack.c.h.b16 %v1416
    %v2630 = vunpack.c.l.b16 %v1417
    %v2631 = vunpack.c.h.b16 %v1417
    %v2632 = vunpack.c.l.b16 %v1418
    %v2633 = vunpack.c.h.b16 %v1418
    %v2634 = vunpack.c.l.b16 %v1419
    %v2635 = vunpack.c.h.b16 %v1419
    %v2636 = vunpack.c.l.b16 %v1420
    %v2637 = vunpack.c.h.b16 %v1420
    %v2638 = vunpack.c.l.b16 %v1421
    %v2639 = vunpack.c.h.b16 %v1421
    %v2640 = vunpack.c.l.b16 %v1422
    %v2641 = vunpack.c.h.b16 %v1422
    %v2642 = vunpack.c.l.b16 %v1423
    %v2643 = vunpack.c.h.b16 %v1423
    %v2644 = vunpack.c.l.b16 %v1424
    %v2645 = vunpack.c.h.b16 %v1424
    %v2646 = vunpack.c.l.b16 %v1425
    %v2647 = vunpack.c.h.b16 %v1425
    %v2648 = vunpack.c.l.b16 %v1426
    %v2649 = vunpack.c.h.b16 %v1426
    %v2650 = vunpack.c.l.b16 %v1427
    %v2651 = vunpack.c.h.b16 %v1427
    %v2652 = vunpack.c.l.b16 %v1428
    %v2653 = vunpack.c.h.b16 %v1428
    %v2654 = vunpack.c.l.b16 %v1429
    %v2655 = vunpack.c.h.b16 %v1429
    %v2656 = vunpack.c.l.b16 %v1430
    %v2657 = vunpack.c.h.b16 %v1430
    %v2658 = vunpack.c.l.b16 %v1431
    %v2659 = vunpack.c.h.b16 %v1431
    %v2660 = vunpack.c.l.b16 %v1432
    %v2661 = vunpack.c.h.b16 %v1432
    %v2662 = vunpack.c.l.b16 %v1433
    %v2663 = vunpack.c.h.b16 %v1433
    %v2664 = vunpack.c.l.b16 %v1434
    %v2665 = vunpack.c.h.b16 %v1434
    %v2666 = vunpack.c.l.b16 %v1435
    %v2667 = vunpack.c.h.b16 %v1435
    %v2668 = vunpack.c.l.b16 %v1436
    %v2669 = vunpack.c.h.b16 %v1436
    %v2670 = vunpack.c.l.b16 %v1437
    %v2671 = vunpack.c.h.b16 %v1437
    %v2672 = vunpack.c.l.b16 %v1438
    %v2673 = vunpack.c.h.b16 %v1438
    %v2674 = vunpack.c.l.b16 %v1439
    %v2675 = vunpack.c.h.b16 %v1439
    %v2676 = vunpack.c.l.b16 %v1440
    %v2677 = vunpack.c.h.b16 %v1440
    %v2678 = vunpack.c.l.b16 %v1441
    %v2679 = vunpack.c.h.b16 %v1441
    %v2680 = vunpack.c.l.b16 %v1442
    %v2681 = vunpack.c.h.b16 %v1442
    %v2682 = vunpack.c.l.b16 %v1443
    %v2683 = vunpack.c.h.b16 %v1443
    %v2684 = vunpack.c.l.b16 %v1444
    %v2685 = vunpack.c.h.b16 %v1444
    %v2686 = vunpack.c.l.b16 %v1445
    %v2687 = vunpack.c.h.b16 %v1445
    %v2688 = vunpack.c.l.b16 %v1446
    %v2689 = vunpack.c.h.b16 %v1446
    %v2690 = vunpack.c.l.b16 %v1447
    %v2691 = vunpack.c.h.b16 %v1447
    %v2692 = vunpack.c.l.b16 %v1448
    %v2693 = vunpack.c.h.b16 %v1448
    %v2694 = vunpack.c.l.b16 %v1449
    %v2695 = vunpack.c.h.b16 %v1449
    %v2696 = vunpack.c.l.b16 %v1450
    %v2697 = vunpack.c.h.b16 %v1450
    %v2698 = vunpack.c.l.b16 %v1451
    %v2699 = vunpack.c.h.b16 %v1451
    %v2700 = vunpack.c.l.b16 %v1452
    %v2701 = vunpack.c.h.b16 %v1452
    %v2702 = vunpack.c.l.b16 %v1453
    %v2703 = vunpack.c.h.b16 %v1453
    %v2704 = vunpack.c.l.b16 %v1454
    %v2705 = vunpack.c.h.b16 %v1454
    %v2706 = vunpack.c.l.b16 %v1455
    %v2707 = vunpack.c.h.b16 %v1455
    %v2708 = vunpack.c.l.b16 %v1456
    %v2709 = vunpack.c.h.b16 %v1456
    %v2710 = vunpack.c.l.b16 %v1457
    %v2711 = vunpack.c.h.b16 %v1457
    %v2712 = vunpack.c.l.b16 %v1458
    %v2713 = vunpack.c.h.b16 %v1458
    %v2714 = vunpack.c.l.b16 %v1459
    %v2715 = vunpack.c.h.b16 %v1459
    %v2716 = vunpack.c.l.b16 %v1460
    %v2717 = vunpack.c.h.b16 %v1460
    %v2718 = vunpack.c.l.b16 %v1461
    %v2719 = vunpack.c.h.b16 %v1461
    %v2720 = vunpack.c.l.b16 %v1462
    %v2721 = vunpack.c.h.b16 %v1462
    %v2722 = vunpack.c.l.b16 %v1463
    %v2723 = vunpack.c.h.b16 %v1463
    %v2724 = vunpack.c.l.b16 %v1464
    %v2725 = vunpack.c.h.b16 %v1464
    %v2726 = vunpack.c.l.b16 %v1465
    %v2727 = vunpack.c.h.b16 %v1465
    %v2728 = vunpack.c.l.b16 %v1466
    %v2729 = vunpack.c.h.b16 %v1466
    %v2730 = vunpack.c.l.b16 %v1467
    %v2731 = vunpack.c.h.b16 %v1467
    %v2732 = vunpack.c.l.b16 %v1468
    %v2733 = vunpack.c.h.b16 %v1468
    %v2734 = vunpack.c.l.b16 %v1469
    %v2735 = vunpack.c.h.b16 %v1469
    %v2736 = vunpack.c.l.b16 %v1470
    %v2737 = vunpack.c.h.b16 %v1470
    %v2738 = vunpack.c.l.b16 %v1471
    %v2739 = vunpack.c.h.b16 %v1471
    %v2740 = vunpack.c.l.b16 %v1472
    %v2741 = vunpack.c.h.b16 %v1472
    %v2742 = vunpack.c.l.b16 %v1473
    %v2743 = vunpack.c.h.b16 %v1473
    %v2744 = vunpack.c.l.b16 %v1474
    %v2745 = vunpack.c.h.b16 %v1474
    %v2746 = vunpack.c.l.b16 %v1475
    %v2747 = vunpack.c.h.b16 %v1475
    %v2748 = vunpack.c.l.b16 %v1476
    %v2749 = vunpack.c.h.b16 %v1476
    %v2750 = vunpack.c.l.b16 %v1477
    %v2751 = vunpack.c.h.b16 %v1477
    %v2752 = vunpack.c.l.b16 %v1478
    %v2753 = vunpack.c.h.b16 %v1478
    %v2754 = vunpack.c.l.b16 %v1479
    %v2755 = vunpack.c.h.b16 %v1479
    %v2756 = vunpack.c.l.b16 %v1480
    %v2757 = vunpack.c.h.b16 %v1480
    %v2758 = vunpack.c.l.b16 %v1481
    %v2759 = vunpack.c.h.b16 %v1481
    %v2760 = vunpack.c.l.b16 %v1482
    %v2761 = vunpack.c.h.b16 %v1482
    %v2762 = vunpack.c.l.b16 %v1483
    %v2763 = vunpack.c.h.b16 %v1483
    %v2764 = vunpack.c.l.b16 %v1484
    %v2765 = vunpack.c.h.b16 %v1484
    %v2766 = vunpack.c.l.b16 %v1485
    %v2767 = vunpack.c.h.b16 %v1485
    %v2768 = vunpack.c.l.b16 %v1486
    %v2769 = vunpack.c.h.b16 %v1486
    %v2770 = vunpack.c.l.b16 %v1487
    %v2771 = vunpack.c.h.b16 %v1487
    %v2772 = vunpack.c.l.b16 %v1488
    %v2773 = vunpack.c.h.b16 %v1488
    %v2774 = vunpack.c.l.b16 %v1489
    %v2775 = vunpack.c.h.b16 %v1489
    %v2776 = vunpack.c.l.b16 %v1490
    %v2777 = vunpack.c.h.b16 %v1490
    %v2778 = vunpack.c.l.b16 %v1491
    %v2779 = vunpack.c.h.b16 %v1491
    %v2780 = vunpack.c.l.b16 %v1492
    %v2781 = vunpack.c.h.b16 %v1492
    %v2782 = vunpack.c.l.b16 %v1493
    %v2783 = vunpack.c.h.b16 %v1493
    %v2784 = vunpack.c.l.b16 %v1494
    %v2785 = vunpack.c.h.b16 %v1494
    %v2786 = vunpack.c.l.b16 %v1495
    %v2787 = vunpack.c.h.b16 %v1495
    %v2788 = vunpack.c.l.b16 %v1496
    %v2789 = vunpack.c.h.b16 %v1496
    %v2790 = vunpack.c.l.b16 %v1497
    %v2791 = vunpack.c.h.b16 %v1497
    %v2792 = vunpack.c.l.b16 %v1498
    %v2793 = vunpack.c.h.b16 %v1498
    %v2794 = vunpack.c.l.b16 %v1499
    %v2795 = vunpack.c.h.b16 %v1499
    %v2796 = vunpack.c.l.b16 %v1500
    %v2797 = vunpack.c.h.b16 %v1500
    %v2798 = vunpack.c.l.b16 %v1501
    %v2799 = vunpack.c.h.b16 %v1501
    %v2800 = vunpack.c.l.b16 %v1502
    %v2801 = vunpack.c.h.b16 %v1502
    %v2802 = vunpack.c.l.b16 %v1503
    %v2803 = vunpack.c.h.b16 %v1503
    %v2804 = vunpack.c.l.b16 %v1504
    %v2805 = vunpack.c.h.b16 %v1504
    %v2806 = vunpack.c.l.b16 %v1505
    %v2807 = vunpack.c.h.b16 %v1505
    %v2808 = vunpack.c.l.b16 %v1506
    %v2809 = vunpack.c.h.b16 %v1506
    %v2810 = vunpack.c.l.b16 %v1507
    %v2811 = vunpack.c.h.b16 %v1507
    %v2812 = vunpack.c.l.b16 %v1508
    %v2813 = vunpack.c.h.b16 %v1508
    %v2814 = vunpack.c.l.b16 %v1509
    %v2815 = vunpack.c.h.b16 %v1509
    %v2816 = vunpack.c.l.b16 %v1510
    %v2817 = vunpack.c.h.b16 %v1510
    %v2818 = vunpack.c.l.b16 %v1511
    %v2819 = vunpack.c.h.b16 %v1511
    %v2820 = vunpack.c.l.b16 %v1512
    %v2821 = vunpack.c.h.b16 %v1512
    %v2822 = vunpack.c.l.b16 %v1513
    %v2823 = vunpack.c.h.b16 %v1513
    %v2824 = vunpack.c.l.b16 %v1514
    %v2825 = vunpack.c.h.b16 %v1514
    %v2826 = vunpack.c.l.b16 %v1515
    %v2827 = vunpack.c.h.b16 %v1515
    %v2828 = vunpack.c.l.b16 %v1516
    %v2829 = vunpack.c.h.b16 %v1516
    %v2830 = vunpack.c.l.b16 %v1517
    %v2831 = vunpack.c.h.b16 %v1517
    %v2832 = vunpack.c.l.b16 %v1518
    %v2833 = vunpack.c.h.b16 %v1518
    %v2834 = vunpack.c.l.b16 %v1519
    %v2835 = vunpack.c.h.b16 %v1519
    %v2836 = vunpack.c.l.b16 %v1520
    %v2837 = vunpack.c.h.b16 %v1520
    %v2838 = vunpack.c.l.b16 %v1521
    %v2839 = vunpack.c.h.b16 %v1521
    %v2840 = vunpack.c.l.b16 %v1522
    %v2841 = vunpack.c.h.b16 %v1522
    %v2842 = vunpack.c.l.b16 %v1523
    %v2843 = vunpack.c.h.b16 %v1523
    %v2844 = vunpack.c.l.b16 %v1524
    %v2845 = vunpack.c.h.b16 %v1524
    %v2846 = vunpack.c.l.b16 %v1525
    %v2847 = vunpack.c.h.b16 %v1525
    %v2848 = vunpack.c.l.b16 %v1526
    %v2849 = vunpack.c.h.b16 %v1526
    %v2850 = vunpack.c.l.b16 %v1527
    %v2851 = vunpack.c.h.b16 %v1527
    %v2852 = vunpack.c.l.b16 %v1528
    %v2853 = vunpack.c.h.b16 %v1528
    %v2854 = vunpack.c.l.b16 %v1529
    %v2855 = vunpack.c.h.b16 %v1529
    %v2856 = vunpack.c.l.b16 %v1530
    %v2857 = vunpack.c.h.b16 %v1530
    %v2858 = vunpack.c.l.b16 %v1531
    %v2859 = vunpack.c.h.b16 %v1531
    %v2860 = vunpack.c.l.b16 %v1532
    %v2861 = vunpack.c.h.b16 %v1532
    %v2862 = vunpack.c.l.b16 %v1533
    %v2863 = vunpack.c.h.b16 %v1533
    %v2864 = vunpack.c.l.b16 %v1534
    %v2865 = vunpack.c.h.b16 %v1534
    %v2866 = vunpack.c.l.b16 %v1535
    %v2867 = vunpack.c.h.b16 %v1535
    %v2868 = vunpack.c.l.b16 %v1536
    %v2869 = vunpack.c.h.b16 %v1536
    %v2870 = vunpack.c.l.b16 %v1537
    %v2871 = vunpack.c.h.b16 %v1537
    %v2872 = vunpack.c.l.b16 %v1538
    %v2873 = vunpack.c.h.b16 %v1538
    %v2874 = vunpack.c.l.b16 %v1539
    %v2875 = vunpack.c.h.b16 %v1539
    %v2876 = vunpack.c.l.b16 %v1540
    %v2877 = vunpack.c.h.b16 %v1540
    %v2878 = vunpack.c.l.b16 %v1541
    %v2879 = vunpack.c.h.b16 %v1541
    %v2880 = vunpack.c.l.b16 %v1542
    %v2881 = vunpack.c.h.b16 %v1542
    %v2882 = vunpack.c.l.b16 %v1543
    %v2883 = vunpack.c.h.b16 %v1543
    %v2884 = vunpack.c.l.b16 %v1544
    %v2885 = vunpack.c.h.b16 %v1544
    %v2886 = vunpack.c.l.b16 %v1545
    %v2887 = vunpack.c.h.b16 %v1545
    %v2888 = vunpack.c.l.b16 %v1546
    %v2889 = vunpack.c.h.b16 %v1546
    %v2890 = vunpack.c.l.b16 %v1547
    %v2891 = vunpack.c.h.b16 %v1547
    %v2892 = vunpack.c.l.b16 %v1548
    %v2893 = vunpack.c.h.b16 %v1548
    %v2894 = vunpack.c.l.b16 %v1549
    %v2895 = vunpack.c.h.b16 %v1549
    %v2896 = vunpack.c.l.b16 %v1550
    %v2897 = vunpack.c.h.b16 %v1550
    %v2898 = vunpack.c.l.b16 %v1551
    %v2899 = vunpack.c.h.b16 %v1551
    %v2900 = vunpack.c.l.b16 %v1552
    %v2901 = vunpack.c.h.b16 %v1552
    %v2902 = vunpack.c.l.b16 %v1553
    %v2903 = vunpack.c.h.b16 %v1553
    %v2904 = vunpack.c.l.b16 %v1554
    %v2905 = vunpack.c.h.b16 %v1554
    %v2906 = vunpack.c.l.b16 %v1555
    %v2907 = vunpack.c.h.b16 %v1555
    %v2908 = vunpack.c.l.b16 %v1556
    %v2909 = vunpack.c.h.b16 %v1556
    %v2910 = vunpack.c.l.b16 %v1557
    %v2911 = vunpack.c.h.b16 %v1557
    %v2912 = vunpack.c.l.b16 %v1558
    %v2913 = vunpack.c.h.b16 %v1558
    %v2914 = vunpack.c.l.b16 %v1559
    %v2915 = vunpack.c.h.b16 %v1559
    %v2916 = vunpack.c.l.b16 %v1560
    %v2917 = vunpack.c.h.b16 %v1560
    %v2918 = vunpack.c.l.b16 %v1561
    %v2919 = vunpack.c.h.b16 %v1561
    %v2920 = vunpack.c.l.b16 %v1562
    %v2921 = vunpack.c.h.b16 %v1562
    %v2922 = vunpack.c.l.b16 %v1563
    %v2923 = vunpack.c.h.b16 %v1563
    %v2924 = vunpack.c.l.b16 %v1564
    %v2925 = vunpack.c.h.b16 %v1564
    %v2926 = vunpack.c.l.b16 %v1565
    %v2927 = vunpack.c.h.b16 %v1565
    %v2928 = vunpack.c.l.b16 %v1566
    %v2929 = vunpack.c.h.b16 %v1566
    %v2930 = vunpack.c.l.b16 %v1567
    %v2931 = vunpack.c.h.b16 %v1567
    %v2932 = vunpack.c.l.b16 %v1568
    %v2933 = vunpack.c.h.b16 %v1568
    %v2934 = vunpack.c.l.b16 %v1569
    %v2935 = vunpack.c.h.b16 %v1569
    %v2936 = vunpack.c.l.b16 %v1570
    %v2937 = vunpack.c.h.b16 %v1570
    %v2938 = vunpack.c.l.b16 %v1571
    %v2939 = vunpack.c.h.b16 %v1571
    %v2940 = vunpack.c.l.b16 %v1572
    %v2941 = vunpack.c.h.b16 %v1572
    %v2942 = vunpack.c.l.b16 %v1573
    %v2943 = vunpack.c.h.b16 %v1573
    %v2944 = vunpack.c.l.b16 %v1574
    %v2945 = vunpack.c.h.b16 %v1574
    %v2946 = vunpack.c.l.b16 %v1575
    %v2947 = vunpack.c.h.b16 %v1575
    %v2948 = vunpack.c.l.b16 %v1576
    %v2949 = vunpack.c.h.b16 %v1576
    %v2950 = vunpack.c.l.b16 %v1577
    %v2951 = vunpack.c.h.b16 %v1577
    %v2952 = vunpack.c.l.b16 %v1578
    %v2953 = vunpack.c.h.b16 %v1578
    %v2954 = vunpack.c.l.b16 %v1579
    %v2955 = vunpack.c.h.b16 %v1579
    %v2956 = vunpack.c.l.b16 %v1580
    %v2957 = vunpack.c.h.b16 %v1580
    %v2958 = vunpack.c.l.b16 %v1581
    %v2959 = vunpack.c.h.b16 %v1581
    %v2960 = vunpack.c.l.b16 %v1582
    %v2961 = vunpack.c.h.b16 %v1582
    %v2962 = vunpack.c.l.b16 %v1583
    %v2963 = vunpack.c.h.b16 %v1583
    %v2964 = vunpack.c.l.b16 %v1584
    %v2965 = vunpack.c.h.b16 %v1584
    %v2966 = vunpack.c.l.b16 %v1585
    %v2967 = vunpack.c.h.b16 %v1585
    %v2968 = vunpack.c.l.b16 %v1586
    %v2969 = vunpack.c.h.b16 %v1586
    %v2970 = vunpack.c.l.b16 %v1587
    %v2971 = vunpack.c.h.b16 %v1587
    %v2972 = vunpack.c.l.b16 %v1588
    %v2973 = vunpack.c.h.b16 %v1588
    %v2974 = vunpack.c.l.b16 %v1589
    %v2975 = vunpack.c.h.b16 %v1589
    %v2976 = vunpack.c.l.b16 %v1590
    %v2977 = vunpack.c.h.b16 %v1590
    %v2978 = vunpack.c.l.b16 %v1591
    %v2979 = vunpack.c.h.b16 %v1591
    %v2980 = vunpack.c.l.b16 %v1592
    %v2981 = vunpack.c.h.b16 %v1592
    %v2982 = vunpack.c.l.b16 %v1593
    %v2983 = vunpack.c.h.b16 %v1593
    %v2984 = vunpack.c.l.b16 %v1594
    %v2985 = vunpack.c.h.b16 %v1594
    %v2986 = vunpack.c.l.b16 %v1595
    %v2987 = vunpack.c.h.b16 %v1595
    %v2988 = vunpack.c.l.b16 %v1596
    %v2989 = vunpack.c.h.b16 %v1596
    %v2990 = vunpack.c.l.b16 %v1597
    %v2991 = vunpack.c.h.b16 %v1597
    %v2992 = vunpack.c.l.b16 %v1598
    %v2993 = vunpack.c.h.b16 %v1598
    %v2994 = vunpack.c.l.b16 %v1599
    %v2995 = vunpack.c.h.b16 %v1599
    %v2996 = vunpack.c.l.b16 %v1600
    %v2997 = vunpack.c.h.b16 %v1600
    %v2998 = vunpack.c.l.b16 %v1601
    %v2999 = vunpack.c.h.b16 %v1601
    %v3000 = vunpack.c.l.b16 %v1602
    %v3001 = vunpack.c.h.b16 %v1602
    %v3002 = vunpack.c.l.b16 %v1603
    %v3003 = vunpack.c.h.b16 %v1603
    %v3004 = vunpack.c.l.b16 %v1604
    %v3005 = vunpack.c.h.b16 %v1604
    %v3006 = vunpack.c.l.b16 %v1605
    %v3007 = vunpack.c.h.b16 %v1605
    %v3008 = vunpack.c.l.b16 %v1606
    %v3009 = vunpack.c.h.b16 %v1606
    %v3010 = vunpack.c.l.b16 %v1607
    %v3011 = vunpack.c.h.b16 %v1607
    %v3012 = vunpack.c.l.b16 %v1608
    %v3013 = vunpack.c.h.b16 %v1608
    %v3014 = vunpack.c.l.b16 %v1609
    %v3015 = vunpack.c.h.b16 %v1609
    %v3016 = vunpack.c.l.b16 %v1610
    %v3017 = vunpack.c.h.b16 %v1610
    %v3018 = vunpack.c.l.b16 %v1611
    %v3019 = vunpack.c.h.b16 %v1611
    %v3020 = vunpack.c.l.b16 %v1612
    %v3021 = vunpack.c.h.b16 %v1612
    %v3022 = vunpack.c.l.b16 %v1613
    %v3023 = vunpack.c.h.b16 %v1613
    %v3024 = vunpack.c.l.b16 %v1614
    %v3025 = vunpack.c.h.b16 %v1614
    %v3026 = vunpack.c.l.b16 %v1615
    %v3027 = vunpack.c.h.b16 %v1615
    %v3028 = vunpack.c.l.b16 %v1616
    %v3029 = vunpack.c.h.b16 %v1616
    %v3030 = vunpack.c.l.b16 %v1617
    %v3031 = vunpack.c.h.b16 %v1617
    %v3032 = vunpack.c.l.b16 %v1618
    %v3033 = vunpack.c.h.b16 %v1618
    %v3034 = vunpack.c.l.b16 %v1619
    %v3035 = vunpack.c.h.b16 %v1619
    %v3036 = vunpack.c.l.b16 %v1620
    %v3037 = vunpack.c.h.b16 %v1620
    %v3038 = vunpack.c.l.b16 %v1621
    %v3039 = vunpack.c.h.b16 %v1621
    %v3040 = vunpack.c.l.b16 %v1622
    %v3041 = vunpack.c.h.b16 %v1622
    %v3042 = vunpack.c.l.b16 %v1623
    %v3043 = vunpack.c.h.b16 %v1623
    %v3044 = vunpack.c.l.b16 %v1624
    %v3045 = vunpack.c.h.b16 %v1624
    %v3046 = vunpack.c.l.b16 %v1625
    %v3047 = vunpack.c.h.b16 %v1625
    %v3048 = vunpack.c.l.b16 %v1626
    %v3049 = vunpack.c.h.b16 %v1626
    %v3050 = vunpack.c.l.b16 %v1627
    %v3051 = vunpack.c.h.b16 %v1627
    %v3052 = vunpack.c.l.b16 %v1628
    %v3053 = vunpack.c.h.b16 %v1628
    %v3054 = vunpack.c.l.b16 %v1629
    %v3055 = vunpack.c.h.b16 %v1629
    %v3056 = vunpack.c.l.b16 %v1630
    %v3057 = vunpack.c.h.b16 %v1630
    %v3058 = vunpack.c.l.b16 %v1631
    %v3059 = vunpack.c.h.b16 %v1631
    %v3060 = vunpack.c.l.b16 %v1632
    %v3061 = vunpack.c.h.b16 %v1632
    %v3062 = vunpack.c.l.b16 %v1633
    %v3063 = vunpack.c.h.b16 %v1633
    %v3064 = vunpack.c.l.b16 %v1634
    %v3065 = vunpack.c.h.b16 %v1634
    %v3066 = vunpack.c.l.b16 %v1635
    %v3067 = vunpack.c.h.b16 %v1635
    %v3068 = vunpack.c.l.b16 %v1636
    %v3069 = vunpack.c.h.b16 %v1636
    %v3070 = vunpack.c.l.b16 %v1637
    %v3071 = vunpack.c.h.b16 %v1637
    %v3072 = vunpack.c.l.b16 %v1638
    %v3073 = vunpack.c.h.b16 %v1638
    %v3074 = vunpack.c.l.b16 %v1639
    %v3075 = vunpack.c.h.b16 %v1639
    %v3076 = vunpack.c.l.b16 %v1640
    %v3077 = vunpack.c.h.b16 %v1640
    %v3078 = vunpack.c.l.b16 %v1641
    %v3079 = vunpack.c.h.b16 %v1641
    %v3080 = vunpack.c.l.b16 %v1642
    %v3081 = vunpack.c.h.b16 %v1642
    %v3082 = vunpack.c.l.b16 %v1643
    %v3083 = vunpack.c.h.b16 %v1643
    %v3084 = vunpack.c.l.b16 %v1644
    %v3085 = vunpack.c.h.b16 %v1644
    %v3086 = vunpack.c.l.b16 %v1645
    %v3087 = vunpack.c.h.b16 %v1645
    %v3088 = vunpack.c.l.b16 %v1646
    %v3089 = vunpack.c.h.b16 %v1646
    %v3090 = vunpack.c.l.b16 %v1647
    %v3091 = vunpack.c.h.b16 %v1647
    %v3092 = vunpack.c.l.b16 %v1648
    %v3093 = vunpack.c.h.b16 %v1648
    %v3094 = vunpack.c.l.b16 %v1649
    %v3095 = vunpack.c.h.b16 %v1649
    %v3096 = vunpack.c.l.b16 %v1650
    %v3097 = vunpack.c.h.b16 %v1650
    %v3098 = vunpack.c.l.b16 %v1651
    %v3099 = vunpack.c.h.b16 %v1651
    %v3100 = vunpack.c.l.b16 %v1652
    %v3101 = vunpack.c.h.b16 %v1652
    %v3102 = vunpack.c.l.b16 %v1653
    %v3103 = vunpack.c.h.b16 %v1653
    %v3104 = vunpack.c.l.b16 %v1654
    %v3105 = vunpack.c.h.b16 %v1654
    %v3106 = vunpack.c.l.b16 %v1655
    %v3107 = vunpack.c.h.b16 %v1655
    %v3108 = vunpack.c.l.b16 %v1656
    %v3109 = vunpack.c.h.b16 %v1656
    %v3110 = vunpack.c.l.b16 %v1657
    %v3111 = vunpack.c.h.b16 %v1657
    %v3112 = vunpack.c.l.b16 %v1658
    %v3113 = vunpack.c.h.b16 %v1658
    %v3114 = vunpack.c.l.b16 %v1659
    %v3115 = vunpack.c.h.b16 %v1659
    %v3116 = vunpack.c.l.b16 %v1660
    %v3117 = vunpack.c.h.b16 %v1660
    %v3118 = vunpack.c.l.b16 %v1661
    %v3119 = vunpack.c.h.b16 %v1661
    %v3120 = vunpack.c.l.b16 %v1662
    %v3121 = vunpack.c.h.b16 %v1662
    %v3122 = vunpack.c.l.b16 %v1663
    %v3123 = vunpack.c.h.b16 %v1663
    %v3124 = vunpack.c.l.b16 %v1664
    %v3125 = vunpack.c.h.b16 %v1664
    %v3126 = vunpack.c.l.b16 %v1665
    %v3127 = vunpack.c.h.b16 %v1665
    %v3128 = vunpack.c.l.b16 %v1666
    %v3129 = vunpack.c.h.b16 %v1666
    %v3130 = vunpack.c.l.b16 %v1667
    %v3131 = vunpack.c.h.b16 %v1667
    %v3132 = vunpack.c.l.b16 %v1668
    %v3133 = vunpack.c.h.b16 %v1668
    %v3134 = vunpack.c.l.b16 %v1669
    %v3135 = vunpack.c.h.b16 %v1669
    %v3136 = vunpack.c.l.b16 %v1670
    %v3137 = vunpack.c.h.b16 %v1670
    %v3138 = vunpack.c.l.b16 %v1671
    %v3139 = vunpack.c.h.b16 %v1671
    %v3140 = vunpack.c.l.b16 %v1672
    %v3141 = vunpack.c.h.b16 %v1672
    %v3142 = vunpack.c.l.b16 %v1673
    %v3143 = vunpack.c.h.b16 %v1673
    %v3144 = vunpack.c.l.b16 %v1674
    %v3145 = vunpack.c.h.b16 %v1674
    %v3146 = vunpack.c.l.b16 %v1675
    %v3147 = vunpack.c.h.b16 %v1675
    %v3148 = vunpack.c.l.b16 %v1676
    %v3149 = vunpack.c.h.b16 %v1676
    %v3150 = vunpack.c.l.b16 %v1677
    %v3151 = vunpack.c.h.b16 %v1677
    %v3152 = vunpack.c.l.b16 %v1678
    %v3153 = vunpack.c.h.b16 %v1678
    %v3154 = vunpack.c.l.b16 %v1679
    %v3155 = vunpack.c.h.b16 %v1679
    %v3156 = vunpack.c.l.b16 %v1680
    %v3157 = vunpack.c.h.b16 %v1680
    %v3158 = vunpack.c.l.b16 %v1681
    %v3159 = vunpack.c.h.b16 %v1681
    %v3160 = vunpack.c.l.b16 %v1682
    %v3161 = vunpack.c.h.b16 %v1682
    %v3162 = vunpack.c.l.b16 %v1683
    %v3163 = vunpack.c.h.b16 %v1683
    %v3164 = vunpack.c.l.b16 %v1684
    %v3165 = vunpack.c.h.b16 %v1684
    %v3166 = vunpack.c.l.b16 %v1685
    %v3167 = vunpack.c.h.b16 %v1685
    %v3168 = vunpack.c.l.b16 %v1686
    %v3169 = vunpack.c.h.b16 %v1686
    %v3170 = vunpack.c.l.b16 %v1687
    %v3171 = vunpack.c.h.b16 %v1687
    %v3172 = vunpack.c.l.b16 %v1688
    %v3173 = vunpack.c.h.b16 %v1688
    %v3174 = vunpack.c.l.b16 %v1689
    %v3175 = vunpack.c.h.b16 %v1689
    %v3176 = vunpack.c.l.b16 %v1690
    %v3177 = vunpack.c.h.b16 %v1690
    %v3178 = vunpack.c.l.b16 %v1691
    %v3179 = vunpack.c.h.b16 %v1691
    %v3180 = vunpack.c.l.b16 %v1692
    %v3181 = vunpack.c.h.b16 %v1692
    %v3182 = vunpack.c.l.b16 %v1693
    %v3183 = vunpack.c.h.b16 %v1693
    %v3184 = vunpack.c.l.b16 %v1694
    %v3185 = vunpack.c.h.b16 %v1694
    %v3186 = vunpack.c.l.b16 %v1695
    %v3187 = vunpack.c.h.b16 %v1695
    %v3188 = vunpack.c.l.b16 %v1696
    %v3189 = vunpack.c.h.b16 %v1696
    %v3190 = vunpack.c.l.b16 %v1697
    %v3191 = vunpack.c.h.b16 %v1697
    %v3192 = vunpack.c.l.b16 %v1698
    %v3193 = vunpack.c.h.b16 %v1698
    %v3194 = vunpack.c.l.b16 %v1699
    %v3195 = vunpack.c.h.b16 %v1699
    %v3196 = vunpack.c.l.b16 %v1700
    %v3197 = vunpack.c.h.b16 %v1700
    %v3198 = vunpack.c.l.b16 %v1701
    %v3199 = vunpack.c.h.b16 %v1701
    %v3200 = vunpack.c.l.b16 %v1702
    %v3201 = vunpack.c.h.b16 %v1702
    %v3202 = vunpack.c.l.b16 %v1703
    %v3203 = vunpack.c.h.b16 %v1703
    %v3204 = vunpack.c.l.b16 %v1704
    %v3205 = vunpack.c.h.b16 %v1704
    %v3206 = vunpack.c.l.b16 %v1705
    %v3207 = vunpack.c.h.b16 %v1705
    %v3208 = vunpack.c.l.b16 %v1706
    %v3209 = vunpack.c.h.b16 %v1706
    %v3210 = vunpack.c.l.b16 %v1707
    %v3211 = vunpack.c.h.b16 %v1707
    %v3212 = vunpack.c.l.b16 %v1708
    %v3213 = vunpack.c.h.b16 %v1708
    %v3214 = vunpack.c.l.b16 %v1709
    %v3215 = vunpack.c.h.b16 %v1709
    %v3216 = vunpack.c.l.b16 %v1710
    %v3217 = vunpack.c.h.b16 %v1710
    %v3218 = vunpack.c.l.b16 %v1711
    %v3219 = vunpack.c.h.b16 %v1711
    %v3220 = vunpack.c.l.b16 %v1712
    %v3221 = vunpack.c.h.b16 %v1712
    %v3222 = vunpack.c.l.b16 %v1713
    %v3223 = vunpack.c.h.b16 %v1713
    %v3224 = vunpack.c.l.b16 %v1714
    %v3225 = vunpack.c.h.b16 %v1714
    %v3226 = vunpack.c.l.b16 %v1715
    %v3227 = vunpack.c.h.b16 %v1715
    %v3228 = vunpack.c.l.b16 %v1716
    %v3229 = vunpack.c.h.b16 %v1716
    %v3230 = vunpack.c.l.b16 %v1717
    %v3231 = vunpack.c.h.b16 %v1717
    %v3232 = vunpack.c.l.b16 %v1718
    %v3233 = vunpack.c.h.b16 %v1718
    %v3234 = vunpack.c.l.b16 %v1719
    %v3235 = vunpack.c.h.b16 %v1719
    %v3236 = vunpack.c.l.b16 %v1720
    %v3237 = vunpack.c.h.b16 %v1720
    %v3238 = vunpack.c.l.b16 %v1721
    %v3239 = vunpack.c.h.b16 %v1721
    %v3240 = vunpack.c.l.b16 %v1722
    %v3241 = vunpack.c.h.b16 %v1722
    %v3242 = vunpack.c.l.b16 %v1723
    %v3243 = vunpack.c.h.b16 %v1723
    %v3244 = vunpack.c.l.b16 %v1724
    %v3245 = vunpack.c.h.b16 %v1724
    %v3246 = vunpack.c.l.b16 %v1725
    %v3247 = vunpack.c.h.b16 %v1725
    %v3248 = vunpack.c.l.b16 %v1726
    %v3249 = vunpack.c.h.b16 %v1726
    %v3250 = vunpack.c.l.b16 %v1727
    %v3251 = vunpack.c.h.b16 %v1727
    %v3252 = vunpack.c.l.b16 %v1728
    %v3253 = vunpack.c.h.b16 %v1728
    %v3254 = vunpack.c.l.b16 %v1729
    %v3255 = vunpack.c.h.b16 %v1729
    %v3256 = vunpack.c.l.b16 %v1730
    %v3257 = vunpack.c.h.b16 %v1730
    %v3258 = vunpack.c.l.b16 %v1731
    %v3259 = vunpack.c.h.b16 %v1731
    %v3260 = vunpack.c.l.b16 %v1732
    %v3261 = vunpack.c.h.b16 %v1732
    %v3262 = vunpack.c.l.b16 %v1733
    %v3263 = vunpack.c.h.b16 %v1733
    %v3264 = vunpack.c.l.b16 %v1734
    %v3265 = vunpack.c.h.b16 %v1734
    %v3266 = vunpack.c.l.b16 %v1735
    %v3267 = vunpack.c.h.b16 %v1735
    %v3268 = vunpack.c.l.b16 %v1736
    %v3269 = vunpack.c.h.b16 %v1736
    %v3270 = vunpack.c.l.b16 %v1737
    %v3271 = vunpack.c.h.b16 %v1737
    %v3272 = vunpack.c.l.b16 %v1738
    %v3273 = vunpack.c.h.b16 %v1738
    %v3274 = vunpack.c.l.b16 %v1739
    %v3275 = vunpack.c.h.b16 %v1739
    %v3276 = vunpack.c.l.b16 %v1740
    %v3277 = vunpack.c.h.b16 %v1740
    %v3278 = vunpack.c.l.b16 %v1741
    %v3279 = vunpack.c.h.b16 %v1741
    %v3280 = vunpack.c.l.b16 %v1742
    %v3281 = vunpack.c.h.b16 %v1742
    %v3282 = vunpack.c.l.b16 %v1743
    %v3283 = vunpack.c.h.b16 %v1743
    %v3284 = vunpack.c.l.b16 %v1744
    %v3285 = vunpack.c.h.b16 %v1744
    %v3286 = vunpack.c.l.b16 %v1745
    %v3287 = vunpack.c.h.b16 %v1745
    %v3288 = vunpack.c.l.b16 %v1746
    %v3289 = vunpack.c.h.b16 %v1746
    %v3290 = vunpack.c.l.b16 %v1747
    %v3291 = vunpack.c.h.b16 %v1747
    %v3292 = vunpack.c.l.b16 %v1748
    %v3293 = vunpack.c.h.b16 %v1748
    %v3294 = vunpack.c.l.b16 %v1749
    %v3295 = vunpack.c.h.b16 %v1749
    %v3296 = vunpack.c.l.b16 %v1750
    %v3297 = vunpack.c.h.b16 %v1750
    %v3298 = vunpack.c.l.b16 %v1751
    %v3299 = vunpack.c.h.b16 %v1751
    %v3300 = vunpack.c.l.b16 %v1752
    %v3301 = vunpack.c.h.b16 %v1752
    %v3302 = vunpack.c.l.b16 %v1753
    %v3303 = vunpack.c.h.b16 %v1753
    %v3304 = vunpack.c.l.b16 %v1754
    %v3305 = vunpack.c.h.b16 %v1754
    %v3306 = vunpack.c.l.b16 %v1755
    %v3307 = vunpack.c.h.b16 %v1755
    %v3308 = vunpack.c.l.b16 %v1756
    %v3309 = vunpack.c.h.b16 %v1756
    %v3310 = vunpack.c.l.b16 %v1757
    %v3311 = vunpack.c.h.b16 %v1757
    %v3312 = vpack.c.b16 %v2296, %v2288
    %v3313 = vpack.c.b16 %v2297, %v2289
    %v3314 = vpack.c.b16 %v2298, %v2290
    %v3315 = vpack.c.b16 %v2299, %v2291
    %v3316 = vpack.c.b16 %v2300, %v2292
    %v3317 = vpack.c.b16 %v2301, %v2293
    %v3318 = vpack.c.b16 %v2302, %v2294
    %v3319 = vpack.c.b16 %v2303, %v2295
    %v3320 = vpack.c.b16 %v2312, %v2304
    %v3321 = vpack.c.b16 %v2313, %v2305
    %v3322 = vpack.c.b16 %v2314, %v2306
    %v3323 = vpack.c.b16 %v2315, %v2307
    %v3324 = vpack.c.b16 %v2316, %v2308
    %v3325 = vpack.c.b16 %v2317, %v2309
    %v3326 = vpack.c.b16 %v2318, %v2310
    %v3327 = vpack.c.b16 %v2319, %v2311
    %v3328 = vpack.c.b16 %v2328, %v2320
    %v3329 = vpack.c.b16 %v2329, %v2321
    %v3330 = vpack.c.b16 %v2330, %v2322
    %v3331 = vpack.c.b16 %v2331, %v2323
    %v3332 = vpack.c.b16 %v2332, %v2324
    %v3333 = vpack.c.b16 %v2333, %v2325
    %v3334 = vpack.c.b16 %v2334, %v2326
    %v3335 = vpack.c.b16 %v2335, %v2327
    %v3336 = vpack.c.b16 %v2344, %v2336
    %v3337 = vpack.c.b16 %v2345, %v2337
    %v3338 = vpack.c.b16 %v2346, %v2338
    %v3339 = vpack.c.b16 %v2347, %v2339
    %v3340 = vpack.c.b16 %v2348, %v2340
    %v3341 = vpack.c.b16 %v2349, %v2341
    %v3342 = vpack.c.b16 %v2350, %v2342
    %v3343 = vpack.c.b16 %v2351, %v2343
    %v3344 = vpack.c.b16 %v2360, %v2352
    %v3345 = vpack.c.b16 %v2361, %v2353
    %v3346 = vpack.c.b16 %v2362, %v2354
    %v3347 = vpack.c.b16 %v2363, %v2355
    %v3348 = vpack.c.b16 %v2364, %v2356
    %v3349 = vpack.c.b16 %v2365, %v2357
    %v3350 = vpack.c.b16 %v2366, %v2358
    %v3351 = vpack.c.b16 %v2367, %v2359
    %v3352 = vpack.c.b16 %v2376, %v2368
    %v3353 = vpack.c.b16 %v2377, %v2369
    %v3354 = vpack.c.b16 %v2378, %v2370
    %v3355 = vpack.c.b16 %v2379, %v2371
    %v3356 = vpack.c.b16 %v2380, %v2372
    %v3357 = vpack.c.b16 %v2381, %v2373
    %v3358 = vpack.c.b16 %v2382, %v2374
    %v3359 = vpack.c.b16 %v2383, %v2375
    %v3360 = vpack.c.b16 %v2392, %v2384
    %v3361 = vpack.c.b16 %v2393, %v2385
    %v3362 = vpack.c.b16 %v2394, %v2386
    %v3363 = vpack.c.b16 %v2395, %v2387
    %v3364 = vpack.c.b16 %v2396, %v2388
    %v3365 = vpack.c.b16 %v2397, %v2389
    %v3366 = vpack.c.b16 %v2398, %v2390
    %v3367 = vpack.c.b16 %v2399, %v2391
    %v3368 = vpack.c.b16 %v2408, %v2400
    %v3369 = vpack.c.b16 %v2409, %v2401
    %v3370 = vpack.c.b16 %v2410, %v2402
    %v3371 = vpack.c.b16 %v2411, %v2403
    %v3372 = vpack.c.b16 %v2412, %v2404
    %v3373 = vpack.c.b16 %v2413, %v2405
    %v3374 = vpack.c.b16 %v2414, %v2406
    %v3375 = vpack.c.b16 %v2415, %v2407
    %v3376 = vpack.c.b16 %v2424, %v2416
    %v3377 = vpack.c.b16 %v2425, %v2417
    %v3378 = vpack.c.b16 %v2426, %v2418
    %v3379 = vpack.c.b16 %v2427, %v2419
    %v3380 = vpack.c.b16 %v2428, %v2420
    %v3381 = vpack.c.b16 %v2429, %v2421
    %v3382 = vpack.c.b16 %v2430, %v2422
    %v3383 = vpack.c.b16 %v2431, %v2423
    %v3384 = vpack.c.b16 %v2440, %v2432
    %v3385 = vpack.c.b16 %v2441, %v2433
    %v3386 = vpack.c.b16 %v2442, %v2434
    %v3387 = vpack.c.b16 %v2443, %v2435
    %v3388 = vpack.c.b16 %v2444, %v2436
    %v3389 = vpack.c.b16 %v2445, %v2437
    %v3390 = vpack.c.b16 %v2446, %v2438
    %v3391 = vpack.c.b16 %v2447, %v2439
    %v3392 = vpack.c.b16 %v2456, %v2448
    %v3393 = vpack.c.b16 %v2457, %v2449
    %v3394 = vpack.c.b16 %v2458, %v2450
    %v3395 = vpack.c.b16 %v2459, %v2451
    %v3396 = vpack.c.b16 %v2460, %v2452
    %v3397 = vpack.c.b16 %v2461, %v2453
    %v3398 = vpack.c.b16 %v2462, %v2454
    %v3399 = vpack.c.b16 %v2463, %v2455
    %v3400 = vpack.c.b16 %v2472, %v2464
    %v3401 = vpack.c.b16 %v2473, %v2465
    %v3402 = vpack.c.b16 %v2474, %v2466
    %v3403 = vpack.c.b16 %v2475, %v2467
    %v3404 = vpack.c.b16 %v2476, %v2468
    %v3405 = vpack.c.b16 %v2477, %v2469
    %v3406 = vpack.c.b16 %v2478, %v2470
    %v3407 = vpack.c.b16 %v2479, %v2471
    %v3408 = vpack.c.b16 %v2488, %v2480
    %v3409 = vpack.c.b16 %v2489, %v2481
    %v3410 = vpack.c.b16 %v2490, %v2482
    %v3411 = vpack.c.b16 %v2491, %v2483
    %v3412 = vpack.c.b16 %v2492, %v2484
    %v3413 = vpack.c.b16 %v2493, %v2485
    %v3414 = vpack.c.b16 %v2494, %v2486
    %v3415 = vpack.c.b16 %v2495, %v2487
    %v3416 = vpack.c.b16 %v2504, %v2496
    %v3417 = vpack.c.b16 %v2505, %v2497
    %v3418 = vpack.c.b16 %v2506, %v2498
    %v3419 = vpack.c.b16 %v2507, %v2499
    %v3420 = vpack.c.b16 %v2508, %v2500
    %v3421 = vpack.c.b16 %v2509, %v2501
    %v3422 = vpack.c.b16 %v2510, %v2502
    %v3423 = vpack.c.b16 %v2511, %v2503
    %v3424 = vpack.c.b16 %v2520, %v2512
    %v3425 = vpack.c.b16 %v2521, %v2513
    %v3426 = vpack.c.b16 %v2522, %v2514
    %v3427 = vpack.c.b16 %v2523, %v2515
    %v3428 = vpack.c.b16 %v2524, %v2516
    %v3429 = vpack.c.b16 %v2525, %v2517
    %v3430 = vpack.c.b16 %v2526, %v2518
    %v3431 = vpack.c.b16 %v2527, %v2519
    %v3432 = vpack.c.b16 %v2536, %v2528
    %v3433 = vpack.c.b16 %v2537, %v2529
    %v3434 = vpack.c.b16 %v2538, %v2530
    %v3435 = vpack.c.b16 %v2539, %v2531
    %v3436 = vpack.c.b16 %v2540, %v2532
    %v3437 = vpack.c.b16 %v2541, %v2533
    %v3438 = vpack.c.b16 %v2542, %v2534
    %v3439 = vpack.c.b16 %v2543, %v2535
    %v3440 = vpack.c.b16 %v2552, %v2544
    %v3441 = vpack.c.b16 %v2553, %v2545
    %v3442 = vpack.c.b16 %v2554, %v2546
    %v3443 = vpack.c.b16 %v2555, %v2547
    %v3444 = vpack.c.b16 %v2556, %v2548
    %v3445 = vpack.c.b16 %v2557, %v2549
    %v3446 = vpack.c.b16 %v2558, %v2550
    %v3447 = vpack.c.b16 %v2559, %v2551
    %v3448 = vpack.c.b16 %v2568, %v2560
    %v3449 = vpack.c.b16 %v2569, %v2561
    %v3450 = vpack.c.b16 %v2570, %v2562
    %v3451 = vpack.c.b16 %v2571, %v2563
    %v3452 = vpack.c.b16 %v2572, %v2564
    %v3453 = vpack.c.b16 %v2573, %v2565
    %v3454 = vpack.c.b16 %v2574, %v2566
    %v3455 = vpack.c.b16 %v2575, %v2567
    %v3456 = vpack.c.b16 %v2584, %v2576
    %v3457 = vpack.c.b16 %v2585, %v2577
    %v3458 = vpack.c.b16 %v2586, %v2578
    %v3459 = vpack.c.b16 %v2587, %v2579
    %v3460 = vpack.c.b16 %v2588, %v2580
    %v3461 = vpack.c.b16 %v2589, %v2581
    %v3462 = vpack.c.b16 %v2590, %v2582
    %v3463 = vpack.c.b16 %v2591, %v2583
    %v3464 = vpack.c.b16 %v2600, %v2592
    %v3465 = vpack.c.b16 %v2601, %v2593
    %v3466 = vpack.c.b16 %v2602, %v2594
    %v3467 = vpack.c.b16 %v2603, %v2595
    %v3468 = vpack.c.b16 %v2604, %v2596
    %v3469 = vpack.c.b16 %v2605, %v2597
    %v3470 = vpack.c.b16 %v2606, %v2598
    %v3471 = vpack.c.b16 %v2607, %v2599
    %v3472 = vpack.c.b16 %v2616, %v2608
    %v3473 = vpack.c.b16 %v2617, %v2609
    %v3474 = vpack.c.b16 %v2618, %v2610
    %v3475 = vpack.c.b16 %v2619, %v2611
    %v3476 = vpack.c.b16 %v2620, %v2612
    %v3477 = vpack.c.b16 %v2621, %v2613
    %v3478 = vpack.c.b16 %v2622, %v2614
    %v3479 = vpack.c.b16 %v2623, %v2615
    %v3480 = vpack.c.b16 %v2632, %v2624
    %v3481 = vpack.c.b16 %v2633, %v2625
    %v3482 = vpack.c.b16 %v2634, %v2626
    %v3483 = vpack.c.b16 %v2635, %v2627
    %v3484 = vpack.c.b16 %v2636, %v2628
    %v3485 = vpack.c.b16 %v2637, %v2629
    %v3486 = vpack.c.b16 %v2638, %v2630
    %v3487 = vpack.c.b16 %v2639, %v2631
    %v3488 = vpack.c.b16 %v2648, %v2640
    %v3489 = vpack.c.b16 %v2649, %v2641
    %v3490 = vpack.c.b16 %v2650, %v2642
    %v3491 = vpack.c.b16 %v2651, %v2643
    %v3492 = vpack.c.b16 %v2652, %v2644
    %v3493 = vpack.c.b16 %v2653, %v2645
    %v3494 = vpack.c.b16 %v2654, %v2646
    %v3495 = vpack.c.b16 %v2655, %v2647
    %v3496 = vpack.c.b16 %v2664, %v2656
    %v3497 = vpack.c.b16 %v2665, %v2657
    %v3498 = vpack.c.b16 %v2666, %v2658
    %v3499 = vpack.c.b16 %v2667, %v2659
    %v3500 = vpack.c.b16 %v2668, %v2660
    %v3501 = vpack.c.b16 %v2669, %v2661
    %v3502 = vpack.c.b16 %v2670, %v2662
    %v3503 = vpack.c.b16 %v2671, %v2663
    %v3504 = vpack.c.b16 %v2680, %v2672
    %v3505 = vpack.c.b16 %v2681, %v2673
    %v3506 = vpack.c.b16 %v2682, %v2674
    %v3507 = vpack.c.b16 %v2683, %v2675
    %v3508 = vpack.c.b16 %v2684, %v2676
    %v3509 = vpack.c.b16 %v2685, %v2677
    %v3510 = vpack.c.b16 %v2686, %v2678
    %v3511 = vpack.c.b16 %v2687, %v2679
    %v3512 = vpack.c.b16 %v2696, %v2688
    %v3513 = vpack.c.b16 %v2697, %v2689
    %v3514 = vpack.c.b16 %v2698, %v2690
    %v3515 = vpack.c.b16 %v2699, %v2691
    %v3516 = vpack.c.b16 %v2700, %v2692
    %v3517 = vpack.c.b16 %v2701, %v2693
    %v3518 = vpack.c.b16 %v2702, %v2694
    %v3519 = vpack.c.b16 %v2703, %v2695
    %v3520 = vpack.c.b16 %v2712, %v2704
    %v3521 = vpack.c.b16 %v2713, %v2705
    %v3522 = vpack.c.b16 %v2714, %v2706
    %v3523 = vpack.c.b16 %v2715, %v2707
    %v3524 = vpack.c.b16 %v2716, %v2708
    %v3525 = vpack.c.b16 %v2717, %v2709
    %v3526 = vpack.c.b16 %v2718, %v2710
    %v3527 = vpack.c.b16 %v2719, %v2711
    %v3528 = vpack.c.b16 %v2728, %v2720
    %v3529 = vpack.c.b16 %v2729, %v2721
    %v3530 = vpack.c.b16 %v2730, %v2722
    %v3531 = vpack.c.b16 %v2731, %v2723
    %v3532 = vpack.c.b16 %v2732, %v2724
    %v3533 = vpack.c.b16 %v2733, %v2725
    %v3534 = vpack.c.b16 %v2734, %v2726
    %v3535 = vpack.c.b16 %v2735, %v2727
    %v3536 = vpack.c.b16 %v2744, %v2736
    %v3537 = vpack.c.b16 %v2745, %v2737
    %v3538 = vpack.c.b16 %v2746, %v2738
    %v3539 = vpack.c.b16 %v2747, %v2739
    %v3540 = vpack.c.b16 %v2748, %v2740
    %v3541 = vpack.c.b16 %v2749, %v2741
    %v3542 = vpack.c.b16 %v2750, %v2742
    %v3543 = vpack.c.b16 %v2751, %v2743
    %v3544 = vpack.c.b16 %v2760, %v2752
    %v3545 = vpack.c.b16 %v2761, %v2753
    %v3546 = vpack.c.b16 %v2762, %v2754
    %v3547 = vpack.c.b16 %v2763, %v2755
    %v3548 = vpack.c.b16 %v2764, %v2756
    %v3549 = vpack.c.b16 %v2765, %v2757
    %v3550 = vpack.c.b16 %v2766, %v2758
    %v3551 = vpack.c.b16 %v2767, %v2759
    %v3552 = vpack.c.b16 %v2776, %v2768
    %v3553 = vpack.c.b16 %v2777, %v2769
    %v3554 = vpack.c.b16 %v2778, %v2770
    %v3555 = vpack.c.b16 %v2779, %v2771
    %v3556 = vpack.c.b16 %v2780, %v2772
    %v3557 = vpack.c.b16 %v2781, %v2773
    %v3558 = vpack.c.b16 %v2782, %v2774
    %v3559 = vpack.c.b16 %v2783, %v2775
    %v3560 = vpack.c.b16 %v2792, %v2784
    %v3561 = vpack.c.b16 %v2793, %v2785
    %v3562 = vpack.c.b16 %v2794, %v2786
    %v3563 = vpack.c.b16 %v2795, %v2787
    %v3564 = vpack.c.b16 %v2796, %v2788
    %v3565 = vpack.c.b16 %v2797, %v2789
    %v3566 = vpack.c.b16 %v2798, %v2790
    %v3567 = vpack.c.b16 %v2799, %v2791
    %v3568 = vpack.c.b16 %v2808, %v2800
    %v3569 = vpack.c.b16 %v2809, %v2801
    %v3570 = vpack.c.b16 %v2810, %v2802
    %v3571 = vpack.c.b16 %v2811, %v2803
    %v3572 = vpack.c.b16 %v2812, %v2804
    %v3573 = vpack.c.b16 %v2813, %v2805
    %v3574 = vpack.c.b16 %v2814, %v2806
    %v3575 = vpack.c.b16 %v2815, %v2807
    %v3576 = vpack.c.b16 %v2824, %v2816
    %v3577 = vpack.c.b16 %v2825, %v2817
    %v3578 = vpack.c.b16 %v2826, %v2818
    %v3579 = vpack.c.b16 %v2827, %v2819
    %v3580 = vpack.c.b16 %v2828, %v2820
    %v3581 = vpack.c.b16 %v2829, %v2821
    %v3582 = vpack.c.b16 %v2830, %v2822
    %v3583 = vpack.c.b16 %v2831, %v2823
    %v3584 = vpack.c.b16 %v2840, %v2832
    %v3585 = vpack.c.b16 %v2841, %v2833
    %v3586 = vpack.c.b16 %v2842, %v2834
    %v3587 = vpack.c.b16 %v2843, %v2835
    %v3588 = vpack.c.b16 %v2844, %v2836
    %v3589 = vpack.c.b16 %v2845, %v2837
    %v3590 = vpack.c.b16 %v2846, %v2838
    %v3591 = vpack.c.b16 %v2847, %v2839
    %v3592 = vpack.c.b16 %v2856, %v2848
    %v3593 = vpack.c.b16 %v2857, %v2849
    %v3594 = vpack.c.b16 %v2858, %v2850
    %v3595 = vpack.c.b16 %v2859, %v2851
    %v3596 = vpack.c.b16 %v2860, %v2852
    %v3597 = vpack.c.b16 %v2861, %v2853
    %v3598 = vpack.c.b16 %v2862, %v2854
    %v3599 = vpack.c.b16 %v2863, %v2855
    %v3600 = vpack.c.b16 %v2872, %v2864
    %v3601 = vpack.c.b16 %v2873, %v2865
    %v3602 = vpack.c.b16 %v2874, %v2866
    %v3603 = vpack.c.b16 %v2875, %v2867
    %v3604 = vpack.c.b16 %v2876, %v2868
    %v3605 = vpack.c.b16 %v2877, %v2869
    %v3606 = vpack.c.b16 %v2878, %v2870
    %v3607 = vpack.c.b16 %v2879, %v2871
    %v3608 = vpack.c.b16 %v2888, %v2880
    %v3609 = vpack.c.b16 %v2889, %v2881
    %v3610 = vpack.c.b16 %v2890, %v2882
    %v3611 = vpack.c.b16 %v2891, %v2883
    %v3612 = vpack.c.b16 %v2892, %v2884
    %v3613 = vpack.c.b16 %v2893, %v2885
    %v3614 = vpack.c.b16 %v2894, %v2886
    %v3615 = vpack.c.b16 %v2895, %v2887
    %v3616 = vpack.c.b16 %v2904, %v2896
    %v3617 = vpack.c.b16 %v2905, %v2897
    %v3618 = vpack.c.b16 %v2906, %v2898
    %v3619 = vpack.c.b16 %v2907, %v2899
    %v3620 = vpack.c.b16 %v2908, %v2900
    %v3621 = vpack.c.b16 %v2909, %v2901
    %v3622 = vpack.c.b16 %v2910, %v2902
    %v3623 = vpack.c.b16 %v2911, %v2903
    %v3624 = vpack.c.b16 %v2920, %v2912
    %v3625 = vpack.c.b16 %v2921, %v2913
    %v3626 = vpack.c.b16 %v2922, %v2914
    %v3627 = vpack.c.b16 %v2923, %v2915
    %v3628 = vpack.c.b16 %v2924, %v2916
    %v3629 = vpack.c.b16 %v2925, %v2917
    %v3630 = vpack.c.b16 %v2926, %v2918
    %v3631 = vpack.c.b16 %v2927, %v2919
    %v3632 = vpack.c.b16 %v2936, %v2928
    %v3633 = vpack.c.b16 %v2937, %v2929
    %v3634 = vpack.c.b16 %v2938, %v2930
    %v3635 = vpack.c.b16 %v2939, %v2931
    %v3636 = vpack.c.b16 %v2940, %v2932
    %v3637 = vpack.c.b16 %v2941, %v2933
    %v3638 = vpack.c.b16 %v2942, %v2934
    %v3639 = vpack.c.b16 %v2943, %v2935
    %v3640 = vpack.c.b16 %v2952, %v2944
    %v3641 = vpack.c.b16 %v2953, %v2945
    %v3642 = vpack.c.b16 %v2954, %v2946
    %v3643 = vpack.c.b16 %v2955, %v2947
    %v3644 = vpack.c.b16 %v2956, %v2948
    %v3645 = vpack.c.b16 %v2957, %v2949
    %v3646 = vpack.c.b16 %v2958, %v2950
    %v3647 = vpack.c.b16 %v2959, %v2951
    %v3648 = vpack.c.b16 %v2968, %v2960
    %v3649 = vpack.c.b16 %v2969, %v2961
    %v3650 = vpack.c.b16 %v2970, %v2962
    %v3651 = vpack.c.b16 %v2971, %v2963
    %v3652 = vpack.c.b16 %v2972, %v2964
    %v3653 = vpack.c.b16 %v2973, %v2965
    %v3654 = vpack.c.b16 %v2974, %v2966
    %v3655 = vpack.c.b16 %v2975, %v2967
    %v3656 = vpack.c.b16 %v2984, %v2976
    %v3657 = vpack.c.b16 %v2985, %v2977
    %v3658 = vpack.c.b16 %v2986, %v2978
    %v3659 = vpack.c.b16 %v2987, %v2979
    %v3660 = vpack.c.b16 %v2988, %v2980
    %v3661 = vpack.c.b16 %v2989, %v2981
    %v3662 = vpack.c.b16 %v2990, %v2982
    %v3663 = vpack.c.b16 %v2991, %v2983
    %v3664 = vpack.c.b16 %v3000, %v2992
    %v3665 = vpack.c.b16 %v3001, %v2993
    %v3666 = vpack.c.b16 %v3002, %v2994
    %v3667 = vpack.c.b16 %v3003, %v2995
    %v3668 = vpack.c.b16 %v3004, %v2996
    %v3669 = vpack.c.b16 %v3005, %v2997
    %v3670 = vpack.c.b16 %v3006, %v2998
    %v3671 = vpack.c.b16 %v3007, %v2999
    %v3672 = vpack.c.b16 %v3016, %v3008
    %v3673 = vpack.c.b16 %v3017, %v3009
    %v3674 = vpack.c.b16 %v3018, %v3010
    %v3675 = vpack.c.b16 %v3019, %v3011
    %v3676 = vpack.c.b16 %v3020, %v3012
    %v3677 = vpack.c.b16 %v3021, %v3013
    %v3678 = vpack.c.b16 %v3022, %v3014
    %v3679 = vpack.c.b16 %v3023, %v3015
    %v3680 = vpack.c.b16 %v3032, %v3024
    %v3681 = vpack.c.b16 %v3033, %v3025
    %v3682 = vpack.c.b16 %v3034, %v3026
    %v3683 = vpack.c.b16 %v3035, %v3027
    %v3684 = vpack.c.b16 %v3036, %v3028
    %v3685 = vpack.c.b16 %v3037, %v3029
    %v3686 = vpack.c.b16 %v3038, %v3030
    %v3687 = vpack.c.b16 %v3039, %v3031
    %v3688 = vpack.c.b16 %v3048, %v3040
    %v3689 = vpack.c.b16 %v3049, %v3041
    %v3690 = vpack.c.b16 %v3050, %v3042
    %v3691 = vpack.c.b16 %v3051, %v3043
    %v3692 = vpack.c.b16 %v3052, %v3044
    %v3693 = vpack.c.b16 %v3053, %v3045
    %v3694 = vpack.c.b16 %v3054, %v3046
    %v3695 = vpack.c.b16 %v3055, %v3047
    %v3696 = vpack.c.b16 %v3064, %v3056
    %v3697 = vpack.c.b16 %v3065, %v3057
    %v3698 = vpack.c.b16 %v3066, %v3058
    %v3699 = vpack.c.b16 %v3067, %v3059
    %v3700 = vpack.c.b16 %v3068, %v3060
    %v3701 = vpack.c.b16 %v3069, %v3061
    %v3702 = vpack.c.b16 %v3070, %v3062
    %v3703 = vpack.c.b16 %v3071, %v3063
    %v3704 = vpack.c.b16 %v3080, %v3072
    %v3705 = vpack.c.b16 %v3081, %v3073
    %v3706 = vpack.c.b16 %v3082, %v3074
    %v3707 = vpack.c.b16 %v3083, %v3075
    %v3708 = vpack.c.b16 %v3084, %v3076
    %v3709 = vpack.c.b16 %v3085, %v3077
    %v3710 = vpack.c.b16 %v3086, %v3078
    %v3711 = vpack.c.b16 %v3087, %v3079
    %v3712 = vpack.c.b16 %v3096, %v3088
    %v3713 = vpack.c.b16 %v3097, %v3089
    %v3714 = vpack.c.b16 %v3098, %v3090
    %v3715 = vpack.c.b16 %v3099, %v3091
    %v3716 = vpack.c.b16 %v3100, %v3092
    %v3717 = vpack.c.b16 %v3101, %v3093
    %v3718 = vpack.c.b16 %v3102, %v3094
    %v3719 = vpack.c.b16 %v3103, %v3095
    %v3720 = vpack.c.b16 %v3112, %v3104
    %v3721 = vpack.c.b16 %v3113, %v3105
    %v3722 = vpack.c.b16 %v3114, %v3106
    %v3723 = vpack.c.b16 %v3115, %v3107
    %v3724 = vpack.c.b16 %v3116, %v3108
    %v3725 = vpack.c.b16 %v3117, %v3109
    %v3726 = vpack.c.b16 %v3118, %v3110
    %v3727 = vpack.c.b16 %v3119, %v3111
    %v3728 = vpack.c.b16 %v3128, %v3120
    %v3729 = vpack.c.b16 %v3129, %v3121
    %v3730 = vpack.c.b16 %v3130, %v3122
    %v3731 = vpack.c.b16 %v3131, %v3123
    %v3732 = vpack.c.b16 %v3132, %v3124
    %v3733 = vpack.c.b16 %v3133, %v3125
    %v3734 = vpack.c.b16 %v3134, %v3126
    %v3735 = vpack.c.b16 %v3135, %v3127
    %v3736 = vpack.c.b16 %v3144, %v3136
    %v3737 = vpack.c.b16 %v3145, %v3137
    %v3738 = vpack.c.b16 %v3146, %v3138
    %v3739 = vpack.c.b16 %v3147, %v3139
    %v3740 = vpack.c.b16 %v3148, %v3140
    %v3741 = vpack.c.b16 %v3149, %v3141
    %v3742 = vpack.c.b16 %v3150, %v3142
    %v3743 = vpack.c.b16 %v3151, %v3143
    %v3744 = vpack.c.b16 %v3160, %v3152
    %v3745 = vpack.c.b16 %v3161, %v3153
    %v3746 = vpack.c.b16 %v3162, %v3154
    %v3747 = vpack.c.b16 %v3163, %v3155
    %v3748 = vpack.c.b16 %v3164, %v3156
    %v3749 = vpack.c.b16 %v3165, %v3157
    %v3750 = vpack.c.b16 %v3166, %v3158
    %v3751 = vpack.c.b16 %v3167, %v3159
    %v3752 = vpack.c.b16 %v3176, %v3168
    %v3753 = vpack.c.b16 %v3177, %v3169
    %v3754 = vpack.c.b16 %v3178, %v3170
    %v3755 = vpack.c.b16 %v3179, %v3171
    %v3756 = vpack.c.b16 %v3180, %v3172
    %v3757 = vpack.c.b16 %v3181, %v3173
    %v3758 = vpack.c.b16 %v3182, %v3174
    %v3759 = vpack.c.b16 %v3183, %v3175
    %v3760 = vpack.c.b16 %v3192, %v3184
    %v3761 = vpack.c.b16 %v3193, %v3185
    %v3762 = vpack.c.b16 %v3194, %v3186
    %v3763 = vpack.c.b16 %v3195, %v3187
    %v3764 = vpack.c.b16 %v3196, %v3188
    %v3765 = vpack.c.b16 %v3197, %v3189
    %v3766 = vpack.c.b16 %v3198, %v3190
    %v3767 = vpack.c.b16 %v3199, %v3191
    %v3768 = vpack.c.b16 %v3208, %v3200
    %v3769 = vpack.c.b16 %v3209, %v3201
    %v3770 = vpack.c.b16 %v3210, %v3202
    %v3771 = vpack.c.b16 %v3211, %v3203
    %v3772 = vpack.c.b16 %v3212, %v3204
    %v3773 = vpack.c.b16 %v3213, %v3205
    %v3774 = vpack.c.b16 %v3214, %v3206
    %v3775 = vpack.c.b16 %v3215, %v3207
    %v3776 = vpack.c.b16 %v3224, %v3216
    %v3777 = vpack.c.b16 %v3225, %v3217
    %v3778 = vpack.c.b16 %v3226, %v3218
    %v3779 = vpack.c.b16 %v3227, %v3219
    %v3780 = vpack.c.b16 %v3228, %v3220
    %v3781 = vpack.c.b16 %v3229, %v3221
    %v3782 = vpack.c.b16 %v3230, %v3222
    %v3783 = vpack.c.b16 %v3231, %v3223
    %v3784 = vpack.c.b16 %v3240, %v3232
    %v3785 = vpack.c.b16 %v3241, %v3233
    %v3786 = vpack.c.b16 %v3242, %v3234
    %v3787 = vpack.c.b16 %v3243, %v3235
    %v3788 = vpack.c.b16 %v3244, %v3236
    %v3789 = vpack.c.b16 %v3245, %v3237
    %v3790 = vpack.c.b16 %v3246, %v3238
    %v3791 = vpack.c.b16 %v3247, %v3239
    %v3792 = vpack.c.b16 %v3256, %v3248
    %v3793 = vpack.c.b16 %v3257, %v3249
    %v3794 = vpack.c.b16 %v3258, %v3250
    %v3795 = vpack.c.b16 %v3259, %v3251
    %v3796 = vpack.c.b16 %v3260, %v3252
    %v3797 = vpack.c.b16 %v3261, %v3253
    %v3798 = vpack.c.b16 %v3262, %v3254
    %v3799 = vpack.c.b16 %v3263, %v3255
    %v3800 = vpack.c.b16 %v3272, %v3264
    %v3801 = vpack.c.b16 %v3273, %v3265
    %v3802 = vpack.c.b16 %v3274, %v3266
    %v3803 = vpack.c.b16 %v3275, %v3267
    %v3804 = vpack.c.b16 %v3276, %v3268
    %v3805 = vpack.c.b16 %v3277, %v3269
    %v3806 = vpack.c.b16 %v3278, %v3270
    %v3807 = vpack.c.b16 %v3279, %v3271
    %v3808 = vpack.c.b16 %v3288, %v3280
    %v3809 = vpack.c.b16 %v3289, %v3281
    %v3810 = vpack.c.b16 %v3290, %v3282
    %v3811 = vpack.c.b16 %v3291, %v3283
    %v3812 = vpack.c.b16 %v3292, %v3284
    %v3813 = vpack.c.b16 %v3293, %v3285
    %v3814 = vpack.c.b16 %v3294, %v3286
    %v3815 = vpack.c.b16 %v3295, %v3287
    %v3816 = vpack.c.b16 %v3304, %v3296
    %v3817 = vpack.c.b16 %v3305, %v3297
    %v3818 = vpack.c.b16 %v3306, %v3298
    %v3819 = vpack.c.b16 %v3307, %v3299
    %v3820 = vpack.c.b16 %v3308, %v3300
    %v3821 = vpack.c.b16 %v3309, %v3301
    %v3822 = vpack.c.b16 %v3310, %v3302
    %v3823 = vpack.c.b16 %v3311, %v3303
    %4336 = vmatpush.bf16.msra.mxu0 %v3368
    %4337 = vmatpush.bf16.msra.mxu0 %v3360
    %4338 = vmatpush.bf16.msra.mxu0 %v3352
    %4339 = vmatpush.bf16.msra.mxu0 %v3344
    %4340 = vmatpush.bf16.msra.mxu0 %v3336
    %4341 = vmatpush.bf16.msra.mxu0 %v3328
    %4342 = vmatpush.bf16.msra.mxu0 %v3320
    %4343 = vmatpush.bf16.msra.mxu0 %v3312
    %4344 = vmatmul.bf16.gmra.mxu0 %v1238
    %v4345 = vpop.f32.mrf.mxu0
    %v4346 = vadd.f32 %v1760, %v4345
    %v4347 = vpop.f32.mrf.mxu0
    %v4348 = vadd.f32 %v1760, %v4347
    %4349 = vdwg.mxu0
    %4350 = vmatpush.bf16.msra.mxu0 %v3432
    %4351 = vmatpush.bf16.msra.mxu0 %v3424
    %4352 = vmatpush.bf16.msra.mxu0 %v3416
    %4353 = vmatpush.bf16.msra.mxu0 %v3408
    %4354 = vmatpush.bf16.msra.mxu0 %v3400
    %4355 = vmatpush.bf16.msra.mxu0 %v3392
    %4356 = vmatpush.bf16.msra.mxu0 %v3384
    %4357 = vmatpush.bf16.msra.mxu0 %v3376
    %4358 = vmatmul.bf16.gmra.mxu0 %v1239
    %v4359 = vpop.f32.mrf.mxu0
    %v4360 = vadd.f32 %v4346, %v4359
    %v4361 = vpop.f32.mrf.mxu0
    %v4362 = vadd.f32 %v4348, %v4361
    %4363 = vdwg.mxu0
    %4364 = vmatpush.bf16.msra.mxu0 %v3496
    %4365 = vmatpush.bf16.msra.mxu0 %v3488
    %4366 = vmatpush.bf16.msra.mxu0 %v3480
    %4367 = vmatpush.bf16.msra.mxu0 %v3472
    %4368 = vmatpush.bf16.msra.mxu0 %v3464
    %4369 = vmatpush.bf16.msra.mxu0 %v3456
    %4370 = vmatpush.bf16.msra.mxu0 %v3448
    %4371 = vmatpush.bf16.msra.mxu0 %v3440
    %4372 = vmatmul.bf16.gmra.mxu0 %v1240
    %v4373 = vpop.f32.mrf.mxu0
    %v4374 = vadd.f32 %v4360, %v4373
    %v4375 = vpop.f32.mrf.mxu0
    %v4376 = vadd.f32 %v4362, %v4375
    %4377 = vdwg.mxu0
    %4378 = vmatpush.bf16.msra.mxu0 %v3560
    %4379 = vmatpush.bf16.msra.mxu0 %v3552
    %4380 = vmatpush.bf16.msra.mxu0 %v3544
    %4381 = vmatpush.bf16.msra.mxu0 %v3536
    %4382 = vmatpush.bf16.msra.mxu0 %v3528
    %4383 = vmatpush.bf16.msra.mxu0 %v3520
    %4384 = vmatpush.bf16.msra.mxu0 %v3512
    %4385 = vmatpush.bf16.msra.mxu0 %v3504
    %4386 = vmatmul.bf16.gmra.mxu0 %v1241
    %v4387 = vpop.f32.mrf.mxu0
    %v4388 = vadd.f32 %v4374, %v4387
    %v4389 = vpop.f32.mrf.mxu0
    %v4390 = vadd.f32 %v4376, %v4389
    %4391 = vdwg.mxu0
    %4392 = vmatpush.bf16.msra.mxu0 %v3624
    %4393 = vmatpush.bf16.msra.mxu0 %v3616
    %4394 = vmatpush.bf16.msra.mxu0 %v3608
    %4395 = vmatpush.bf16.msra.mxu0 %v3600
    %4396 = vmatpush.bf16.msra.mxu0 %v3592
    %4397 = vmatpush.bf16.msra.mxu0 %v3584
    %4398 = vmatpush.bf16.msra.mxu0 %v3576
    %4399 = vmatpush.bf16.msra.mxu0 %v3568
    %4400 = vmatmul.bf16.gmra.mxu0 %v1242
    %v4401 = vpop.f32.mrf.mxu0
    %v4402 = vadd.f32 %v4388, %v4401
    %v4403 = vpop.f32.mrf.mxu0
    %v4404 = vadd.f32 %v4390, %v4403
    %4405 = vdwg.mxu0
    %4406 = vmatpush.bf16.msra.mxu0 %v3688
    %4407 = vmatpush.bf16.msra.mxu0 %v3680
    %4408 = vmatpush.bf16.msra.mxu0 %v3672
    %4409 = vmatpush.bf16.msra.mxu0 %v3664
    %4410 = vmatpush.bf16.msra.mxu0 %v3656
    %4411 = vmatpush.bf16.msra.mxu0 %v3648
    %4412 = vmatpush.bf16.msra.mxu0 %v3640
    %4413 = vmatpush.bf16.msra.mxu0 %v3632
    %4414 = vmatmul.bf16.gmra.mxu0 %v1243
    %v4415 = vpop.f32.mrf.mxu0
    %v4416 = vadd.f32 %v4402, %v4415
    %v4417 = vpop.f32.mrf.mxu0
    %v4418 = vadd.f32 %v4404, %v4417
    %4419 = vdwg.mxu0
    %4420 = vmatpush.bf16.msra.mxu0 %v3752
    %4421 = vmatpush.bf16.msra.mxu0 %v3744
    %4422 = vmatpush.bf16.msra.mxu0 %v3736
    %4423 = vmatpush.bf16.msra.mxu0 %v3728
    %4424 = vmatpush.bf16.msra.mxu0 %v3720
    %4425 = vmatpush.bf16.msra.mxu0 %v3712
    %4426 = vmatpush.bf16.msra.mxu0 %v3704
    %4427 = vmatpush.bf16.msra.mxu0 %v3696
    %4428 = vmatmul.bf16.gmra.mxu0 %v1244
    %v4429 = vpop.f32.mrf.mxu0
    %v4430 = vadd.f32 %v4416, %v4429
    %v4431 = vpop.f32.mrf.mxu0
    %v4432 = vadd.f32 %v4418, %v4431
    %4433 = vdwg.mxu0
    %4434 = vmatpush.bf16.msra.mxu0 %v3816
    %4435 = vmatpush.bf16.msra.mxu0 %v3808
    %4436 = vmatpush.bf16.msra.mxu0 %v3800
    %4437 = vmatpush.bf16.msra.mxu0 %v3792
    %4438 = vmatpush.bf16.msra.mxu0 %v3784
    %4439 = vmatpush.bf16.msra.mxu0 %v3776
    %4440 = vmatpush.bf16.msra.mxu0 %v3768
    %4441 = vmatpush.bf16.msra.mxu0 %v3760
    %4442 = vmatmul.bf16.gmra.mxu0 %v1245
    %v4443 = vpop.f32.mrf.mxu0
    %v4444 = vadd.f32 %v4430, %v4443
    %v4445 = vpop.f32.mrf.mxu0
    %v4446 = vadd.f32 %v4432, %v4445
    %4447 = vdwg.mxu0
    %4448 = vmatpush.bf16.msra.mxu0 %v3369
    %4449 = vmatpush.bf16.msra.mxu0 %v3361
    %4450 = vmatpush.bf16.msra.mxu0 %v3353
    %4451 = vmatpush.bf16.msra.mxu0 %v3345
    %4452 = vmatpush.bf16.msra.mxu0 %v3337
    %4453 = vmatpush.bf16.msra.mxu0 %v3329
    %4454 = vmatpush.bf16.msra.mxu0 %v3321
    %4455 = vmatpush.bf16.msra.mxu0 %v3313
    %4456 = vmatmul.bf16.gmra.mxu0 %v1238
    %v4457 = vpop.f32.mrf.mxu0
    %v4458 = vadd.f32 %v1761, %v4457
    %v4459 = vpop.f32.mrf.mxu0
    %v4460 = vadd.f32 %v1761, %v4459
    %4461 = vdwg.mxu0
    %4462 = vmatpush.bf16.msra.mxu0 %v3433
    %4463 = vmatpush.bf16.msra.mxu0 %v3425
    %4464 = vmatpush.bf16.msra.mxu0 %v3417
    %4465 = vmatpush.bf16.msra.mxu0 %v3409
    %4466 = vmatpush.bf16.msra.mxu0 %v3401
    %4467 = vmatpush.bf16.msra.mxu0 %v3393
    %4468 = vmatpush.bf16.msra.mxu0 %v3385
    %4469 = vmatpush.bf16.msra.mxu0 %v3377
    %4470 = vmatmul.bf16.gmra.mxu0 %v1239
    %v4471 = vpop.f32.mrf.mxu0
    %v4472 = vadd.f32 %v4458, %v4471
    %v4473 = vpop.f32.mrf.mxu0
    %v4474 = vadd.f32 %v4460, %v4473
    %4475 = vdwg.mxu0
    %4476 = vmatpush.bf16.msra.mxu0 %v3497
    %4477 = vmatpush.bf16.msra.mxu0 %v3489
    %4478 = vmatpush.bf16.msra.mxu0 %v3481
    %4479 = vmatpush.bf16.msra.mxu0 %v3473
    %4480 = vmatpush.bf16.msra.mxu0 %v3465
    %4481 = vmatpush.bf16.msra.mxu0 %v3457
    %4482 = vmatpush.bf16.msra.mxu0 %v3449
    %4483 = vmatpush.bf16.msra.mxu0 %v3441
    %4484 = vmatmul.bf16.gmra.mxu0 %v1240
    %v4485 = vpop.f32.mrf.mxu0
    %v4486 = vadd.f32 %v4472, %v4485
    %v4487 = vpop.f32.mrf.mxu0
    %v4488 = vadd.f32 %v4474, %v4487
    %4489 = vdwg.mxu0
    %4490 = vmatpush.bf16.msra.mxu0 %v3561
    %4491 = vmatpush.bf16.msra.mxu0 %v3553
    %4492 = vmatpush.bf16.msra.mxu0 %v3545
    %4493 = vmatpush.bf16.msra.mxu0 %v3537
    %4494 = vmatpush.bf16.msra.mxu0 %v3529
    %4495 = vmatpush.bf16.msra.mxu0 %v3521
    %4496 = vmatpush.bf16.msra.mxu0 %v3513
    %4497 = vmatpush.bf16.msra.mxu0 %v3505
    %4498 = vmatmul.bf16.gmra.mxu0 %v1241
    %v4499 = vpop.f32.mrf.mxu0
    %v4500 = vadd.f32 %v4486, %v4499
    %v4501 = vpop.f32.mrf.mxu0
    %v4502 = vadd.f32 %v4488, %v4501
    %4503 = vdwg.mxu0
    %4504 = vmatpush.bf16.msra.mxu0 %v3625
    %4505 = vmatpush.bf16.msra.mxu0 %v3617
    %4506 = vmatpush.bf16.msra.mxu0 %v3609
    %4507 = vmatpush.bf16.msra.mxu0 %v3601
    %4508 = vmatpush.bf16.msra.mxu0 %v3593
    %4509 = vmatpush.bf16.msra.mxu0 %v3585
    %4510 = vmatpush.bf16.msra.mxu0 %v3577
    %4511 = vmatpush.bf16.msra.mxu0 %v3569
    %4512 = vmatmul.bf16.gmra.mxu0 %v1242
    %v4513 = vpop.f32.mrf.mxu0
    %v4514 = vadd.f32 %v4500, %v4513
    %v4515 = vpop.f32.mrf.mxu0
    %v4516 = vadd.f32 %v4502, %v4515
    %4517 = vdwg.mxu0
    %4518 = vmatpush.bf16.msra.mxu0 %v3689
    %4519 = vmatpush.bf16.msra.mxu0 %v3681
    %4520 = vmatpush.bf16.msra.mxu0 %v3673
    %4521 = vmatpush.bf16.msra.mxu0 %v3665
    %4522 = vmatpush.bf16.msra.mxu0 %v3657
    %4523 = vmatpush.bf16.msra.mxu0 %v3649
    %4524 = vmatpush.bf16.msra.mxu0 %v3641
    %4525 = vmatpush.bf16.msra.mxu0 %v3633
    %4526 = vmatmul.bf16.gmra.mxu0 %v1243
    %v4527 = vpop.f32.mrf.mxu0
    %v4528 = vadd.f32 %v4514, %v4527
    %v4529 = vpop.f32.mrf.mxu0
    %v4530 = vadd.f32 %v4516, %v4529
    %4531 = vdwg.mxu0
    %4532 = vmatpush.bf16.msra.mxu0 %v3753
    %4533 = vmatpush.bf16.msra.mxu0 %v3745
    %4534 = vmatpush.bf16.msra.mxu0 %v3737
    %4535 = vmatpush.bf16.msra.mxu0 %v3729
    %4536 = vmatpush.bf16.msra.mxu0 %v3721
    %4537 = vmatpush.bf16.msra.mxu0 %v3713
    %4538 = vmatpush.bf16.msra.mxu0 %v3705
    %4539 = vmatpush.bf16.msra.mxu0 %v3697
    %4540 = vmatmul.bf16.gmra.mxu0 %v1244
    %v4541 = vpop.f32.mrf.mxu0
    %v4542 = vadd.f32 %v4528, %v4541
    %v4543 = vpop.f32.mrf.mxu0
    %v4544 = vadd.f32 %v4530, %v4543
    %4545 = vdwg.mxu0
    %4546 = vmatpush.bf16.msra.mxu0 %v3817
    %4547 = vmatpush.bf16.msra.mxu0 %v3809
    %4548 = vmatpush.bf16.msra.mxu0 %v3801
    %4549 = vmatpush.bf16.msra.mxu0 %v3793
    %4550 = vmatpush.bf16.msra.mxu0 %v3785
    %4551 = vmatpush.bf16.msra.mxu0 %v3777
    %4552 = vmatpush.bf16.msra.mxu0 %v3769
    %4553 = vmatpush.bf16.msra.mxu0 %v3761
    %4554 = vmatmul.bf16.gmra.mxu0 %v1245
    %v4555 = vpop.f32.mrf.mxu0
    %v4556 = vadd.f32 %v4542, %v4555
    %v4557 = vpop.f32.mrf.mxu0
    %v4558 = vadd.f32 %v4544, %v4557
    %4559 = vdwg.mxu0
    %4560 = vmatpush.bf16.msra.mxu0 %v3370
    %4561 = vmatpush.bf16.msra.mxu0 %v3362
    %4562 = vmatpush.bf16.msra.mxu0 %v3354
    %4563 = vmatpush.bf16.msra.mxu0 %v3346
    %4564 = vmatpush.bf16.msra.mxu0 %v3338
    %4565 = vmatpush.bf16.msra.mxu0 %v3330
    %4566 = vmatpush.bf16.msra.mxu0 %v3322
    %4567 = vmatpush.bf16.msra.mxu0 %v3314
    %4568 = vmatmul.bf16.gmra.mxu0 %v1238
    %v4569 = vpop.f32.mrf.mxu0
    %v4570 = vadd.f32 %v1762, %v4569
    %v4571 = vpop.f32.mrf.mxu0
    %v4572 = vadd.f32 %v1762, %v4571
    %4573 = vdwg.mxu0
    %4574 = vmatpush.bf16.msra.mxu0 %v3434
    %4575 = vmatpush.bf16.msra.mxu0 %v3426
    %4576 = vmatpush.bf16.msra.mxu0 %v3418
    %4577 = vmatpush.bf16.msra.mxu0 %v3410
    %4578 = vmatpush.bf16.msra.mxu0 %v3402
    %4579 = vmatpush.bf16.msra.mxu0 %v3394
    %4580 = vmatpush.bf16.msra.mxu0 %v3386
    %4581 = vmatpush.bf16.msra.mxu0 %v3378
    %4582 = vmatmul.bf16.gmra.mxu0 %v1239
    %v4583 = vpop.f32.mrf.mxu0
    %v4584 = vadd.f32 %v4570, %v4583
    %v4585 = vpop.f32.mrf.mxu0
    %v4586 = vadd.f32 %v4572, %v4585
    %4587 = vdwg.mxu0
    %4588 = vmatpush.bf16.msra.mxu0 %v3498
    %4589 = vmatpush.bf16.msra.mxu0 %v3490
    %4590 = vmatpush.bf16.msra.mxu0 %v3482
    %4591 = vmatpush.bf16.msra.mxu0 %v3474
    %4592 = vmatpush.bf16.msra.mxu0 %v3466
    %4593 = vmatpush.bf16.msra.mxu0 %v3458
    %4594 = vmatpush.bf16.msra.mxu0 %v3450
    %4595 = vmatpush.bf16.msra.mxu0 %v3442
    %4596 = vmatmul.bf16.gmra.mxu0 %v1240
    %v4597 = vpop.f32.mrf.mxu0
    %v4598 = vadd.f32 %v4584, %v4597
    %v4599 = vpop.f32.mrf.mxu0
    %v4600 = vadd.f32 %v4586, %v4599
    %4601 = vdwg.mxu0
    %4602 = vmatpush.bf16.msra.mxu0 %v3562
    %4603 = vmatpush.bf16.msra.mxu0 %v3554
    %4604 = vmatpush.bf16.msra.mxu0 %v3546
    %4605 = vmatpush.bf16.msra.mxu0 %v3538
    %4606 = vmatpush.bf16.msra.mxu0 %v3530
    %4607 = vmatpush.bf16.msra.mxu0 %v3522
    %4608 = vmatpush.bf16.msra.mxu0 %v3514
    %4609 = vmatpush.bf16.msra.mxu0 %v3506
    %4610 = vmatmul.bf16.gmra.mxu0 %v1241
    %v4611 = vpop.f32.mrf.mxu0
    %v4612 = vadd.f32 %v4598, %v4611
    %v4613 = vpop.f32.mrf.mxu0
    %v4614 = vadd.f32 %v4600, %v4613
    %4615 = vdwg.mxu0
    %4616 = vmatpush.bf16.msra.mxu0 %v3626
    %4617 = vmatpush.bf16.msra.mxu0 %v3618
    %4618 = vmatpush.bf16.msra.mxu0 %v3610
    %4619 = vmatpush.bf16.msra.mxu0 %v3602
    %4620 = vmatpush.bf16.msra.mxu0 %v3594
    %4621 = vmatpush.bf16.msra.mxu0 %v3586
    %4622 = vmatpush.bf16.msra.mxu0 %v3578
    %4623 = vmatpush.bf16.msra.mxu0 %v3570
    %4624 = vmatmul.bf16.gmra.mxu0 %v1242
    %v4625 = vpop.f32.mrf.mxu0
    %v4626 = vadd.f32 %v4612, %v4625
    %v4627 = vpop.f32.mrf.mxu0
    %v4628 = vadd.f32 %v4614, %v4627
    %4629 = vdwg.mxu0
    %4630 = vmatpush.bf16.msra.mxu0 %v3690
    %4631 = vmatpush.bf16.msra.mxu0 %v3682
    %4632 = vmatpush.bf16.msra.mxu0 %v3674
    %4633 = vmatpush.bf16.msra.mxu0 %v3666
    %4634 = vmatpush.bf16.msra.mxu0 %v3658
    %4635 = vmatpush.bf16.msra.mxu0 %v3650
    %4636 = vmatpush.bf16.msra.mxu0 %v3642
    %4637 = vmatpush.bf16.msra.mxu0 %v3634
    %4638 = vmatmul.bf16.gmra.mxu0 %v1243
    %v4639 = vpop.f32.mrf.mxu0
    %v4640 = vadd.f32 %v4626, %v4639
    %v4641 = vpop.f32.mrf.mxu0
    %v4642 = vadd.f32 %v4628, %v4641
    %4643 = vdwg.mxu0
    %4644 = vmatpush.bf16.msra.mxu0 %v3754
    %4645 = vmatpush.bf16.msra.mxu0 %v3746
    %4646 = vmatpush.bf16.msra.mxu0 %v3738
    %4647 = vmatpush.bf16.msra.mxu0 %v3730
    %4648 = vmatpush.bf16.msra.mxu0 %v3722
    %4649 = vmatpush.bf16.msra.mxu0 %v3714
    %4650 = vmatpush.bf16.msra.mxu0 %v3706
    %4651 = vmatpush.bf16.msra.mxu0 %v3698
    %4652 = vmatmul.bf16.gmra.mxu0 %v1244
    %v4653 = vpop.f32.mrf.mxu0
    %v4654 = vadd.f32 %v4640, %v4653
    %v4655 = vpop.f32.mrf.mxu0
    %v4656 = vadd.f32 %v4642, %v4655
    %4657 = vdwg.mxu0
    %4658 = vmatpush.bf16.msra.mxu0 %v3818
    %4659 = vmatpush.bf16.msra.mxu0 %v3810
    %4660 = vmatpush.bf16.msra.mxu0 %v3802
    %4661 = vmatpush.bf16.msra.mxu0 %v3794
    %4662 = vmatpush.bf16.msra.mxu0 %v3786
    %4663 = vmatpush.bf16.msra.mxu0 %v3778
    %4664 = vmatpush.bf16.msra.mxu0 %v3770
    %4665 = vmatpush.bf16.msra.mxu0 %v3762
    %4666 = vmatmul.bf16.gmra.mxu0 %v1245
    %v4667 = vpop.f32.mrf.mxu0
    %v4668 = vadd.f32 %v4654, %v4667
    %v4669 = vpop.f32.mrf.mxu0
    %v4670 = vadd.f32 %v4656, %v4669
    %4671 = vdwg.mxu0
    %4672 = vmatpush.bf16.msra.mxu0 %v3371
    %4673 = vmatpush.bf16.msra.mxu0 %v3363
    %4674 = vmatpush.bf16.msra.mxu0 %v3355
    %4675 = vmatpush.bf16.msra.mxu0 %v3347
    %4676 = vmatpush.bf16.msra.mxu0 %v3339
    %4677 = vmatpush.bf16.msra.mxu0 %v3331
    %4678 = vmatpush.bf16.msra.mxu0 %v3323
    %4679 = vmatpush.bf16.msra.mxu0 %v3315
    %4680 = vmatmul.bf16.gmra.mxu0 %v1238
    %v4681 = vpop.f32.mrf.mxu0
    %v4682 = vadd.f32 %v1763, %v4681
    %v4683 = vpop.f32.mrf.mxu0
    %v4684 = vadd.f32 %v1763, %v4683
    %4685 = vdwg.mxu0
    %4686 = vmatpush.bf16.msra.mxu0 %v3435
    %4687 = vmatpush.bf16.msra.mxu0 %v3427
    %4688 = vmatpush.bf16.msra.mxu0 %v3419
    %4689 = vmatpush.bf16.msra.mxu0 %v3411
    %4690 = vmatpush.bf16.msra.mxu0 %v3403
    %4691 = vmatpush.bf16.msra.mxu0 %v3395
    %4692 = vmatpush.bf16.msra.mxu0 %v3387
    %4693 = vmatpush.bf16.msra.mxu0 %v3379
    %4694 = vmatmul.bf16.gmra.mxu0 %v1239
    %v4695 = vpop.f32.mrf.mxu0
    %v4696 = vadd.f32 %v4682, %v4695
    %v4697 = vpop.f32.mrf.mxu0
    %v4698 = vadd.f32 %v4684, %v4697
    %4699 = vdwg.mxu0
    %4700 = vmatpush.bf16.msra.mxu0 %v3499
    %4701 = vmatpush.bf16.msra.mxu0 %v3491
    %4702 = vmatpush.bf16.msra.mxu0 %v3483
    %4703 = vmatpush.bf16.msra.mxu0 %v3475
    %4704 = vmatpush.bf16.msra.mxu0 %v3467
    %4705 = vmatpush.bf16.msra.mxu0 %v3459
    %4706 = vmatpush.bf16.msra.mxu0 %v3451
    %4707 = vmatpush.bf16.msra.mxu0 %v3443
    %4708 = vmatmul.bf16.gmra.mxu0 %v1240
    %v4709 = vpop.f32.mrf.mxu0
    %v4710 = vadd.f32 %v4696, %v4709
    %v4711 = vpop.f32.mrf.mxu0
    %v4712 = vadd.f32 %v4698, %v4711
    %4713 = vdwg.mxu0
    %4714 = vmatpush.bf16.msra.mxu0 %v3563
    %4715 = vmatpush.bf16.msra.mxu0 %v3555
    %4716 = vmatpush.bf16.msra.mxu0 %v3547
    %4717 = vmatpush.bf16.msra.mxu0 %v3539
    %4718 = vmatpush.bf16.msra.mxu0 %v3531
    %4719 = vmatpush.bf16.msra.mxu0 %v3523
    %4720 = vmatpush.bf16.msra.mxu0 %v3515
    %4721 = vmatpush.bf16.msra.mxu0 %v3507
    %4722 = vmatmul.bf16.gmra.mxu0 %v1241
    %v4723 = vpop.f32.mrf.mxu0
    %v4724 = vadd.f32 %v4710, %v4723
    %v4725 = vpop.f32.mrf.mxu0
    %v4726 = vadd.f32 %v4712, %v4725
    %4727 = vdwg.mxu0
    %4728 = vmatpush.bf16.msra.mxu0 %v3627
    %4729 = vmatpush.bf16.msra.mxu0 %v3619
    %4730 = vmatpush.bf16.msra.mxu0 %v3611
    %4731 = vmatpush.bf16.msra.mxu0 %v3603
    %4732 = vmatpush.bf16.msra.mxu0 %v3595
    %4733 = vmatpush.bf16.msra.mxu0 %v3587
    %4734 = vmatpush.bf16.msra.mxu0 %v3579
    %4735 = vmatpush.bf16.msra.mxu0 %v3571
    %4736 = vmatmul.bf16.gmra.mxu0 %v1242
    %v4737 = vpop.f32.mrf.mxu0
    %v4738 = vadd.f32 %v4724, %v4737
    %v4739 = vpop.f32.mrf.mxu0
    %v4740 = vadd.f32 %v4726, %v4739
    %4741 = vdwg.mxu0
    %4742 = vmatpush.bf16.msra.mxu0 %v3691
    %4743 = vmatpush.bf16.msra.mxu0 %v3683
    %4744 = vmatpush.bf16.msra.mxu0 %v3675
    %4745 = vmatpush.bf16.msra.mxu0 %v3667
    %4746 = vmatpush.bf16.msra.mxu0 %v3659
    %4747 = vmatpush.bf16.msra.mxu0 %v3651
    %4748 = vmatpush.bf16.msra.mxu0 %v3643
    %4749 = vmatpush.bf16.msra.mxu0 %v3635
    %4750 = vmatmul.bf16.gmra.mxu0 %v1243
    %v4751 = vpop.f32.mrf.mxu0
    %v4752 = vadd.f32 %v4738, %v4751
    %v4753 = vpop.f32.mrf.mxu0
    %v4754 = vadd.f32 %v4740, %v4753
    %4755 = vdwg.mxu0
    %4756 = vmatpush.bf16.msra.mxu0 %v3755
    %4757 = vmatpush.bf16.msra.mxu0 %v3747
    %4758 = vmatpush.bf16.msra.mxu0 %v3739
    %4759 = vmatpush.bf16.msra.mxu0 %v3731
    %4760 = vmatpush.bf16.msra.mxu0 %v3723
    %4761 = vmatpush.bf16.msra.mxu0 %v3715
    %4762 = vmatpush.bf16.msra.mxu0 %v3707
    %4763 = vmatpush.bf16.msra.mxu0 %v3699
    %4764 = vmatmul.bf16.gmra.mxu0 %v1244
    %v4765 = vpop.f32.mrf.mxu0
    %v4766 = vadd.f32 %v4752, %v4765
    %v4767 = vpop.f32.mrf.mxu0
    %v4768 = vadd.f32 %v4754, %v4767
    %4769 = vdwg.mxu0
    %4770 = vmatpush.bf16.msra.mxu0 %v3819
    %4771 = vmatpush.bf16.msra.mxu0 %v3811
    %4772 = vmatpush.bf16.msra.mxu0 %v3803
    %4773 = vmatpush.bf16.msra.mxu0 %v3795
    %4774 = vmatpush.bf16.msra.mxu0 %v3787
    %4775 = vmatpush.bf16.msra.mxu0 %v3779
    %4776 = vmatpush.bf16.msra.mxu0 %v3771
    %4777 = vmatpush.bf16.msra.mxu0 %v3763
    %4778 = vmatmul.bf16.gmra.mxu0 %v1245
    %v4779 = vpop.f32.mrf.mxu0
    %v4780 = vadd.f32 %v4766, %v4779
    %v4781 = vpop.f32.mrf.mxu0
    %v4782 = vadd.f32 %v4768, %v4781
    %4783 = vdwg.mxu0
    %4784 = vmatpush.bf16.msra.mxu0 %v3372
    %4785 = vmatpush.bf16.msra.mxu0 %v3364
    %4786 = vmatpush.bf16.msra.mxu0 %v3356
    %4787 = vmatpush.bf16.msra.mxu0 %v3348
    %4788 = vmatpush.bf16.msra.mxu0 %v3340
    %4789 = vmatpush.bf16.msra.mxu0 %v3332
    %4790 = vmatpush.bf16.msra.mxu0 %v3324
    %4791 = vmatpush.bf16.msra.mxu0 %v3316
    %4792 = vmatmul.bf16.gmra.mxu0 %v1238
    %v4793 = vpop.f32.mrf.mxu0
    %v4794 = vadd.f32 %v1764, %v4793
    %v4795 = vpop.f32.mrf.mxu0
    %v4796 = vadd.f32 %v1764, %v4795
    %4797 = vdwg.mxu0
    %4798 = vmatpush.bf16.msra.mxu0 %v3436
    %4799 = vmatpush.bf16.msra.mxu0 %v3428
    %4800 = vmatpush.bf16.msra.mxu0 %v3420
    %4801 = vmatpush.bf16.msra.mxu0 %v3412
    %4802 = vmatpush.bf16.msra.mxu0 %v3404
    %4803 = vmatpush.bf16.msra.mxu0 %v3396
    %4804 = vmatpush.bf16.msra.mxu0 %v3388
    %4805 = vmatpush.bf16.msra.mxu0 %v3380
    %4806 = vmatmul.bf16.gmra.mxu0 %v1239
    %v4807 = vpop.f32.mrf.mxu0
    %v4808 = vadd.f32 %v4794, %v4807
    %v4809 = vpop.f32.mrf.mxu0
    %v4810 = vadd.f32 %v4796, %v4809
    %4811 = vdwg.mxu0
    %4812 = vmatpush.bf16.msra.mxu0 %v3500
    %4813 = vmatpush.bf16.msra.mxu0 %v3492
    %4814 = vmatpush.bf16.msra.mxu0 %v3484
    %4815 = vmatpush.bf16.msra.mxu0 %v3476
    %4816 = vmatpush.bf16.msra.mxu0 %v3468
    %4817 = vmatpush.bf16.msra.mxu0 %v3460
    %4818 = vmatpush.bf16.msra.mxu0 %v3452
    %4819 = vmatpush.bf16.msra.mxu0 %v3444
    %4820 = vmatmul.bf16.gmra.mxu0 %v1240
    %v4821 = vpop.f32.mrf.mxu0
    %v4822 = vadd.f32 %v4808, %v4821
    %v4823 = vpop.f32.mrf.mxu0
    %v4824 = vadd.f32 %v4810, %v4823
    %4825 = vdwg.mxu0
    %4826 = vmatpush.bf16.msra.mxu0 %v3564
    %4827 = vmatpush.bf16.msra.mxu0 %v3556
    %4828 = vmatpush.bf16.msra.mxu0 %v3548
    %4829 = vmatpush.bf16.msra.mxu0 %v3540
    %4830 = vmatpush.bf16.msra.mxu0 %v3532
    %4831 = vmatpush.bf16.msra.mxu0 %v3524
    %4832 = vmatpush.bf16.msra.mxu0 %v3516
    %4833 = vmatpush.bf16.msra.mxu0 %v3508
    %4834 = vmatmul.bf16.gmra.mxu0 %v1241
    %v4835 = vpop.f32.mrf.mxu0
    %v4836 = vadd.f32 %v4822, %v4835
    %v4837 = vpop.f32.mrf.mxu0
    %v4838 = vadd.f32 %v4824, %v4837
    %4839 = vdwg.mxu0
    %4840 = vmatpush.bf16.msra.mxu0 %v3628
    %4841 = vmatpush.bf16.msra.mxu0 %v3620
    %4842 = vmatpush.bf16.msra.mxu0 %v3612
    %4843 = vmatpush.bf16.msra.mxu0 %v3604
    %4844 = vmatpush.bf16.msra.mxu0 %v3596
    %4845 = vmatpush.bf16.msra.mxu0 %v3588
    %4846 = vmatpush.bf16.msra.mxu0 %v3580
    %4847 = vmatpush.bf16.msra.mxu0 %v3572
    %4848 = vmatmul.bf16.gmra.mxu0 %v1242
    %v4849 = vpop.f32.mrf.mxu0
    %v4850 = vadd.f32 %v4836, %v4849
    %v4851 = vpop.f32.mrf.mxu0
    %v4852 = vadd.f32 %v4838, %v4851
    %4853 = vdwg.mxu0
    %4854 = vmatpush.bf16.msra.mxu0 %v3692
    %4855 = vmatpush.bf16.msra.mxu0 %v3684
    %4856 = vmatpush.bf16.msra.mxu0 %v3676
    %4857 = vmatpush.bf16.msra.mxu0 %v3668
    %4858 = vmatpush.bf16.msra.mxu0 %v3660
    %4859 = vmatpush.bf16.msra.mxu0 %v3652
    %4860 = vmatpush.bf16.msra.mxu0 %v3644
    %4861 = vmatpush.bf16.msra.mxu0 %v3636
    %4862 = vmatmul.bf16.gmra.mxu0 %v1243
    %v4863 = vpop.f32.mrf.mxu0
    %v4864 = vadd.f32 %v4850, %v4863
    %v4865 = vpop.f32.mrf.mxu0
    %v4866 = vadd.f32 %v4852, %v4865
    %4867 = vdwg.mxu0
    %4868 = vmatpush.bf16.msra.mxu0 %v3756
    %4869 = vmatpush.bf16.msra.mxu0 %v3748
    %4870 = vmatpush.bf16.msra.mxu0 %v3740
    %4871 = vmatpush.bf16.msra.mxu0 %v3732
    %4872 = vmatpush.bf16.msra.mxu0 %v3724
    %4873 = vmatpush.bf16.msra.mxu0 %v3716
    %4874 = vmatpush.bf16.msra.mxu0 %v3708
    %4875 = vmatpush.bf16.msra.mxu0 %v3700
    %4876 = vmatmul.bf16.gmra.mxu0 %v1244
    %v4877 = vpop.f32.mrf.mxu0
    %v4878 = vadd.f32 %v4864, %v4877
    %v4879 = vpop.f32.mrf.mxu0
    %v4880 = vadd.f32 %v4866, %v4879
    %4881 = vdwg.mxu0
    %4882 = vmatpush.bf16.msra.mxu0 %v3820
    %4883 = vmatpush.bf16.msra.mxu0 %v3812
    %4884 = vmatpush.bf16.msra.mxu0 %v3804
    %4885 = vmatpush.bf16.msra.mxu0 %v3796
    %4886 = vmatpush.bf16.msra.mxu0 %v3788
    %4887 = vmatpush.bf16.msra.mxu0 %v3780
    %4888 = vmatpush.bf16.msra.mxu0 %v3772
    %4889 = vmatpush.bf16.msra.mxu0 %v3764
    %4890 = vmatmul.bf16.gmra.mxu0 %v1245
    %v4891 = vpop.f32.mrf.mxu0
    %v4892 = vadd.f32 %v4878, %v4891
    %v4893 = vpop.f32.mrf.mxu0
    %v4894 = vadd.f32 %v4880, %v4893
    %4895 = vdwg.mxu0
    %4896 = vmatpush.bf16.msra.mxu0 %v3373
    %4897 = vmatpush.bf16.msra.mxu0 %v3365
    %4898 = vmatpush.bf16.msra.mxu0 %v3357
    %4899 = vmatpush.bf16.msra.mxu0 %v3349
    %4900 = vmatpush.bf16.msra.mxu0 %v3341
    %4901 = vmatpush.bf16.msra.mxu0 %v3333
    %4902 = vmatpush.bf16.msra.mxu0 %v3325
    %4903 = vmatpush.bf16.msra.mxu0 %v3317
    %4904 = vmatmul.bf16.gmra.mxu0 %v1238
    %v4905 = vpop.f32.mrf.mxu0
    %v4906 = vadd.f32 %v1765, %v4905
    %v4907 = vpop.f32.mrf.mxu0
    %v4908 = vadd.f32 %v1765, %v4907
    %4909 = vdwg.mxu0
    %4910 = vmatpush.bf16.msra.mxu0 %v3437
    %4911 = vmatpush.bf16.msra.mxu0 %v3429
    %4912 = vmatpush.bf16.msra.mxu0 %v3421
    %4913 = vmatpush.bf16.msra.mxu0 %v3413
    %4914 = vmatpush.bf16.msra.mxu0 %v3405
    %4915 = vmatpush.bf16.msra.mxu0 %v3397
    %4916 = vmatpush.bf16.msra.mxu0 %v3389
    %4917 = vmatpush.bf16.msra.mxu0 %v3381
    %4918 = vmatmul.bf16.gmra.mxu0 %v1239
    %v4919 = vpop.f32.mrf.mxu0
    %v4920 = vadd.f32 %v4906, %v4919
    %v4921 = vpop.f32.mrf.mxu0
    %v4922 = vadd.f32 %v4908, %v4921
    %4923 = vdwg.mxu0
    %4924 = vmatpush.bf16.msra.mxu0 %v3501
    %4925 = vmatpush.bf16.msra.mxu0 %v3493
    %4926 = vmatpush.bf16.msra.mxu0 %v3485
    %4927 = vmatpush.bf16.msra.mxu0 %v3477
    %4928 = vmatpush.bf16.msra.mxu0 %v3469
    %4929 = vmatpush.bf16.msra.mxu0 %v3461
    %4930 = vmatpush.bf16.msra.mxu0 %v3453
    %4931 = vmatpush.bf16.msra.mxu0 %v3445
    %4932 = vmatmul.bf16.gmra.mxu0 %v1240
    %v4933 = vpop.f32.mrf.mxu0
    %v4934 = vadd.f32 %v4920, %v4933
    %v4935 = vpop.f32.mrf.mxu0
    %v4936 = vadd.f32 %v4922, %v4935
    %4937 = vdwg.mxu0
    %4938 = vmatpush.bf16.msra.mxu0 %v3565
    %4939 = vmatpush.bf16.msra.mxu0 %v3557
    %4940 = vmatpush.bf16.msra.mxu0 %v3549
    %4941 = vmatpush.bf16.msra.mxu0 %v3541
    %4942 = vmatpush.bf16.msra.mxu0 %v3533
    %4943 = vmatpush.bf16.msra.mxu0 %v3525
    %4944 = vmatpush.bf16.msra.mxu0 %v3517
    %4945 = vmatpush.bf16.msra.mxu0 %v3509
    %4946 = vmatmul.bf16.gmra.mxu0 %v1241
    %v4947 = vpop.f32.mrf.mxu0
    %v4948 = vadd.f32 %v4934, %v4947
    %v4949 = vpop.f32.mrf.mxu0
    %v4950 = vadd.f32 %v4936, %v4949
    %4951 = vdwg.mxu0
    %4952 = vmatpush.bf16.msra.mxu0 %v3629
    %4953 = vmatpush.bf16.msra.mxu0 %v3621
    %4954 = vmatpush.bf16.msra.mxu0 %v3613
    %4955 = vmatpush.bf16.msra.mxu0 %v3605
    %4956 = vmatpush.bf16.msra.mxu0 %v3597
    %4957 = vmatpush.bf16.msra.mxu0 %v3589
    %4958 = vmatpush.bf16.msra.mxu0 %v3581
    %4959 = vmatpush.bf16.msra.mxu0 %v3573
    %4960 = vmatmul.bf16.gmra.mxu0 %v1242
    %v4961 = vpop.f32.mrf.mxu0
    %v4962 = vadd.f32 %v4948, %v4961
    %v4963 = vpop.f32.mrf.mxu0
    %v4964 = vadd.f32 %v4950, %v4963
    %4965 = vdwg.mxu0
    %4966 = vmatpush.bf16.msra.mxu0 %v3693
    %4967 = vmatpush.bf16.msra.mxu0 %v3685
    %4968 = vmatpush.bf16.msra.mxu0 %v3677
    %4969 = vmatpush.bf16.msra.mxu0 %v3669
    %4970 = vmatpush.bf16.msra.mxu0 %v3661
    %4971 = vmatpush.bf16.msra.mxu0 %v3653
    %4972 = vmatpush.bf16.msra.mxu0 %v3645
    %4973 = vmatpush.bf16.msra.mxu0 %v3637
    %4974 = vmatmul.bf16.gmra.mxu0 %v1243
    %v4975 = vpop.f32.mrf.mxu0
    %v4976 = vadd.f32 %v4962, %v4975
    %v4977 = vpop.f32.mrf.mxu0
    %v4978 = vadd.f32 %v4964, %v4977
    %4979 = vdwg.mxu0
    %4980 = vmatpush.bf16.msra.mxu0 %v3757
    %4981 = vmatpush.bf16.msra.mxu0 %v3749
    %4982 = vmatpush.bf16.msra.mxu0 %v3741
    %4983 = vmatpush.bf16.msra.mxu0 %v3733
    %4984 = vmatpush.bf16.msra.mxu0 %v3725
    %4985 = vmatpush.bf16.msra.mxu0 %v3717
    %4986 = vmatpush.bf16.msra.mxu0 %v3709
    %4987 = vmatpush.bf16.msra.mxu0 %v3701
    %4988 = vmatmul.bf16.gmra.mxu0 %v1244
    %v4989 = vpop.f32.mrf.mxu0
    %v4990 = vadd.f32 %v4976, %v4989
    %v4991 = vpop.f32.mrf.mxu0
    %v4992 = vadd.f32 %v4978, %v4991
    %4993 = vdwg.mxu0
    %4994 = vmatpush.bf16.msra.mxu0 %v3821
    %4995 = vmatpush.bf16.msra.mxu0 %v3813
    %4996 = vmatpush.bf16.msra.mxu0 %v3805
    %4997 = vmatpush.bf16.msra.mxu0 %v3797
    %4998 = vmatpush.bf16.msra.mxu0 %v3789
    %4999 = vmatpush.bf16.msra.mxu0 %v3781
    %5000 = vmatpush.bf16.msra.mxu0 %v3773
    %5001 = vmatpush.bf16.msra.mxu0 %v3765
    %5002 = vmatmul.bf16.gmra.mxu0 %v1245
    %v5003 = vpop.f32.mrf.mxu0
    %v5004 = vadd.f32 %v4990, %v5003
    %v5005 = vpop.f32.mrf.mxu0
    %v5006 = vadd.f32 %v4992, %v5005
    %5007 = vdwg.mxu0
    %5008 = vmatpush.bf16.msra.mxu0 %v3374
    %5009 = vmatpush.bf16.msra.mxu0 %v3366
    %5010 = vmatpush.bf16.msra.mxu0 %v3358
    %5011 = vmatpush.bf16.msra.mxu0 %v3350
    %5012 = vmatpush.bf16.msra.mxu0 %v3342
    %5013 = vmatpush.bf16.msra.mxu0 %v3334
    %5014 = vmatpush.bf16.msra.mxu0 %v3326
    %5015 = vmatpush.bf16.msra.mxu0 %v3318
    %5016 = vmatmul.bf16.gmra.mxu0 %v1238
    %v5017 = vpop.f32.mrf.mxu0
    %v5018 = vadd.f32 %v1766, %v5017
    %v5019 = vpop.f32.mrf.mxu0
    %v5020 = vadd.f32 %v1766, %v5019
    %5021 = vdwg.mxu0
    %5022 = vmatpush.bf16.msra.mxu0 %v3438
    %5023 = vmatpush.bf16.msra.mxu0 %v3430
    %5024 = vmatpush.bf16.msra.mxu0 %v3422
    %5025 = vmatpush.bf16.msra.mxu0 %v3414
    %5026 = vmatpush.bf16.msra.mxu0 %v3406
    %5027 = vmatpush.bf16.msra.mxu0 %v3398
    %5028 = vmatpush.bf16.msra.mxu0 %v3390
    %5029 = vmatpush.bf16.msra.mxu0 %v3382
    %5030 = vmatmul.bf16.gmra.mxu0 %v1239
    %v5031 = vpop.f32.mrf.mxu0
    %v5032 = vadd.f32 %v5018, %v5031
    %v5033 = vpop.f32.mrf.mxu0
    %v5034 = vadd.f32 %v5020, %v5033
    %5035 = vdwg.mxu0
    %5036 = vmatpush.bf16.msra.mxu0 %v3502
    %5037 = vmatpush.bf16.msra.mxu0 %v3494
    %5038 = vmatpush.bf16.msra.mxu0 %v3486
    %5039 = vmatpush.bf16.msra.mxu0 %v3478
    %5040 = vmatpush.bf16.msra.mxu0 %v3470
    %5041 = vmatpush.bf16.msra.mxu0 %v3462
    %5042 = vmatpush.bf16.msra.mxu0 %v3454
    %5043 = vmatpush.bf16.msra.mxu0 %v3446
    %5044 = vmatmul.bf16.gmra.mxu0 %v1240
    %v5045 = vpop.f32.mrf.mxu0
    %v5046 = vadd.f32 %v5032, %v5045
    %v5047 = vpop.f32.mrf.mxu0
    %v5048 = vadd.f32 %v5034, %v5047
    %5049 = vdwg.mxu0
    %5050 = vmatpush.bf16.msra.mxu0 %v3566
    %5051 = vmatpush.bf16.msra.mxu0 %v3558
    %5052 = vmatpush.bf16.msra.mxu0 %v3550
    %5053 = vmatpush.bf16.msra.mxu0 %v3542
    %5054 = vmatpush.bf16.msra.mxu0 %v3534
    %5055 = vmatpush.bf16.msra.mxu0 %v3526
    %5056 = vmatpush.bf16.msra.mxu0 %v3518
    %5057 = vmatpush.bf16.msra.mxu0 %v3510
    %5058 = vmatmul.bf16.gmra.mxu0 %v1241
    %v5059 = vpop.f32.mrf.mxu0
    %v5060 = vadd.f32 %v5046, %v5059
    %v5061 = vpop.f32.mrf.mxu0
    %v5062 = vadd.f32 %v5048, %v5061
    %5063 = vdwg.mxu0
    %5064 = vmatpush.bf16.msra.mxu0 %v3630
    %5065 = vmatpush.bf16.msra.mxu0 %v3622
    %5066 = vmatpush.bf16.msra.mxu0 %v3614
    %5067 = vmatpush.bf16.msra.mxu0 %v3606
    %5068 = vmatpush.bf16.msra.mxu0 %v3598
    %5069 = vmatpush.bf16.msra.mxu0 %v3590
    %5070 = vmatpush.bf16.msra.mxu0 %v3582
    %5071 = vmatpush.bf16.msra.mxu0 %v3574
    %5072 = vmatmul.bf16.gmra.mxu0 %v1242
    %v5073 = vpop.f32.mrf.mxu0
    %v5074 = vadd.f32 %v5060, %v5073
    %v5075 = vpop.f32.mrf.mxu0
    %v5076 = vadd.f32 %v5062, %v5075
    %5077 = vdwg.mxu0
    %5078 = vmatpush.bf16.msra.mxu0 %v3694
    %5079 = vmatpush.bf16.msra.mxu0 %v3686
    %5080 = vmatpush.bf16.msra.mxu0 %v3678
    %5081 = vmatpush.bf16.msra.mxu0 %v3670
    %5082 = vmatpush.bf16.msra.mxu0 %v3662
    %5083 = vmatpush.bf16.msra.mxu0 %v3654
    %5084 = vmatpush.bf16.msra.mxu0 %v3646
    %5085 = vmatpush.bf16.msra.mxu0 %v3638
    %5086 = vmatmul.bf16.gmra.mxu0 %v1243
    %v5087 = vpop.f32.mrf.mxu0
    %v5088 = vadd.f32 %v5074, %v5087
    %v5089 = vpop.f32.mrf.mxu0
    %v5090 = vadd.f32 %v5076, %v5089
    %5091 = vdwg.mxu0
    %5092 = vmatpush.bf16.msra.mxu0 %v3758
    %5093 = vmatpush.bf16.msra.mxu0 %v3750
    %5094 = vmatpush.bf16.msra.mxu0 %v3742
    %5095 = vmatpush.bf16.msra.mxu0 %v3734
    %5096 = vmatpush.bf16.msra.mxu0 %v3726
    %5097 = vmatpush.bf16.msra.mxu0 %v3718
    %5098 = vmatpush.bf16.msra.mxu0 %v3710
    %5099 = vmatpush.bf16.msra.mxu0 %v3702
    %5100 = vmatmul.bf16.gmra.mxu0 %v1244
    %v5101 = vpop.f32.mrf.mxu0
    %v5102 = vadd.f32 %v5088, %v5101
    %v5103 = vpop.f32.mrf.mxu0
    %v5104 = vadd.f32 %v5090, %v5103
    %5105 = vdwg.mxu0
    %5106 = vmatpush.bf16.msra.mxu0 %v3822
    %5107 = vmatpush.bf16.msra.mxu0 %v3814
    %5108 = vmatpush.bf16.msra.mxu0 %v3806
    %5109 = vmatpush.bf16.msra.mxu0 %v3798
    %5110 = vmatpush.bf16.msra.mxu0 %v3790
    %5111 = vmatpush.bf16.msra.mxu0 %v3782
    %5112 = vmatpush.bf16.msra.mxu0 %v3774
    %5113 = vmatpush.bf16.msra.mxu0 %v3766
    %5114 = vmatmul.bf16.gmra.mxu0 %v1245
    %v5115 = vpop.f32.mrf.mxu0
    %v5116 = vadd.f32 %v5102, %v5115
    %v5117 = vpop.f32.mrf.mxu0
    %v5118 = vadd.f32 %v5104, %v5117
    %5119 = vdwg.mxu0
    %5120 = vmatpush.bf16.msra.mxu0 %v3375
    %5121 = vmatpush.bf16.msra.mxu0 %v3367
    %5122 = vmatpush.bf16.msra.mxu0 %v3359
    %5123 = vmatpush.bf16.msra.mxu0 %v3351
    %5124 = vmatpush.bf16.msra.mxu0 %v3343
    %5125 = vmatpush.bf16.msra.mxu0 %v3335
    %5126 = vmatpush.bf16.msra.mxu0 %v3327
    %5127 = vmatpush.bf16.msra.mxu0 %v3319
    %5128 = vmatmul.bf16.gmra.mxu0 %v1238
    %v5129 = vpop.f32.mrf.mxu0
    %v5130 = vadd.f32 %v1767, %v5129
    %v5131 = vpop.f32.mrf.mxu0
    %v5132 = vadd.f32 %v1767, %v5131
    %5133 = vdwg.mxu0
    %5134 = vmatpush.bf16.msra.mxu0 %v3439
    %5135 = vmatpush.bf16.msra.mxu0 %v3431
    %5136 = vmatpush.bf16.msra.mxu0 %v3423
    %5137 = vmatpush.bf16.msra.mxu0 %v3415
    %5138 = vmatpush.bf16.msra.mxu0 %v3407
    %5139 = vmatpush.bf16.msra.mxu0 %v3399
    %5140 = vmatpush.bf16.msra.mxu0 %v3391
    %5141 = vmatpush.bf16.msra.mxu0 %v3383
    %5142 = vmatmul.bf16.gmra.mxu0 %v1239
    %v5143 = vpop.f32.mrf.mxu0
    %v5144 = vadd.f32 %v5130, %v5143
    %v5145 = vpop.f32.mrf.mxu0
    %v5146 = vadd.f32 %v5132, %v5145
    %5147 = vdwg.mxu0
    %5148 = vmatpush.bf16.msra.mxu0 %v3503
    %5149 = vmatpush.bf16.msra.mxu0 %v3495
    %5150 = vmatpush.bf16.msra.mxu0 %v3487
    %5151 = vmatpush.bf16.msra.mxu0 %v3479
    %5152 = vmatpush.bf16.msra.mxu0 %v3471
    %5153 = vmatpush.bf16.msra.mxu0 %v3463
    %5154 = vmatpush.bf16.msra.mxu0 %v3455
    %5155 = vmatpush.bf16.msra.mxu0 %v3447
    %5156 = vmatmul.bf16.gmra.mxu0 %v1240
    %v5157 = vpop.f32.mrf.mxu0
    %v5158 = vadd.f32 %v5144, %v5157
    %v5159 = vpop.f32.mrf.mxu0
    %v5160 = vadd.f32 %v5146, %v5159
    %5161 = vdwg.mxu0
    %5162 = vmatpush.bf16.msra.mxu0 %v3567
    %5163 = vmatpush.bf16.msra.mxu0 %v3559
    %5164 = vmatpush.bf16.msra.mxu0 %v3551
    %5165 = vmatpush.bf16.msra.mxu0 %v3543
    %5166 = vmatpush.bf16.msra.mxu0 %v3535
    %5167 = vmatpush.bf16.msra.mxu0 %v3527
    %5168 = vmatpush.bf16.msra.mxu0 %v3519
    %5169 = vmatpush.bf16.msra.mxu0 %v3511
    %5170 = vmatmul.bf16.gmra.mxu0 %v1241
    %v5171 = vpop.f32.mrf.mxu0
    %v5172 = vadd.f32 %v5158, %v5171
    %v5173 = vpop.f32.mrf.mxu0
    %v5174 = vadd.f32 %v5160, %v5173
    %5175 = vdwg.mxu0
    %5176 = vmatpush.bf16.msra.mxu0 %v3631
    %5177 = vmatpush.bf16.msra.mxu0 %v3623
    %5178 = vmatpush.bf16.msra.mxu0 %v3615
    %5179 = vmatpush.bf16.msra.mxu0 %v3607
    %5180 = vmatpush.bf16.msra.mxu0 %v3599
    %5181 = vmatpush.bf16.msra.mxu0 %v3591
    %5182 = vmatpush.bf16.msra.mxu0 %v3583
    %5183 = vmatpush.bf16.msra.mxu0 %v3575
    %5184 = vmatmul.bf16.gmra.mxu0 %v1242
    %v5185 = vpop.f32.mrf.mxu0
    %v5186 = vadd.f32 %v5172, %v5185
    %v5187 = vpop.f32.mrf.mxu0
    %v5188 = vadd.f32 %v5174, %v5187
    %5189 = vdwg.mxu0
    %5190 = vmatpush.bf16.msra.mxu0 %v3695
    %5191 = vmatpush.bf16.msra.mxu0 %v3687
    %5192 = vmatpush.bf16.msra.mxu0 %v3679
    %5193 = vmatpush.bf16.msra.mxu0 %v3671
    %5194 = vmatpush.bf16.msra.mxu0 %v3663
    %5195 = vmatpush.bf16.msra.mxu0 %v3655
    %5196 = vmatpush.bf16.msra.mxu0 %v3647
    %5197 = vmatpush.bf16.msra.mxu0 %v3639
    %5198 = vmatmul.bf16.gmra.mxu0 %v1243
    %v5199 = vpop.f32.mrf.mxu0
    %v5200 = vadd.f32 %v5186, %v5199
    %v5201 = vpop.f32.mrf.mxu0
    %v5202 = vadd.f32 %v5188, %v5201
    %5203 = vdwg.mxu0
    %5204 = vmatpush.bf16.msra.mxu0 %v3759
    %5205 = vmatpush.bf16.msra.mxu0 %v3751
    %5206 = vmatpush.bf16.msra.mxu0 %v3743
    %5207 = vmatpush.bf16.msra.mxu0 %v3735
    %5208 = vmatpush.bf16.msra.mxu0 %v3727
    %5209 = vmatpush.bf16.msra.mxu0 %v3719
    %5210 = vmatpush.bf16.msra.mxu0 %v3711
    %5211 = vmatpush.bf16.msra.mxu0 %v3703
    %5212 = vmatmul.bf16.gmra.mxu0 %v1244
    %v5213 = vpop.f32.mrf.mxu0
    %v5214 = vadd.f32 %v5200, %v5213
    %v5215 = vpop.f32.mrf.mxu0
    %v5216 = vadd.f32 %v5202, %v5215
    %5217 = vdwg.mxu0
    %5218 = vmatpush.bf16.msra.mxu0 %v3823
    %5219 = vmatpush.bf16.msra.mxu0 %v3815
    %5220 = vmatpush.bf16.msra.mxu0 %v3807
    %5221 = vmatpush.bf16.msra.mxu0 %v3799
    %5222 = vmatpush.bf16.msra.mxu0 %v3791
    %5223 = vmatpush.bf16.msra.mxu0 %v3783
    %5224 = vmatpush.bf16.msra.mxu0 %v3775
    %5225 = vmatpush.bf16.msra.mxu0 %v3767
    %5226 = vmatmul.bf16.gmra.mxu0 %v1245
    %v5227 = vpop.f32.mrf.mxu0
    %v5228 = vadd.f32 %v5214, %v5227
    %v5229 = vpop.f32.mrf.mxu0
    %v5230 = vadd.f32 %v5216, %v5229
    %5231 = vdwg.mxu0
    %v5232 = vmax.f32 %v4444, 0.0
    %v5233 = vmax.f32 %v4556, 0.0
    %v5234 = vmax.f32 %v4668, 0.0
    %v5235 = vmax.f32 %v4780, 0.0
    %v5236 = vmax.f32 %v4892, 0.0
    %v5237 = vmax.f32 %v5004, 0.0
    %v5238 = vmax.f32 %v5116, 0.0
    %v5239 = vmax.f32 %v5228, 0.0
    %v5240 = vmax.f32 %v4446, 0.0
    %v5241 = vmax.f32 %v4558, 0.0
    %v5242 = vmax.f32 %v4670, 0.0
    %v5243 = vmax.f32 %v4782, 0.0
    %v5244 = vmax.f32 %v4894, 0.0
    %v5245 = vmax.f32 %v5006, 0.0
    %v5246 = vmax.f32 %v5118, 0.0
    %v5247 = vmax.f32 %v5230, 0.0
    %v5248 = vpack.c.bf16 %v5240, %v5232
    %v5249 = vpack.c.bf16 %v5241, %v5233
    %v5250 = vpack.c.bf16 %v5242, %v5234
    %v5251 = vpack.c.bf16 %v5243, %v5235
    %v5252 = vpack.c.bf16 %v5244, %v5236
    %v5253 = vpack.c.bf16 %v5245, %v5237
    %v5254 = vpack.c.bf16 %v5246, %v5238
    %v5255 = vpack.c.bf16 %v5247, %v5239
    %v5256 = vld [vmem:[#allocation11] sm:$0xff]
    %v5257 = vld [vmem:[#allocation11 + $0x8] sm:$0xff]
    %v5258 = vld [vmem:[#allocation11 + $0x10] sm:$0xff]
    %v5259 = vld [vmem:[#allocation11 + $0x18] sm:$0xff]
    %v5260 = vld [vmem:[#allocation11 + $0x20] sm:$0xff]
    %v5261 = vld [vmem:[#allocation11 + $0x28] sm:$0xff]
    %v5262 = vld [vmem:[#allocation11 + $0x30] sm:$0xff]
    %v5263 = vld [vmem:[#allocation11 + $0x38] sm:$0xff]
    %v5264 = vld [vmem:[#allocation11 + $0x40] sm:$0xff]
    %v5265 = vld [vmem:[#allocation11 + $0x48] sm:$0xff]
    %v5266 = vld [vmem:[#allocation11 + $0x50] sm:$0xff]
    %v5267 = vld [vmem:[#allocation11 + $0x58] sm:$0xff]
    %v5268 = vld [vmem:[#allocation11 + $0x60] sm:$0xff]
    %v5269 = vld [vmem:[#allocation11 + $0x68] sm:$0xff]
    %v5270 = vld [vmem:[#allocation11 + $0x70] sm:$0xff]
    %v5271 = vld [vmem:[#allocation11 + $0x78] sm:$0xff]
    %v5272 = vld [vmem:[#allocation11 + $0x80] sm:$0xff]
    %v5273 = vld [vmem:[#allocation11 + $0x88] sm:$0xff]
    %v5274 = vld [vmem:[#allocation11 + $0x90] sm:$0xff]
    %v5275 = vld [vmem:[#allocation11 + $0x98] sm:$0xff]
    %v5276 = vld [vmem:[#allocation11 + $0xa0] sm:$0xff]
    %v5277 = vld [vmem:[#allocation11 + $0xa8] sm:$0xff]
    %v5278 = vld [vmem:[#allocation11 + $0xb0] sm:$0xff]
    %v5279 = vld [vmem:[#allocation11 + $0xb8] sm:$0xff]
    %v5280 = vld [vmem:[#allocation11 + $0xc0] sm:$0xff]
    %v5281 = vld [vmem:[#allocation11 + $0xc8] sm:$0xff]
    %v5282 = vld [vmem:[#allocation11 + $0xd0] sm:$0xff]
    %v5283 = vld [vmem:[#allocation11 + $0xd8] sm:$0xff]
    %v5284 = vld [vmem:[#allocation11 + $0xe0] sm:$0xff]
    %v5285 = vld [vmem:[#allocation11 + $0xe8] sm:$0xff]
    %v5286 = vld [vmem:[#allocation11 + $0xf0] sm:$0xff]
    %v5287 = vld [vmem:[#allocation11 + $0xf8] sm:$0xff]
    %v5288 = vld [vmem:[#allocation11 + $0x100] sm:$0xff]
    %v5289 = vld [vmem:[#allocation11 + $0x108] sm:$0xff]
    %v5290 = vld [vmem:[#allocation11 + $0x110] sm:$0xff]
    %v5291 = vld [vmem:[#allocation11 + $0x118] sm:$0xff]
    %v5292 = vld [vmem:[#allocation11 + $0x120] sm:$0xff]
    %v5293 = vld [vmem:[#allocation11 + $0x128] sm:$0xff]
    %v5294 = vld [vmem:[#allocation11 + $0x130] sm:$0xff]
    %v5295 = vld [vmem:[#allocation11 + $0x138] sm:$0xff]
    %v5296 = vld [vmem:[#allocation11 + $0x140] sm:$0xff]
    %v5297 = vld [vmem:[#allocation11 + $0x148] sm:$0xff]
    %v5298 = vld [vmem:[#allocation11 + $0x150] sm:$0xff]
    %v5299 = vld [vmem:[#allocation11 + $0x158] sm:$0xff]
    %v5300 = vld [vmem:[#allocation11 + $0x160] sm:$0xff]
    %v5301 = vld [vmem:[#allocation11 + $0x168] sm:$0xff]
    %v5302 = vld [vmem:[#allocation11 + $0x170] sm:$0xff]
    %v5303 = vld [vmem:[#allocation11 + $0x178] sm:$0xff]
    %v5304 = vld [vmem:[#allocation11 + $0x180] sm:$0xff]
    %v5305 = vld [vmem:[#allocation11 + $0x188] sm:$0xff]
    %v5306 = vld [vmem:[#allocation11 + $0x190] sm:$0xff]
    %v5307 = vld [vmem:[#allocation11 + $0x198] sm:$0xff]
    %v5308 = vld [vmem:[#allocation11 + $0x1a0] sm:$0xff]
    %v5309 = vld [vmem:[#allocation11 + $0x1a8] sm:$0xff]
    %v5310 = vld [vmem:[#allocation11 + $0x1b0] sm:$0xff]
    %v5311 = vld [vmem:[#allocation11 + $0x1b8] sm:$0xff]
    %v5312 = vld [vmem:[#allocation11 + $0x1c0] sm:$0xff]
    %v5313 = vld [vmem:[#allocation11 + $0x1c8] sm:$0xff]
    %v5314 = vld [vmem:[#allocation11 + $0x1d0] sm:$0xff]
    %v5315 = vld [vmem:[#allocation11 + $0x1d8] sm:$0xff]
    %v5316 = vld [vmem:[#allocation11 + $0x1e0] sm:$0xff]
    %v5317 = vld [vmem:[#allocation11 + $0x1e8] sm:$0xff]
    %v5318 = vld [vmem:[#allocation11 + $0x1f0] sm:$0xff]
    %v5319 = vld [vmem:[#allocation11 + $0x1f8] sm:$0xff]
    %v5320 = vld [vmem:[#allocation11 + $0x200] sm:$0xff]
    %v5321 = vld [vmem:[#allocation11 + $0x208] sm:$0xff]
    %v5322 = vld [vmem:[#allocation11 + $0x210] sm:$0xff]
    %v5323 = vld [vmem:[#allocation11 + $0x218] sm:$0xff]
    %v5324 = vld [vmem:[#allocation11 + $0x220] sm:$0xff]
    %v5325 = vld [vmem:[#allocation11 + $0x228] sm:$0xff]
    %v5326 = vld [vmem:[#allocation11 + $0x230] sm:$0xff]
    %v5327 = vld [vmem:[#allocation11 + $0x238] sm:$0xff]
    %v5328 = vld [vmem:[#allocation11 + $0x240] sm:$0xff]
    %v5329 = vld [vmem:[#allocation11 + $0x248] sm:$0xff]
    %v5330 = vld [vmem:[#allocation11 + $0x250] sm:$0xff]
    %v5331 = vld [vmem:[#allocation11 + $0x258] sm:$0xff]
    %v5332 = vld [vmem:[#allocation11 + $0x260] sm:$0xff]
    %v5333 = vld [vmem:[#allocation11 + $0x268] sm:$0xff]
    %v5334 = vld [vmem:[#allocation11 + $0x270] sm:$0xff]
    %v5335 = vld [vmem:[#allocation11 + $0x278] sm:$0xff]
    %v5336 = vld [vmem:[#allocation11 + $0x280] sm:$0xff]
    %v5337 = vld [vmem:[#allocation11 + $0x288] sm:$0xff]
    %v5338 = vld [vmem:[#allocation11 + $0x290] sm:$0xff]
    %v5339 = vld [vmem:[#allocation11 + $0x298] sm:$0xff]
    %v5340 = vld [vmem:[#allocation11 + $0x2a0] sm:$0xff]
    %v5341 = vld [vmem:[#allocation11 + $0x2a8] sm:$0xff]
    %v5342 = vld [vmem:[#allocation11 + $0x2b0] sm:$0xff]
    %v5343 = vld [vmem:[#allocation11 + $0x2b8] sm:$0xff]
    %v5344 = vld [vmem:[#allocation11 + $0x2c0] sm:$0xff]
    %v5345 = vld [vmem:[#allocation11 + $0x2c8] sm:$0xff]
    %v5346 = vld [vmem:[#allocation11 + $0x2d0] sm:$0xff]
    %v5347 = vld [vmem:[#allocation11 + $0x2d8] sm:$0xff]
    %v5348 = vld [vmem:[#allocation11 + $0x2e0] sm:$0xff]
    %v5349 = vld [vmem:[#allocation11 + $0x2e8] sm:$0xff]
    %v5350 = vld [vmem:[#allocation11 + $0x2f0] sm:$0xff]
    %v5351 = vld [vmem:[#allocation11 + $0x2f8] sm:$0xff]
    %v5352 = vld [vmem:[#allocation11 + $0x300] sm:$0xff]
    %v5353 = vld [vmem:[#allocation11 + $0x308] sm:$0xff]
    %v5354 = vld [vmem:[#allocation11 + $0x310] sm:$0xff]
    %v5355 = vld [vmem:[#allocation11 + $0x318] sm:$0xff]
    %v5356 = vld [vmem:[#allocation11 + $0x320] sm:$0xff]
    %v5357 = vld [vmem:[#allocation11 + $0x328] sm:$0xff]
    %v5358 = vld [vmem:[#allocation11 + $0x330] sm:$0xff]
    %v5359 = vld [vmem:[#allocation11 + $0x338] sm:$0xff]
    %v5360 = vld [vmem:[#allocation11 + $0x340] sm:$0xff]
    %v5361 = vld [vmem:[#allocation11 + $0x348] sm:$0xff]
    %v5362 = vld [vmem:[#allocation11 + $0x350] sm:$0xff]
    %v5363 = vld [vmem:[#allocation11 + $0x358] sm:$0xff]
    %v5364 = vld [vmem:[#allocation11 + $0x360] sm:$0xff]
    %v5365 = vld [vmem:[#allocation11 + $0x368] sm:$0xff]
    %v5366 = vld [vmem:[#allocation11 + $0x370] sm:$0xff]
    %v5367 = vld [vmem:[#allocation11 + $0x378] sm:$0xff]
    %v5368 = vld [vmem:[#allocation11 + $0x380] sm:$0xff]
    %v5369 = vld [vmem:[#allocation11 + $0x388] sm:$0xff]
    %v5370 = vld [vmem:[#allocation11 + $0x390] sm:$0xff]
    %v5371 = vld [vmem:[#allocation11 + $0x398] sm:$0xff]
    %v5372 = vld [vmem:[#allocation11 + $0x3a0] sm:$0xff]
    %v5373 = vld [vmem:[#allocation11 + $0x3a8] sm:$0xff]
    %v5374 = vld [vmem:[#allocation11 + $0x3b0] sm:$0xff]
    %v5375 = vld [vmem:[#allocation11 + $0x3b8] sm:$0xff]
    %v5376 = vld [vmem:[#allocation11 + $0x3c0] sm:$0xff]
    %v5377 = vld [vmem:[#allocation11 + $0x3c8] sm:$0xff]
    %v5378 = vld [vmem:[#allocation11 + $0x3d0] sm:$0xff]
    %v5379 = vld [vmem:[#allocation11 + $0x3d8] sm:$0xff]
    %v5380 = vld [vmem:[#allocation11 + $0x3e0] sm:$0xff]
    %v5381 = vld [vmem:[#allocation11 + $0x3e8] sm:$0xff]
    %v5382 = vld [vmem:[#allocation11 + $0x3f0] sm:$0xff]
    %v5383 = vld [vmem:[#allocation11 + $0x3f8] sm:$0xff]
    %v5384 = vld [vmem:[#allocation11 + $0x400] sm:$0xff]
    %v5385 = vld [vmem:[#allocation11 + $0x408] sm:$0xff]
    %v5386 = vld [vmem:[#allocation11 + $0x410] sm:$0xff]
    %v5387 = vld [vmem:[#allocation11 + $0x418] sm:$0xff]
    %v5388 = vld [vmem:[#allocation11 + $0x420] sm:$0xff]
    %v5389 = vld [vmem:[#allocation11 + $0x428] sm:$0xff]
    %v5390 = vld [vmem:[#allocation11 + $0x430] sm:$0xff]
    %v5391 = vld [vmem:[#allocation11 + $0x438] sm:$0xff]
    %v5392 = vld [vmem:[#allocation11 + $0x440] sm:$0xff]
    %v5393 = vld [vmem:[#allocation11 + $0x448] sm:$0xff]
    %v5394 = vld [vmem:[#allocation11 + $0x450] sm:$0xff]
    %v5395 = vld [vmem:[#allocation11 + $0x458] sm:$0xff]
    %v5396 = vld [vmem:[#allocation11 + $0x460] sm:$0xff]
    %v5397 = vld [vmem:[#allocation11 + $0x468] sm:$0xff]
    %v5398 = vld [vmem:[#allocation11 + $0x470] sm:$0xff]
    %v5399 = vld [vmem:[#allocation11 + $0x478] sm:$0xff]
    %v5400 = vld [vmem:[#allocation11 + $0x480] sm:$0xff]
    %v5401 = vld [vmem:[#allocation11 + $0x488] sm:$0xff]
    %v5402 = vld [vmem:[#allocation11 + $0x490] sm:$0xff]
    %v5403 = vld [vmem:[#allocation11 + $0x498] sm:$0xff]
    %v5404 = vld [vmem:[#allocation11 + $0x4a0] sm:$0xff]
    %v5405 = vld [vmem:[#allocation11 + $0x4a8] sm:$0xff]
    %v5406 = vld [vmem:[#allocation11 + $0x4b0] sm:$0xff]
    %v5407 = vld [vmem:[#allocation11 + $0x4b8] sm:$0xff]
    %v5408 = vld [vmem:[#allocation11 + $0x4c0] sm:$0xff]
    %v5409 = vld [vmem:[#allocation11 + $0x4c8] sm:$0xff]
    %v5410 = vld [vmem:[#allocation11 + $0x4d0] sm:$0xff]
    %v5411 = vld [vmem:[#allocation11 + $0x4d8] sm:$0xff]
    %v5412 = vld [vmem:[#allocation11 + $0x4e0] sm:$0xff]
    %v5413 = vld [vmem:[#allocation11 + $0x4e8] sm:$0xff]
    %v5414 = vld [vmem:[#allocation11 + $0x4f0] sm:$0xff]
    %v5415 = vld [vmem:[#allocation11 + $0x4f8] sm:$0xff]
    %v5416 = vld [vmem:[#allocation11 + $0x500] sm:$0xff]
    %v5417 = vld [vmem:[#allocation11 + $0x508] sm:$0xff]
    %v5418 = vld [vmem:[#allocation11 + $0x510] sm:$0xff]
    %v5419 = vld [vmem:[#allocation11 + $0x518] sm:$0xff]
    %v5420 = vld [vmem:[#allocation11 + $0x520] sm:$0xff]
    %v5421 = vld [vmem:[#allocation11 + $0x528] sm:$0xff]
    %v5422 = vld [vmem:[#allocation11 + $0x530] sm:$0xff]
    %v5423 = vld [vmem:[#allocation11 + $0x538] sm:$0xff]
    %v5424 = vld [vmem:[#allocation11 + $0x540] sm:$0xff]
    %v5425 = vld [vmem:[#allocation11 + $0x548] sm:$0xff]
    %v5426 = vld [vmem:[#allocation11 + $0x550] sm:$0xff]
    %v5427 = vld [vmem:[#allocation11 + $0x558] sm:$0xff]
    %v5428 = vld [vmem:[#allocation11 + $0x560] sm:$0xff]
    %v5429 = vld [vmem:[#allocation11 + $0x568] sm:$0xff]
    %v5430 = vld [vmem:[#allocation11 + $0x570] sm:$0xff]
    %v5431 = vld [vmem:[#allocation11 + $0x578] sm:$0xff]
    %v5432 = vld [vmem:[#allocation11 + $0x580] sm:$0xff]
    %v5433 = vld [vmem:[#allocation11 + $0x588] sm:$0xff]
    %v5434 = vld [vmem:[#allocation11 + $0x590] sm:$0xff]
    %v5435 = vld [vmem:[#allocation11 + $0x598] sm:$0xff]
    %v5436 = vld [vmem:[#allocation11 + $0x5a0] sm:$0xff]
    %v5437 = vld [vmem:[#allocation11 + $0x5a8] sm:$0xff]
    %v5438 = vld [vmem:[#allocation11 + $0x5b0] sm:$0xff]
    %v5439 = vld [vmem:[#allocation11 + $0x5b8] sm:$0xff]
    %v5440 = vld [vmem:[#allocation11 + $0x5c0] sm:$0xff]
    %v5441 = vld [vmem:[#allocation11 + $0x5c8] sm:$0xff]
    %v5442 = vld [vmem:[#allocation11 + $0x5d0] sm:$0xff]
    %v5443 = vld [vmem:[#allocation11 + $0x5d8] sm:$0xff]
    %v5444 = vld [vmem:[#allocation11 + $0x5e0] sm:$0xff]
    %v5445 = vld [vmem:[#allocation11 + $0x5e8] sm:$0xff]
    %v5446 = vld [vmem:[#allocation11 + $0x5f0] sm:$0xff]
    %v5447 = vld [vmem:[#allocation11 + $0x5f8] sm:$0xff]
    %v5448 = vld [vmem:[#allocation11 + $0x600] sm:$0xff]
    %v5449 = vld [vmem:[#allocation11 + $0x608] sm:$0xff]
    %v5450 = vld [vmem:[#allocation11 + $0x610] sm:$0xff]
    %v5451 = vld [vmem:[#allocation11 + $0x618] sm:$0xff]
    %v5452 = vld [vmem:[#allocation11 + $0x620] sm:$0xff]
    %v5453 = vld [vmem:[#allocation11 + $0x628] sm:$0xff]
    %v5454 = vld [vmem:[#allocation11 + $0x630] sm:$0xff]
    %v5455 = vld [vmem:[#allocation11 + $0x638] sm:$0xff]
    %v5456 = vld [vmem:[#allocation11 + $0x640] sm:$0xff]
    %v5457 = vld [vmem:[#allocation11 + $0x648] sm:$0xff]
    %v5458 = vld [vmem:[#allocation11 + $0x650] sm:$0xff]
    %v5459 = vld [vmem:[#allocation11 + $0x658] sm:$0xff]
    %v5460 = vld [vmem:[#allocation11 + $0x660] sm:$0xff]
    %v5461 = vld [vmem:[#allocation11 + $0x668] sm:$0xff]
    %v5462 = vld [vmem:[#allocation11 + $0x670] sm:$0xff]
    %v5463 = vld [vmem:[#allocation11 + $0x678] sm:$0xff]
    %v5464 = vld [vmem:[#allocation11 + $0x680] sm:$0xff]
    %v5465 = vld [vmem:[#allocation11 + $0x688] sm:$0xff]
    %v5466 = vld [vmem:[#allocation11 + $0x690] sm:$0xff]
    %v5467 = vld [vmem:[#allocation11 + $0x698] sm:$0xff]
    %v5468 = vld [vmem:[#allocation11 + $0x6a0] sm:$0xff]
    %v5469 = vld [vmem:[#allocation11 + $0x6a8] sm:$0xff]
    %v5470 = vld [vmem:[#allocation11 + $0x6b0] sm:$0xff]
    %v5471 = vld [vmem:[#allocation11 + $0x6b8] sm:$0xff]
    %v5472 = vld [vmem:[#allocation11 + $0x6c0] sm:$0xff]
    %v5473 = vld [vmem:[#allocation11 + $0x6c8] sm:$0xff]
    %v5474 = vld [vmem:[#allocation11 + $0x6d0] sm:$0xff]
    %v5475 = vld [vmem:[#allocation11 + $0x6d8] sm:$0xff]
    %v5476 = vld [vmem:[#allocation11 + $0x6e0] sm:$0xff]
    %v5477 = vld [vmem:[#allocation11 + $0x6e8] sm:$0xff]
    %v5478 = vld [vmem:[#allocation11 + $0x6f0] sm:$0xff]
    %v5479 = vld [vmem:[#allocation11 + $0x6f8] sm:$0xff]
    %v5480 = vld [vmem:[#allocation11 + $0x700] sm:$0xff]
    %v5481 = vld [vmem:[#allocation11 + $0x708] sm:$0xff]
    %v5482 = vld [vmem:[#allocation11 + $0x710] sm:$0xff]
    %v5483 = vld [vmem:[#allocation11 + $0x718] sm:$0xff]
    %v5484 = vld [vmem:[#allocation11 + $0x720] sm:$0xff]
    %v5485 = vld [vmem:[#allocation11 + $0x728] sm:$0xff]
    %v5486 = vld [vmem:[#allocation11 + $0x730] sm:$0xff]
    %v5487 = vld [vmem:[#allocation11 + $0x738] sm:$0xff]
    %v5488 = vld [vmem:[#allocation11 + $0x740] sm:$0xff]
    %v5489 = vld [vmem:[#allocation11 + $0x748] sm:$0xff]
    %v5490 = vld [vmem:[#allocation11 + $0x750] sm:$0xff]
    %v5491 = vld [vmem:[#allocation11 + $0x758] sm:$0xff]
    %v5492 = vld [vmem:[#allocation11 + $0x760] sm:$0xff]
    %v5493 = vld [vmem:[#allocation11 + $0x768] sm:$0xff]
    %v5494 = vld [vmem:[#allocation11 + $0x770] sm:$0xff]
    %v5495 = vld [vmem:[#allocation11 + $0x778] sm:$0xff]
    %v5496 = vld [vmem:[#allocation11 + $0x780] sm:$0xff]
    %v5497 = vld [vmem:[#allocation11 + $0x788] sm:$0xff]
    %v5498 = vld [vmem:[#allocation11 + $0x790] sm:$0xff]
    %v5499 = vld [vmem:[#allocation11 + $0x798] sm:$0xff]
    %v5500 = vld [vmem:[#allocation11 + $0x7a0] sm:$0xff]
    %v5501 = vld [vmem:[#allocation11 + $0x7a8] sm:$0xff]
    %v5502 = vld [vmem:[#allocation11 + $0x7b0] sm:$0xff]
    %v5503 = vld [vmem:[#allocation11 + $0x7b8] sm:$0xff]
    %v5504 = vld [vmem:[#allocation11 + $0x7c0] sm:$0xff]
    %v5505 = vld [vmem:[#allocation11 + $0x7c8] sm:$0xff]
    %v5506 = vld [vmem:[#allocation11 + $0x7d0] sm:$0xff]
    %v5507 = vld [vmem:[#allocation11 + $0x7d8] sm:$0xff]
    %v5508 = vld [vmem:[#allocation11 + $0x7e0] sm:$0xff]
    %v5509 = vld [vmem:[#allocation11 + $0x7e8] sm:$0xff]
    %v5510 = vld [vmem:[#allocation11 + $0x7f0] sm:$0xff]
    %v5511 = vld [vmem:[#allocation11 + $0x7f8] sm:$0xff]
    %v5512 = vld [vmem:[#allocation13] sm:$0xf]
    %v5514 = vperm.slane %v5512, 0
    %v5515 = vperm.slane %v5512, 1
    %v5516 = vperm.slane %v5512, 2
    %v5517 = vperm.slane %v5512, 3
    %v5778 = vunpack.c.l.b16 %v5256
    %v5779 = vunpack.c.h.b16 %v5256
    %v5780 = vunpack.c.l.b16 %v5257
    %v5781 = vunpack.c.h.b16 %v5257
    %v5782 = vunpack.c.l.b16 %v5258
    %v5783 = vunpack.c.h.b16 %v5258
    %v5784 = vunpack.c.l.b16 %v5259
    %v5785 = vunpack.c.h.b16 %v5259
    %v5786 = vunpack.c.l.b16 %v5260
    %v5787 = vunpack.c.h.b16 %v5260
    %v5788 = vunpack.c.l.b16 %v5261
    %v5789 = vunpack.c.h.b16 %v5261
    %v5790 = vunpack.c.l.b16 %v5262
    %v5791 = vunpack.c.h.b16 %v5262
    %v5792 = vunpack.c.l.b16 %v5263
    %v5793 = vunpack.c.h.b16 %v5263
    %v5794 = vunpack.c.l.b16 %v5264
    %v5795 = vunpack.c.h.b16 %v5264
    %v5796 = vunpack.c.l.b16 %v5265
    %v5797 = vunpack.c.h.b16 %v5265
    %v5798 = vunpack.c.l.b16 %v5266
    %v5799 = vunpack.c.h.b16 %v5266
    %v5800 = vunpack.c.l.b16 %v5267
    %v5801 = vunpack.c.h.b16 %v5267
    %v5802 = vunpack.c.l.b16 %v5268
    %v5803 = vunpack.c.h.b16 %v5268
    %v5804 = vunpack.c.l.b16 %v5269
    %v5805 = vunpack.c.h.b16 %v5269
    %v5806 = vunpack.c.l.b16 %v5270
    %v5807 = vunpack.c.h.b16 %v5270
    %v5808 = vunpack.c.l.b16 %v5271
    %v5809 = vunpack.c.h.b16 %v5271
    %v5810 = vunpack.c.l.b16 %v5272
    %v5811 = vunpack.c.h.b16 %v5272
    %v5812 = vunpack.c.l.b16 %v5273
    %v5813 = vunpack.c.h.b16 %v5273
    %v5814 = vunpack.c.l.b16 %v5274
    %v5815 = vunpack.c.h.b16 %v5274
    %v5816 = vunpack.c.l.b16 %v5275
    %v5817 = vunpack.c.h.b16 %v5275
    %v5818 = vunpack.c.l.b16 %v5276
    %v5819 = vunpack.c.h.b16 %v5276
    %v5820 = vunpack.c.l.b16 %v5277
    %v5821 = vunpack.c.h.b16 %v5277
    %v5822 = vunpack.c.l.b16 %v5278
    %v5823 = vunpack.c.h.b16 %v5278
    %v5824 = vunpack.c.l.b16 %v5279
    %v5825 = vunpack.c.h.b16 %v5279
    %v5826 = vunpack.c.l.b16 %v5280
    %v5827 = vunpack.c.h.b16 %v5280
    %v5828 = vunpack.c.l.b16 %v5281
    %v5829 = vunpack.c.h.b16 %v5281
    %v5830 = vunpack.c.l.b16 %v5282
    %v5831 = vunpack.c.h.b16 %v5282
    %v5832 = vunpack.c.l.b16 %v5283
    %v5833 = vunpack.c.h.b16 %v5283
    %v5834 = vunpack.c.l.b16 %v5284
    %v5835 = vunpack.c.h.b16 %v5284
    %v5836 = vunpack.c.l.b16 %v5285
    %v5837 = vunpack.c.h.b16 %v5285
    %v5838 = vunpack.c.l.b16 %v5286
    %v5839 = vunpack.c.h.b16 %v5286
    %v5840 = vunpack.c.l.b16 %v5287
    %v5841 = vunpack.c.h.b16 %v5287
    %v5842 = vunpack.c.l.b16 %v5288
    %v5843 = vunpack.c.h.b16 %v5288
    %v5844 = vunpack.c.l.b16 %v5289
    %v5845 = vunpack.c.h.b16 %v5289
    %v5846 = vunpack.c.l.b16 %v5290
    %v5847 = vunpack.c.h.b16 %v5290
    %v5848 = vunpack.c.l.b16 %v5291
    %v5849 = vunpack.c.h.b16 %v5291
    %v5850 = vunpack.c.l.b16 %v5292
    %v5851 = vunpack.c.h.b16 %v5292
    %v5852 = vunpack.c.l.b16 %v5293
    %v5853 = vunpack.c.h.b16 %v5293
    %v5854 = vunpack.c.l.b16 %v5294
    %v5855 = vunpack.c.h.b16 %v5294
    %v5856 = vunpack.c.l.b16 %v5295
    %v5857 = vunpack.c.h.b16 %v5295
    %v5858 = vunpack.c.l.b16 %v5296
    %v5859 = vunpack.c.h.b16 %v5296
    %v5860 = vunpack.c.l.b16 %v5297
    %v5861 = vunpack.c.h.b16 %v5297
    %v5862 = vunpack.c.l.b16 %v5298
    %v5863 = vunpack.c.h.b16 %v5298
    %v5864 = vunpack.c.l.b16 %v5299
    %v5865 = vunpack.c.h.b16 %v5299
    %v5866 = vunpack.c.l.b16 %v5300
    %v5867 = vunpack.c.h.b16 %v5300
    %v5868 = vunpack.c.l.b16 %v5301
    %v5869 = vunpack.c.h.b16 %v5301
    %v5870 = vunpack.c.l.b16 %v5302
    %v5871 = vunpack.c.h.b16 %v5302
    %v5872 = vunpack.c.l.b16 %v5303
    %v5873 = vunpack.c.h.b16 %v5303
    %v5874 = vunpack.c.l.b16 %v5304
    %v5875 = vunpack.c.h.b16 %v5304
    %v5876 = vunpack.c.l.b16 %v5305
    %v5877 = vunpack.c.h.b16 %v5305
    %v5878 = vunpack.c.l.b16 %v5306
    %v5879 = vunpack.c.h.b16 %v5306
    %v5880 = vunpack.c.l.b16 %v5307
    %v5881 = vunpack.c.h.b16 %v5307
    %v5882 = vunpack.c.l.b16 %v5308
    %v5883 = vunpack.c.h.b16 %v5308
    %v5884 = vunpack.c.l.b16 %v5309
    %v5885 = vunpack.c.h.b16 %v5309
    %v5886 = vunpack.c.l.b16 %v5310
    %v5887 = vunpack.c.h.b16 %v5310
    %v5888 = vunpack.c.l.b16 %v5311
    %v5889 = vunpack.c.h.b16 %v5311
    %v5890 = vunpack.c.l.b16 %v5312
    %v5891 = vunpack.c.h.b16 %v5312
    %v5892 = vunpack.c.l.b16 %v5313
    %v5893 = vunpack.c.h.b16 %v5313
    %v5894 = vunpack.c.l.b16 %v5314
    %v5895 = vunpack.c.h.b16 %v5314
    %v5896 = vunpack.c.l.b16 %v5315
    %v5897 = vunpack.c.h.b16 %v5315
    %v5898 = vunpack.c.l.b16 %v5316
    %v5899 = vunpack.c.h.b16 %v5316
    %v5900 = vunpack.c.l.b16 %v5317
    %v5901 = vunpack.c.h.b16 %v5317
    %v5902 = vunpack.c.l.b16 %v5318
    %v5903 = vunpack.c.h.b16 %v5318
    %v5904 = vunpack.c.l.b16 %v5319
    %v5905 = vunpack.c.h.b16 %v5319
    %v5906 = vunpack.c.l.b16 %v5320
    %v5907 = vunpack.c.h.b16 %v5320
    %v5908 = vunpack.c.l.b16 %v5321
    %v5909 = vunpack.c.h.b16 %v5321
    %v5910 = vunpack.c.l.b16 %v5322
    %v5911 = vunpack.c.h.b16 %v5322
    %v5912 = vunpack.c.l.b16 %v5323
    %v5913 = vunpack.c.h.b16 %v5323
    %v5914 = vunpack.c.l.b16 %v5324
    %v5915 = vunpack.c.h.b16 %v5324
    %v5916 = vunpack.c.l.b16 %v5325
    %v5917 = vunpack.c.h.b16 %v5325
    %v5918 = vunpack.c.l.b16 %v5326
    %v5919 = vunpack.c.h.b16 %v5326
    %v5920 = vunpack.c.l.b16 %v5327
    %v5921 = vunpack.c.h.b16 %v5327
    %v5922 = vunpack.c.l.b16 %v5328
    %v5923 = vunpack.c.h.b16 %v5328
    %v5924 = vunpack.c.l.b16 %v5329
    %v5925 = vunpack.c.h.b16 %v5329
    %v5926 = vunpack.c.l.b16 %v5330
    %v5927 = vunpack.c.h.b16 %v5330
    %v5928 = vunpack.c.l.b16 %v5331
    %v5929 = vunpack.c.h.b16 %v5331
    %v5930 = vunpack.c.l.b16 %v5332
    %v5931 = vunpack.c.h.b16 %v5332
    %v5932 = vunpack.c.l.b16 %v5333
    %v5933 = vunpack.c.h.b16 %v5333
    %v5934 = vunpack.c.l.b16 %v5334
    %v5935 = vunpack.c.h.b16 %v5334
    %v5936 = vunpack.c.l.b16 %v5335
    %v5937 = vunpack.c.h.b16 %v5335
    %v5938 = vunpack.c.l.b16 %v5336
    %v5939 = vunpack.c.h.b16 %v5336
    %v5940 = vunpack.c.l.b16 %v5337
    %v5941 = vunpack.c.h.b16 %v5337
    %v5942 = vunpack.c.l.b16 %v5338
    %v5943 = vunpack.c.h.b16 %v5338
    %v5944 = vunpack.c.l.b16 %v5339
    %v5945 = vunpack.c.h.b16 %v5339
    %v5946 = vunpack.c.l.b16 %v5340
    %v5947 = vunpack.c.h.b16 %v5340
    %v5948 = vunpack.c.l.b16 %v5341
    %v5949 = vunpack.c.h.b16 %v5341
    %v5950 = vunpack.c.l.b16 %v5342
    %v5951 = vunpack.c.h.b16 %v5342
    %v5952 = vunpack.c.l.b16 %v5343
    %v5953 = vunpack.c.h.b16 %v5343
    %v5954 = vunpack.c.l.b16 %v5344
    %v5955 = vunpack.c.h.b16 %v5344
    %v5956 = vunpack.c.l.b16 %v5345
    %v5957 = vunpack.c.h.b16 %v5345
    %v5958 = vunpack.c.l.b16 %v5346
    %v5959 = vunpack.c.h.b16 %v5346
    %v5960 = vunpack.c.l.b16 %v5347
    %v5961 = vunpack.c.h.b16 %v5347
    %v5962 = vunpack.c.l.b16 %v5348
    %v5963 = vunpack.c.h.b16 %v5348
    %v5964 = vunpack.c.l.b16 %v5349
    %v5965 = vunpack.c.h.b16 %v5349
    %v5966 = vunpack.c.l.b16 %v5350
    %v5967 = vunpack.c.h.b16 %v5350
    %v5968 = vunpack.c.l.b16 %v5351
    %v5969 = vunpack.c.h.b16 %v5351
    %v5970 = vunpack.c.l.b16 %v5352
    %v5971 = vunpack.c.h.b16 %v5352
    %v5972 = vunpack.c.l.b16 %v5353
    %v5973 = vunpack.c.h.b16 %v5353
    %v5974 = vunpack.c.l.b16 %v5354
    %v5975 = vunpack.c.h.b16 %v5354
    %v5976 = vunpack.c.l.b16 %v5355
    %v5977 = vunpack.c.h.b16 %v5355
    %v5978 = vunpack.c.l.b16 %v5356
    %v5979 = vunpack.c.h.b16 %v5356
    %v5980 = vunpack.c.l.b16 %v5357
    %v5981 = vunpack.c.h.b16 %v5357
    %v5982 = vunpack.c.l.b16 %v5358
    %v5983 = vunpack.c.h.b16 %v5358
    %v5984 = vunpack.c.l.b16 %v5359
    %v5985 = vunpack.c.h.b16 %v5359
    %v5986 = vunpack.c.l.b16 %v5360
    %v5987 = vunpack.c.h.b16 %v5360
    %v5988 = vunpack.c.l.b16 %v5361
    %v5989 = vunpack.c.h.b16 %v5361
    %v5990 = vunpack.c.l.b16 %v5362
    %v5991 = vunpack.c.h.b16 %v5362
    %v5992 = vunpack.c.l.b16 %v5363
    %v5993 = vunpack.c.h.b16 %v5363
    %v5994 = vunpack.c.l.b16 %v5364
    %v5995 = vunpack.c.h.b16 %v5364
    %v5996 = vunpack.c.l.b16 %v5365
    %v5997 = vunpack.c.h.b16 %v5365
    %v5998 = vunpack.c.l.b16 %v5366
    %v5999 = vunpack.c.h.b16 %v5366
    %v6000 = vunpack.c.l.b16 %v5367
    %v6001 = vunpack.c.h.b16 %v5367
    %v6002 = vunpack.c.l.b16 %v5368
    %v6003 = vunpack.c.h.b16 %v5368
    %v6004 = vunpack.c.l.b16 %v5369
    %v6005 = vunpack.c.h.b16 %v5369
    %v6006 = vunpack.c.l.b16 %v5370
    %v6007 = vunpack.c.h.b16 %v5370
    %v6008 = vunpack.c.l.b16 %v5371
    %v6009 = vunpack.c.h.b16 %v5371
    %v6010 = vunpack.c.l.b16 %v5372
    %v6011 = vunpack.c.h.b16 %v5372
    %v6012 = vunpack.c.l.b16 %v5373
    %v6013 = vunpack.c.h.b16 %v5373
    %v6014 = vunpack.c.l.b16 %v5374
    %v6015 = vunpack.c.h.b16 %v5374
    %v6016 = vunpack.c.l.b16 %v5375
    %v6017 = vunpack.c.h.b16 %v5375
    %v6018 = vunpack.c.l.b16 %v5376
    %v6019 = vunpack.c.h.b16 %v5376
    %v6020 = vunpack.c.l.b16 %v5377
    %v6021 = vunpack.c.h.b16 %v5377
    %v6022 = vunpack.c.l.b16 %v5378
    %v6023 = vunpack.c.h.b16 %v5378
    %v6024 = vunpack.c.l.b16 %v5379
    %v6025 = vunpack.c.h.b16 %v5379
    %v6026 = vunpack.c.l.b16 %v5380
    %v6027 = vunpack.c.h.b16 %v5380
    %v6028 = vunpack.c.l.b16 %v5381
    %v6029 = vunpack.c.h.b16 %v5381
    %v6030 = vunpack.c.l.b16 %v5382
    %v6031 = vunpack.c.h.b16 %v5382
    %v6032 = vunpack.c.l.b16 %v5383
    %v6033 = vunpack.c.h.b16 %v5383
    %v6034 = vunpack.c.l.b16 %v5384
    %v6035 = vunpack.c.h.b16 %v5384
    %v6036 = vunpack.c.l.b16 %v5385
    %v6037 = vunpack.c.h.b16 %v5385
    %v6038 = vunpack.c.l.b16 %v5386
    %v6039 = vunpack.c.h.b16 %v5386
    %v6040 = vunpack.c.l.b16 %v5387
    %v6041 = vunpack.c.h.b16 %v5387
    %v6042 = vunpack.c.l.b16 %v5388
    %v6043 = vunpack.c.h.b16 %v5388
    %v6044 = vunpack.c.l.b16 %v5389
    %v6045 = vunpack.c.h.b16 %v5389
    %v6046 = vunpack.c.l.b16 %v5390
    %v6047 = vunpack.c.h.b16 %v5390
    %v6048 = vunpack.c.l.b16 %v5391
    %v6049 = vunpack.c.h.b16 %v5391
    %v6050 = vunpack.c.l.b16 %v5392
    %v6051 = vunpack.c.h.b16 %v5392
    %v6052 = vunpack.c.l.b16 %v5393
    %v6053 = vunpack.c.h.b16 %v5393
    %v6054 = vunpack.c.l.b16 %v5394
    %v6055 = vunpack.c.h.b16 %v5394
    %v6056 = vunpack.c.l.b16 %v5395
    %v6057 = vunpack.c.h.b16 %v5395
    %v6058 = vunpack.c.l.b16 %v5396
    %v6059 = vunpack.c.h.b16 %v5396
    %v6060 = vunpack.c.l.b16 %v5397
    %v6061 = vunpack.c.h.b16 %v5397
    %v6062 = vunpack.c.l.b16 %v5398
    %v6063 = vunpack.c.h.b16 %v5398
    %v6064 = vunpack.c.l.b16 %v5399
    %v6065 = vunpack.c.h.b16 %v5399
    %v6066 = vunpack.c.l.b16 %v5400
    %v6067 = vunpack.c.h.b16 %v5400
    %v6068 = vunpack.c.l.b16 %v5401
    %v6069 = vunpack.c.h.b16 %v5401
    %v6070 = vunpack.c.l.b16 %v5402
    %v6071 = vunpack.c.h.b16 %v5402
    %v6072 = vunpack.c.l.b16 %v5403
    %v6073 = vunpack.c.h.b16 %v5403
    %v6074 = vunpack.c.l.b16 %v5404
    %v6075 = vunpack.c.h.b16 %v5404
    %v6076 = vunpack.c.l.b16 %v5405
    %v6077 = vunpack.c.h.b16 %v5405
    %v6078 = vunpack.c.l.b16 %v5406
    %v6079 = vunpack.c.h.b16 %v5406
    %v6080 = vunpack.c.l.b16 %v5407
    %v6081 = vunpack.c.h.b16 %v5407
    %v6082 = vunpack.c.l.b16 %v5408
    %v6083 = vunpack.c.h.b16 %v5408
    %v6084 = vunpack.c.l.b16 %v5409
    %v6085 = vunpack.c.h.b16 %v5409
    %v6086 = vunpack.c.l.b16 %v5410
    %v6087 = vunpack.c.h.b16 %v5410
    %v6088 = vunpack.c.l.b16 %v5411
    %v6089 = vunpack.c.h.b16 %v5411
    %v6090 = vunpack.c.l.b16 %v5412
    %v6091 = vunpack.c.h.b16 %v5412
    %v6092 = vunpack.c.l.b16 %v5413
    %v6093 = vunpack.c.h.b16 %v5413
    %v6094 = vunpack.c.l.b16 %v5414
    %v6095 = vunpack.c.h.b16 %v5414
    %v6096 = vunpack.c.l.b16 %v5415
    %v6097 = vunpack.c.h.b16 %v5415
    %v6098 = vunpack.c.l.b16 %v5416
    %v6099 = vunpack.c.h.b16 %v5416
    %v6100 = vunpack.c.l.b16 %v5417
    %v6101 = vunpack.c.h.b16 %v5417
    %v6102 = vunpack.c.l.b16 %v5418
    %v6103 = vunpack.c.h.b16 %v5418
    %v6104 = vunpack.c.l.b16 %v5419
    %v6105 = vunpack.c.h.b16 %v5419
    %v6106 = vunpack.c.l.b16 %v5420
    %v6107 = vunpack.c.h.b16 %v5420
    %v6108 = vunpack.c.l.b16 %v5421
    %v6109 = vunpack.c.h.b16 %v5421
    %v6110 = vunpack.c.l.b16 %v5422
    %v6111 = vunpack.c.h.b16 %v5422
    %v6112 = vunpack.c.l.b16 %v5423
    %v6113 = vunpack.c.h.b16 %v5423
    %v6114 = vunpack.c.l.b16 %v5424
    %v6115 = vunpack.c.h.b16 %v5424
    %v6116 = vunpack.c.l.b16 %v5425
    %v6117 = vunpack.c.h.b16 %v5425
    %v6118 = vunpack.c.l.b16 %v5426
    %v6119 = vunpack.c.h.b16 %v5426
    %v6120 = vunpack.c.l.b16 %v5427
    %v6121 = vunpack.c.h.b16 %v5427
    %v6122 = vunpack.c.l.b16 %v5428
    %v6123 = vunpack.c.h.b16 %v5428
    %v6124 = vunpack.c.l.b16 %v5429
    %v6125 = vunpack.c.h.b16 %v5429
    %v6126 = vunpack.c.l.b16 %v5430
    %v6127 = vunpack.c.h.b16 %v5430
    %v6128 = vunpack.c.l.b16 %v5431
    %v6129 = vunpack.c.h.b16 %v5431
    %v6130 = vunpack.c.l.b16 %v5432
    %v6131 = vunpack.c.h.b16 %v5432
    %v6132 = vunpack.c.l.b16 %v5433
    %v6133 = vunpack.c.h.b16 %v5433
    %v6134 = vunpack.c.l.b16 %v5434
    %v6135 = vunpack.c.h.b16 %v5434
    %v6136 = vunpack.c.l.b16 %v5435
    %v6137 = vunpack.c.h.b16 %v5435
    %v6138 = vunpack.c.l.b16 %v5436
    %v6139 = vunpack.c.h.b16 %v5436
    %v6140 = vunpack.c.l.b16 %v5437
    %v6141 = vunpack.c.h.b16 %v5437
    %v6142 = vunpack.c.l.b16 %v5438
    %v6143 = vunpack.c.h.b16 %v5438
    %v6144 = vunpack.c.l.b16 %v5439
    %v6145 = vunpack.c.h.b16 %v5439
    %v6146 = vunpack.c.l.b16 %v5440
    %v6147 = vunpack.c.h.b16 %v5440
    %v6148 = vunpack.c.l.b16 %v5441
    %v6149 = vunpack.c.h.b16 %v5441
    %v6150 = vunpack.c.l.b16 %v5442
    %v6151 = vunpack.c.h.b16 %v5442
    %v6152 = vunpack.c.l.b16 %v5443
    %v6153 = vunpack.c.h.b16 %v5443
    %v6154 = vunpack.c.l.b16 %v5444
    %v6155 = vunpack.c.h.b16 %v5444
    %v6156 = vunpack.c.l.b16 %v5445
    %v6157 = vunpack.c.h.b16 %v5445
    %v6158 = vunpack.c.l.b16 %v5446
    %v6159 = vunpack.c.h.b16 %v5446
    %v6160 = vunpack.c.l.b16 %v5447
    %v6161 = vunpack.c.h.b16 %v5447
    %v6162 = vunpack.c.l.b16 %v5448
    %v6163 = vunpack.c.h.b16 %v5448
    %v6164 = vunpack.c.l.b16 %v5449
    %v6165 = vunpack.c.h.b16 %v5449
    %v6166 = vunpack.c.l.b16 %v5450
    %v6167 = vunpack.c.h.b16 %v5450
    %v6168 = vunpack.c.l.b16 %v5451
    %v6169 = vunpack.c.h.b16 %v5451
    %v6170 = vunpack.c.l.b16 %v5452
    %v6171 = vunpack.c.h.b16 %v5452
    %v6172 = vunpack.c.l.b16 %v5453
    %v6173 = vunpack.c.h.b16 %v5453
    %v6174 = vunpack.c.l.b16 %v5454
    %v6175 = vunpack.c.h.b16 %v5454
    %v6176 = vunpack.c.l.b16 %v5455
    %v6177 = vunpack.c.h.b16 %v5455
    %v6178 = vunpack.c.l.b16 %v5456
    %v6179 = vunpack.c.h.b16 %v5456
    %v6180 = vunpack.c.l.b16 %v5457
    %v6181 = vunpack.c.h.b16 %v5457
    %v6182 = vunpack.c.l.b16 %v5458
    %v6183 = vunpack.c.h.b16 %v5458
    %v6184 = vunpack.c.l.b16 %v5459
    %v6185 = vunpack.c.h.b16 %v5459
    %v6186 = vunpack.c.l.b16 %v5460
    %v6187 = vunpack.c.h.b16 %v5460
    %v6188 = vunpack.c.l.b16 %v5461
    %v6189 = vunpack.c.h.b16 %v5461
    %v6190 = vunpack.c.l.b16 %v5462
    %v6191 = vunpack.c.h.b16 %v5462
    %v6192 = vunpack.c.l.b16 %v5463
    %v6193 = vunpack.c.h.b16 %v5463
    %v6194 = vunpack.c.l.b16 %v5464
    %v6195 = vunpack.c.h.b16 %v5464
    %v6196 = vunpack.c.l.b16 %v5465
    %v6197 = vunpack.c.h.b16 %v5465
    %v6198 = vunpack.c.l.b16 %v5466
    %v6199 = vunpack.c.h.b16 %v5466
    %v6200 = vunpack.c.l.b16 %v5467
    %v6201 = vunpack.c.h.b16 %v5467
    %v6202 = vunpack.c.l.b16 %v5468
    %v6203 = vunpack.c.h.b16 %v5468
    %v6204 = vunpack.c.l.b16 %v5469
    %v6205 = vunpack.c.h.b16 %v5469
    %v6206 = vunpack.c.l.b16 %v5470
    %v6207 = vunpack.c.h.b16 %v5470
    %v6208 = vunpack.c.l.b16 %v5471
    %v6209 = vunpack.c.h.b16 %v5471
    %v6210 = vunpack.c.l.b16 %v5472
    %v6211 = vunpack.c.h.b16 %v5472
    %v6212 = vunpack.c.l.b16 %v5473
    %v6213 = vunpack.c.h.b16 %v5473
    %v6214 = vunpack.c.l.b16 %v5474
    %v6215 = vunpack.c.h.b16 %v5474
    %v6216 = vunpack.c.l.b16 %v5475
    %v6217 = vunpack.c.h.b16 %v5475
    %v6218 = vunpack.c.l.b16 %v5476
    %v6219 = vunpack.c.h.b16 %v5476
    %v6220 = vunpack.c.l.b16 %v5477
    %v6221 = vunpack.c.h.b16 %v5477
    %v6222 = vunpack.c.l.b16 %v5478
    %v6223 = vunpack.c.h.b16 %v5478
    %v6224 = vunpack.c.l.b16 %v5479
    %v6225 = vunpack.c.h.b16 %v5479
    %v6226 = vunpack.c.l.b16 %v5480
    %v6227 = vunpack.c.h.b16 %v5480
    %v6228 = vunpack.c.l.b16 %v5481
    %v6229 = vunpack.c.h.b16 %v5481
    %v6230 = vunpack.c.l.b16 %v5482
    %v6231 = vunpack.c.h.b16 %v5482
    %v6232 = vunpack.c.l.b16 %v5483
    %v6233 = vunpack.c.h.b16 %v5483
    %v6234 = vunpack.c.l.b16 %v5484
    %v6235 = vunpack.c.h.b16 %v5484
    %v6236 = vunpack.c.l.b16 %v5485
    %v6237 = vunpack.c.h.b16 %v5485
    %v6238 = vunpack.c.l.b16 %v5486
    %v6239 = vunpack.c.h.b16 %v5486
    %v6240 = vunpack.c.l.b16 %v5487
    %v6241 = vunpack.c.h.b16 %v5487
    %v6242 = vunpack.c.l.b16 %v5488
    %v6243 = vunpack.c.h.b16 %v5488
    %v6244 = vunpack.c.l.b16 %v5489
    %v6245 = vunpack.c.h.b16 %v5489
    %v6246 = vunpack.c.l.b16 %v5490
    %v6247 = vunpack.c.h.b16 %v5490
    %v6248 = vunpack.c.l.b16 %v5491
    %v6249 = vunpack.c.h.b16 %v5491
    %v6250 = vunpack.c.l.b16 %v5492
    %v6251 = vunpack.c.h.b16 %v5492
    %v6252 = vunpack.c.l.b16 %v5493
    %v6253 = vunpack.c.h.b16 %v5493
    %v6254 = vunpack.c.l.b16 %v5494
    %v6255 = vunpack.c.h.b16 %v5494
    %v6256 = vunpack.c.l.b16 %v5495
    %v6257 = vunpack.c.h.b16 %v5495
    %v6258 = vunpack.c.l.b16 %v5496
    %v6259 = vunpack.c.h.b16 %v5496
    %v6260 = vunpack.c.l.b16 %v5497
    %v6261 = vunpack.c.h.b16 %v5497
    %v6262 = vunpack.c.l.b16 %v5498
    %v6263 = vunpack.c.h.b16 %v5498
    %v6264 = vunpack.c.l.b16 %v5499
    %v6265 = vunpack.c.h.b16 %v5499
    %v6266 = vunpack.c.l.b16 %v5500
    %v6267 = vunpack.c.h.b16 %v5500
    %v6268 = vunpack.c.l.b16 %v5501
    %v6269 = vunpack.c.h.b16 %v5501
    %v6270 = vunpack.c.l.b16 %v5502
    %v6271 = vunpack.c.h.b16 %v5502
    %v6272 = vunpack.c.l.b16 %v5503
    %v6273 = vunpack.c.h.b16 %v5503
    %v6274 = vunpack.c.l.b16 %v5504
    %v6275 = vunpack.c.h.b16 %v5504
    %v6276 = vunpack.c.l.b16 %v5505
    %v6277 = vunpack.c.h.b16 %v5505
    %v6278 = vunpack.c.l.b16 %v5506
    %v6279 = vunpack.c.h.b16 %v5506
    %v6280 = vunpack.c.l.b16 %v5507
    %v6281 = vunpack.c.h.b16 %v5507
    %v6282 = vunpack.c.l.b16 %v5508
    %v6283 = vunpack.c.h.b16 %v5508
    %v6284 = vunpack.c.l.b16 %v5509
    %v6285 = vunpack.c.h.b16 %v5509
    %v6286 = vunpack.c.l.b16 %v5510
    %v6287 = vunpack.c.h.b16 %v5510
    %v6288 = vunpack.c.l.b16 %v5511
    %v6289 = vunpack.c.h.b16 %v5511
    %v6290 = vpack.c.b16 %v5782, %v5778
    %v6291 = vpack.c.b16 %v5783, %v5779
    %v6292 = vpack.c.b16 %v5784, %v5780
    %v6293 = vpack.c.b16 %v5785, %v5781
    %v6294 = vpack.c.b16 %v5790, %v5786
    %v6295 = vpack.c.b16 %v5791, %v5787
    %v6296 = vpack.c.b16 %v5792, %v5788
    %v6297 = vpack.c.b16 %v5793, %v5789
    %v6298 = vpack.c.b16 %v5798, %v5794
    %v6299 = vpack.c.b16 %v5799, %v5795
    %v6300 = vpack.c.b16 %v5800, %v5796
    %v6301 = vpack.c.b16 %v5801, %v5797
    %v6302 = vpack.c.b16 %v5806, %v5802
    %v6303 = vpack.c.b16 %v5807, %v5803
    %v6304 = vpack.c.b16 %v5808, %v5804
    %v6305 = vpack.c.b16 %v5809, %v5805
    %v6306 = vpack.c.b16 %v5814, %v5810
    %v6307 = vpack.c.b16 %v5815, %v5811
    %v6308 = vpack.c.b16 %v5816, %v5812
    %v6309 = vpack.c.b16 %v5817, %v5813
    %v6310 = vpack.c.b16 %v5822, %v5818
    %v6311 = vpack.c.b16 %v5823, %v5819
    %v6312 = vpack.c.b16 %v5824, %v5820
    %v6313 = vpack.c.b16 %v5825, %v5821
    %v6314 = vpack.c.b16 %v5830, %v5826
    %v6315 = vpack.c.b16 %v5831, %v5827
    %v6316 = vpack.c.b16 %v5832, %v5828
    %v6317 = vpack.c.b16 %v5833, %v5829
    %v6318 = vpack.c.b16 %v5838, %v5834
    %v6319 = vpack.c.b16 %v5839, %v5835
    %v6320 = vpack.c.b16 %v5840, %v5836
    %v6321 = vpack.c.b16 %v5841, %v5837
    %v6322 = vpack.c.b16 %v5846, %v5842
    %v6323 = vpack.c.b16 %v5847, %v5843
    %v6324 = vpack.c.b16 %v5848, %v5844
    %v6325 = vpack.c.b16 %v5849, %v5845
    %v6326 = vpack.c.b16 %v5854, %v5850
    %v6327 = vpack.c.b16 %v5855, %v5851
    %v6328 = vpack.c.b16 %v5856, %v5852
    %v6329 = vpack.c.b16 %v5857, %v5853
    %v6330 = vpack.c.b16 %v5862, %v5858
    %v6331 = vpack.c.b16 %v5863, %v5859
    %v6332 = vpack.c.b16 %v5864, %v5860
    %v6333 = vpack.c.b16 %v5865, %v5861
    %v6334 = vpack.c.b16 %v5870, %v5866
    %v6335 = vpack.c.b16 %v5871, %v5867
    %v6336 = vpack.c.b16 %v5872, %v5868
    %v6337 = vpack.c.b16 %v5873, %v5869
    %v6338 = vpack.c.b16 %v5878, %v5874
    %v6339 = vpack.c.b16 %v5879, %v5875
    %v6340 = vpack.c.b16 %v5880, %v5876
    %v6341 = vpack.c.b16 %v5881, %v5877
    %v6342 = vpack.c.b16 %v5886, %v5882
    %v6343 = vpack.c.b16 %v5887, %v5883
    %v6344 = vpack.c.b16 %v5888, %v5884
    %v6345 = vpack.c.b16 %v5889, %v5885
    %v6346 = vpack.c.b16 %v5894, %v5890
    %v6347 = vpack.c.b16 %v5895, %v5891
    %v6348 = vpack.c.b16 %v5896, %v5892
    %v6349 = vpack.c.b16 %v5897, %v5893
    %v6350 = vpack.c.b16 %v5902, %v5898
    %v6351 = vpack.c.b16 %v5903, %v5899
    %v6352 = vpack.c.b16 %v5904, %v5900
    %v6353 = vpack.c.b16 %v5905, %v5901
    %v6354 = vpack.c.b16 %v5910, %v5906
    %v6355 = vpack.c.b16 %v5911, %v5907
    %v6356 = vpack.c.b16 %v5912, %v5908
    %v6357 = vpack.c.b16 %v5913, %v5909
    %v6358 = vpack.c.b16 %v5918, %v5914
    %v6359 = vpack.c.b16 %v5919, %v5915
    %v6360 = vpack.c.b16 %v5920, %v5916
    %v6361 = vpack.c.b16 %v5921, %v5917
    %v6362 = vpack.c.b16 %v5926, %v5922
    %v6363 = vpack.c.b16 %v5927, %v5923
    %v6364 = vpack.c.b16 %v5928, %v5924
    %v6365 = vpack.c.b16 %v5929, %v5925
    %v6366 = vpack.c.b16 %v5934, %v5930
    %v6367 = vpack.c.b16 %v5935, %v5931
    %v6368 = vpack.c.b16 %v5936, %v5932
    %v6369 = vpack.c.b16 %v5937, %v5933
    %v6370 = vpack.c.b16 %v5942, %v5938
    %v6371 = vpack.c.b16 %v5943, %v5939
    %v6372 = vpack.c.b16 %v5944, %v5940
    %v6373 = vpack.c.b16 %v5945, %v5941
    %v6374 = vpack.c.b16 %v5950, %v5946
    %v6375 = vpack.c.b16 %v5951, %v5947
    %v6376 = vpack.c.b16 %v5952, %v5948
    %v6377 = vpack.c.b16 %v5953, %v5949
    %v6378 = vpack.c.b16 %v5958, %v5954
    %v6379 = vpack.c.b16 %v5959, %v5955
    %v6380 = vpack.c.b16 %v5960, %v5956
    %v6381 = vpack.c.b16 %v5961, %v5957
    %v6382 = vpack.c.b16 %v5966, %v5962
    %v6383 = vpack.c.b16 %v5967, %v5963
    %v6384 = vpack.c.b16 %v5968, %v5964
    %v6385 = vpack.c.b16 %v5969, %v5965
    %v6386 = vpack.c.b16 %v5974, %v5970
    %v6387 = vpack.c.b16 %v5975, %v5971
    %v6388 = vpack.c.b16 %v5976, %v5972
    %v6389 = vpack.c.b16 %v5977, %v5973
    %v6390 = vpack.c.b16 %v5982, %v5978
    %v6391 = vpack.c.b16 %v5983, %v5979
    %v6392 = vpack.c.b16 %v5984, %v5980
    %v6393 = vpack.c.b16 %v5985, %v5981
    %v6394 = vpack.c.b16 %v5990, %v5986
    %v6395 = vpack.c.b16 %v5991, %v5987
    %v6396 = vpack.c.b16 %v5992, %v5988
    %v6397 = vpack.c.b16 %v5993, %v5989
    %v6398 = vpack.c.b16 %v5998, %v5994
    %v6399 = vpack.c.b16 %v5999, %v5995
    %v6400 = vpack.c.b16 %v6000, %v5996
    %v6401 = vpack.c.b16 %v6001, %v5997
    %v6402 = vpack.c.b16 %v6006, %v6002
    %v6403 = vpack.c.b16 %v6007, %v6003
    %v6404 = vpack.c.b16 %v6008, %v6004
    %v6405 = vpack.c.b16 %v6009, %v6005
    %v6406 = vpack.c.b16 %v6014, %v6010
    %v6407 = vpack.c.b16 %v6015, %v6011
    %v6408 = vpack.c.b16 %v6016, %v6012
    %v6409 = vpack.c.b16 %v6017, %v6013
    %v6410 = vpack.c.b16 %v6022, %v6018
    %v6411 = vpack.c.b16 %v6023, %v6019
    %v6412 = vpack.c.b16 %v6024, %v6020
    %v6413 = vpack.c.b16 %v6025, %v6021
    %v6414 = vpack.c.b16 %v6030, %v6026
    %v6415 = vpack.c.b16 %v6031, %v6027
    %v6416 = vpack.c.b16 %v6032, %v6028
    %v6417 = vpack.c.b16 %v6033, %v6029
    %v6418 = vpack.c.b16 %v6038, %v6034
    %v6419 = vpack.c.b16 %v6039, %v6035
    %v6420 = vpack.c.b16 %v6040, %v6036
    %v6421 = vpack.c.b16 %v6041, %v6037
    %v6422 = vpack.c.b16 %v6046, %v6042
    %v6423 = vpack.c.b16 %v6047, %v6043
    %v6424 = vpack.c.b16 %v6048, %v6044
    %v6425 = vpack.c.b16 %v6049, %v6045
    %v6426 = vpack.c.b16 %v6054, %v6050
    %v6427 = vpack.c.b16 %v6055, %v6051
    %v6428 = vpack.c.b16 %v6056, %v6052
    %v6429 = vpack.c.b16 %v6057, %v6053
    %v6430 = vpack.c.b16 %v6062, %v6058
    %v6431 = vpack.c.b16 %v6063, %v6059
    %v6432 = vpack.c.b16 %v6064, %v6060
    %v6433 = vpack.c.b16 %v6065, %v6061
    %v6434 = vpack.c.b16 %v6070, %v6066
    %v6435 = vpack.c.b16 %v6071, %v6067
    %v6436 = vpack.c.b16 %v6072, %v6068
    %v6437 = vpack.c.b16 %v6073, %v6069
    %v6438 = vpack.c.b16 %v6078, %v6074
    %v6439 = vpack.c.b16 %v6079, %v6075
    %v6440 = vpack.c.b16 %v6080, %v6076
    %v6441 = vpack.c.b16 %v6081, %v6077
    %v6442 = vpack.c.b16 %v6086, %v6082
    %v6443 = vpack.c.b16 %v6087, %v6083
    %v6444 = vpack.c.b16 %v6088, %v6084
    %v6445 = vpack.c.b16 %v6089, %v6085
    %v6446 = vpack.c.b16 %v6094, %v6090
    %v6447 = vpack.c.b16 %v6095, %v6091
    %v6448 = vpack.c.b16 %v6096, %v6092
    %v6449 = vpack.c.b16 %v6097, %v6093
    %v6450 = vpack.c.b16 %v6102, %v6098
    %v6451 = vpack.c.b16 %v6103, %v6099
    %v6452 = vpack.c.b16 %v6104, %v6100
    %v6453 = vpack.c.b16 %v6105, %v6101
    %v6454 = vpack.c.b16 %v6110, %v6106
    %v6455 = vpack.c.b16 %v6111, %v6107
    %v6456 = vpack.c.b16 %v6112, %v6108
    %v6457 = vpack.c.b16 %v6113, %v6109
    %v6458 = vpack.c.b16 %v6118, %v6114
    %v6459 = vpack.c.b16 %v6119, %v6115
    %v6460 = vpack.c.b16 %v6120, %v6116
    %v6461 = vpack.c.b16 %v6121, %v6117
    %v6462 = vpack.c.b16 %v6126, %v6122
    %v6463 = vpack.c.b16 %v6127, %v6123
    %v6464 = vpack.c.b16 %v6128, %v6124
    %v6465 = vpack.c.b16 %v6129, %v6125
    %v6466 = vpack.c.b16 %v6134, %v6130
    %v6467 = vpack.c.b16 %v6135, %v6131
    %v6468 = vpack.c.b16 %v6136, %v6132
    %v6469 = vpack.c.b16 %v6137, %v6133
    %v6470 = vpack.c.b16 %v6142, %v6138
    %v6471 = vpack.c.b16 %v6143, %v6139
    %v6472 = vpack.c.b16 %v6144, %v6140
    %v6473 = vpack.c.b16 %v6145, %v6141
    %v6474 = vpack.c.b16 %v6150, %v6146
    %v6475 = vpack.c.b16 %v6151, %v6147
    %v6476 = vpack.c.b16 %v6152, %v6148
    %v6477 = vpack.c.b16 %v6153, %v6149
    %v6478 = vpack.c.b16 %v6158, %v6154
    %v6479 = vpack.c.b16 %v6159, %v6155
    %v6480 = vpack.c.b16 %v6160, %v6156
    %v6481 = vpack.c.b16 %v6161, %v6157
    %v6482 = vpack.c.b16 %v6166, %v6162
    %v6483 = vpack.c.b16 %v6167, %v6163
    %v6484 = vpack.c.b16 %v6168, %v6164
    %v6485 = vpack.c.b16 %v6169, %v6165
    %v6486 = vpack.c.b16 %v6174, %v6170
    %v6487 = vpack.c.b16 %v6175, %v6171
    %v6488 = vpack.c.b16 %v6176, %v6172
    %v6489 = vpack.c.b16 %v6177, %v6173
    %v6490 = vpack.c.b16 %v6182, %v6178
    %v6491 = vpack.c.b16 %v6183, %v6179
    %v6492 = vpack.c.b16 %v6184, %v6180
    %v6493 = vpack.c.b16 %v6185, %v6181
    %v6494 = vpack.c.b16 %v6190, %v6186
    %v6495 = vpack.c.b16 %v6191, %v6187
    %v6496 = vpack.c.b16 %v6192, %v6188
    %v6497 = vpack.c.b16 %v6193, %v6189
    %v6498 = vpack.c.b16 %v6198, %v6194
    %v6499 = vpack.c.b16 %v6199, %v6195
    %v6500 = vpack.c.b16 %v6200, %v6196
    %v6501 = vpack.c.b16 %v6201, %v6197
    %v6502 = vpack.c.b16 %v6206, %v6202
    %v6503 = vpack.c.b16 %v6207, %v6203
    %v6504 = vpack.c.b16 %v6208, %v6204
    %v6505 = vpack.c.b16 %v6209, %v6205
    %v6506 = vpack.c.b16 %v6214, %v6210
    %v6507 = vpack.c.b16 %v6215, %v6211
    %v6508 = vpack.c.b16 %v6216, %v6212
    %v6509 = vpack.c.b16 %v6217, %v6213
    %v6510 = vpack.c.b16 %v6222, %v6218
    %v6511 = vpack.c.b16 %v6223, %v6219
    %v6512 = vpack.c.b16 %v6224, %v6220
    %v6513 = vpack.c.b16 %v6225, %v6221
    %v6514 = vpack.c.b16 %v6230, %v6226
    %v6515 = vpack.c.b16 %v6231, %v6227
    %v6516 = vpack.c.b16 %v6232, %v6228
    %v6517 = vpack.c.b16 %v6233, %v6229
    %v6518 = vpack.c.b16 %v6238, %v6234
    %v6519 = vpack.c.b16 %v6239, %v6235
    %v6520 = vpack.c.b16 %v6240, %v6236
    %v6521 = vpack.c.b16 %v6241, %v6237
    %v6522 = vpack.c.b16 %v6246, %v6242
    %v6523 = vpack.c.b16 %v6247, %v6243
    %v6524 = vpack.c.b16 %v6248, %v6244
    %v6525 = vpack.c.b16 %v6249, %v6245
    %v6526 = vpack.c.b16 %v6254, %v6250
    %v6527 = vpack.c.b16 %v6255, %v6251
    %v6528 = vpack.c.b16 %v6256, %v6252
    %v6529 = vpack.c.b16 %v6257, %v6253
    %v6530 = vpack.c.b16 %v6262, %v6258
    %v6531 = vpack.c.b16 %v6263, %v6259
    %v6532 = vpack.c.b16 %v6264, %v6260
    %v6533 = vpack.c.b16 %v6265, %v6261
    %v6534 = vpack.c.b16 %v6270, %v6266
    %v6535 = vpack.c.b16 %v6271, %v6267
    %v6536 = vpack.c.b16 %v6272, %v6268
    %v6537 = vpack.c.b16 %v6273, %v6269
    %v6538 = vpack.c.b16 %v6278, %v6274
    %v6539 = vpack.c.b16 %v6279, %v6275
    %v6540 = vpack.c.b16 %v6280, %v6276
    %v6541 = vpack.c.b16 %v6281, %v6277
    %v6542 = vpack.c.b16 %v6286, %v6282
    %v6543 = vpack.c.b16 %v6287, %v6283
    %v6544 = vpack.c.b16 %v6288, %v6284
    %v6545 = vpack.c.b16 %v6289, %v6285
    %6802 = vmatpush.bf16.msra.mxu0 %v6318
    %6803 = vmatpush.bf16.msra.mxu0 %v6314
    %6804 = vmatpush.bf16.msra.mxu0 %v6310
    %6805 = vmatpush.bf16.msra.mxu0 %v6306
    %6806 = vmatpush.bf16.msra.mxu0 %v6302
    %6807 = vmatpush.bf16.msra.mxu0 %v6298
    %6808 = vmatpush.bf16.msra.mxu0 %v6294
    %6809 = vmatpush.bf16.msra.mxu0 %v6290
    %6810 = vmatmul.bf16.gmra.mxu0 %v5248
    %v6811 = vpop.f32.mrf.mxu0
    %v6812 = vadd.f32 %v5514, %v6811
    %v6813 = vpop.f32.mrf.mxu0
    %v6814 = vadd.f32 %v5514, %v6813
    %6815 = vdwg.mxu0
    %6816 = vmatpush.bf16.msra.mxu0 %v6350
    %6817 = vmatpush.bf16.msra.mxu0 %v6346
    %6818 = vmatpush.bf16.msra.mxu0 %v6342
    %6819 = vmatpush.bf16.msra.mxu0 %v6338
    %6820 = vmatpush.bf16.msra.mxu0 %v6334
    %6821 = vmatpush.bf16.msra.mxu0 %v6330
    %6822 = vmatpush.bf16.msra.mxu0 %v6326
    %6823 = vmatpush.bf16.msra.mxu0 %v6322
    %6824 = vmatmul.bf16.gmra.mxu0 %v5249
    %v6825 = vpop.f32.mrf.mxu0
    %v6826 = vadd.f32 %v6812, %v6825
    %v6827 = vpop.f32.mrf.mxu0
    %v6828 = vadd.f32 %v6814, %v6827
    %6829 = vdwg.mxu0
    %6830 = vmatpush.bf16.msra.mxu0 %v6382
    %6831 = vmatpush.bf16.msra.mxu0 %v6378
    %6832 = vmatpush.bf16.msra.mxu0 %v6374
    %6833 = vmatpush.bf16.msra.mxu0 %v6370
    %6834 = vmatpush.bf16.msra.mxu0 %v6366
    %6835 = vmatpush.bf16.msra.mxu0 %v6362
    %6836 = vmatpush.bf16.msra.mxu0 %v6358
    %6837 = vmatpush.bf16.msra.mxu0 %v6354
    %6838 = vmatmul.bf16.gmra.mxu0 %v5250
    %v6839 = vpop.f32.mrf.mxu0
    %v6840 = vadd.f32 %v6826, %v6839
    %v6841 = vpop.f32.mrf.mxu0
    %v6842 = vadd.f32 %v6828, %v6841
    %6843 = vdwg.mxu0
    %6844 = vmatpush.bf16.msra.mxu0 %v6414
    %6845 = vmatpush.bf16.msra.mxu0 %v6410
    %6846 = vmatpush.bf16.msra.mxu0 %v6406
    %6847 = vmatpush.bf16.msra.mxu0 %v6402
    %6848 = vmatpush.bf16.msra.mxu0 %v6398
    %6849 = vmatpush.bf16.msra.mxu0 %v6394
    %6850 = vmatpush.bf16.msra.mxu0 %v6390
    %6851 = vmatpush.bf16.msra.mxu0 %v6386
    %6852 = vmatmul.bf16.gmra.mxu0 %v5251
    %v6853 = vpop.f32.mrf.mxu0
    %v6854 = vadd.f32 %v6840, %v6853
    %v6855 = vpop.f32.mrf.mxu0
    %v6856 = vadd.f32 %v6842, %v6855
    %6857 = vdwg.mxu0
    %6858 = vmatpush.bf16.msra.mxu0 %v6446
    %6859 = vmatpush.bf16.msra.mxu0 %v6442
    %6860 = vmatpush.bf16.msra.mxu0 %v6438
    %6861 = vmatpush.bf16.msra.mxu0 %v6434
    %6862 = vmatpush.bf16.msra.mxu0 %v6430
    %6863 = vmatpush.bf16.msra.mxu0 %v6426
    %6864 = vmatpush.bf16.msra.mxu0 %v6422
    %6865 = vmatpush.bf16.msra.mxu0 %v6418
    %6866 = vmatmul.bf16.gmra.mxu0 %v5252
    %v6867 = vpop.f32.mrf.mxu0
    %v6868 = vadd.f32 %v6854, %v6867
    %v6869 = vpop.f32.mrf.mxu0
    %v6870 = vadd.f32 %v6856, %v6869
    %6871 = vdwg.mxu0
    %6872 = vmatpush.bf16.msra.mxu0 %v6478
    %6873 = vmatpush.bf16.msra.mxu0 %v6474
    %6874 = vmatpush.bf16.msra.mxu0 %v6470
    %6875 = vmatpush.bf16.msra.mxu0 %v6466
    %6876 = vmatpush.bf16.msra.mxu0 %v6462
    %6877 = vmatpush.bf16.msra.mxu0 %v6458
    %6878 = vmatpush.bf16.msra.mxu0 %v6454
    %6879 = vmatpush.bf16.msra.mxu0 %v6450
    %6880 = vmatmul.bf16.gmra.mxu0 %v5253
    %v6881 = vpop.f32.mrf.mxu0
    %v6882 = vadd.f32 %v6868, %v6881
    %v6883 = vpop.f32.mrf.mxu0
    %v6884 = vadd.f32 %v6870, %v6883
    %6885 = vdwg.mxu0
    %6886 = vmatpush.bf16.msra.mxu0 %v6510
    %6887 = vmatpush.bf16.msra.mxu0 %v6506
    %6888 = vmatpush.bf16.msra.mxu0 %v6502
    %6889 = vmatpush.bf16.msra.mxu0 %v6498
    %6890 = vmatpush.bf16.msra.mxu0 %v6494
    %6891 = vmatpush.bf16.msra.mxu0 %v6490
    %6892 = vmatpush.bf16.msra.mxu0 %v6486
    %6893 = vmatpush.bf16.msra.mxu0 %v6482
    %6894 = vmatmul.bf16.gmra.mxu0 %v5254
    %v6895 = vpop.f32.mrf.mxu0
    %v6896 = vadd.f32 %v6882, %v6895
    %v6897 = vpop.f32.mrf.mxu0
    %v6898 = vadd.f32 %v6884, %v6897
    %6899 = vdwg.mxu0
    %6900 = vmatpush.bf16.msra.mxu0 %v6542
    %6901 = vmatpush.bf16.msra.mxu0 %v6538
    %6902 = vmatpush.bf16.msra.mxu0 %v6534
    %6903 = vmatpush.bf16.msra.mxu0 %v6530
    %6904 = vmatpush.bf16.msra.mxu0 %v6526
    %6905 = vmatpush.bf16.msra.mxu0 %v6522
    %6906 = vmatpush.bf16.msra.mxu0 %v6518
    %6907 = vmatpush.bf16.msra.mxu0 %v6514
    %6908 = vmatmul.bf16.gmra.mxu0 %v5255
    %v6909 = vpop.f32.mrf.mxu0
    %v6910 = vadd.f32 %v6896, %v6909
    %v6911 = vpop.f32.mrf.mxu0
    %v6912 = vadd.f32 %v6898, %v6911
    %6913 = vdwg.mxu0
    %6914 = vmatpush.bf16.msra.mxu0 %v6319
    %6915 = vmatpush.bf16.msra.mxu0 %v6315
    %6916 = vmatpush.bf16.msra.mxu0 %v6311
    %6917 = vmatpush.bf16.msra.mxu0 %v6307
    %6918 = vmatpush.bf16.msra.mxu0 %v6303
    %6919 = vmatpush.bf16.msra.mxu0 %v6299
    %6920 = vmatpush.bf16.msra.mxu0 %v6295
    %6921 = vmatpush.bf16.msra.mxu0 %v6291
    %6922 = vmatmul.bf16.gmra.mxu0 %v5248
    %v6923 = vpop.f32.mrf.mxu0
    %v6924 = vadd.f32 %v5515, %v6923
    %v6925 = vpop.f32.mrf.mxu0
    %v6926 = vadd.f32 %v5515, %v6925
    %6927 = vdwg.mxu0
    %6928 = vmatpush.bf16.msra.mxu0 %v6351
    %6929 = vmatpush.bf16.msra.mxu0 %v6347
    %6930 = vmatpush.bf16.msra.mxu0 %v6343
    %6931 = vmatpush.bf16.msra.mxu0 %v6339
    %6932 = vmatpush.bf16.msra.mxu0 %v6335
    %6933 = vmatpush.bf16.msra.mxu0 %v6331
    %6934 = vmatpush.bf16.msra.mxu0 %v6327
    %6935 = vmatpush.bf16.msra.mxu0 %v6323
    %6936 = vmatmul.bf16.gmra.mxu0 %v5249
    %v6937 = vpop.f32.mrf.mxu0
    %v6938 = vadd.f32 %v6924, %v6937
    %v6939 = vpop.f32.mrf.mxu0
    %v6940 = vadd.f32 %v6926, %v6939
    %6941 = vdwg.mxu0
    %6942 = vmatpush.bf16.msra.mxu0 %v6383
    %6943 = vmatpush.bf16.msra.mxu0 %v6379
    %6944 = vmatpush.bf16.msra.mxu0 %v6375
    %6945 = vmatpush.bf16.msra.mxu0 %v6371
    %6946 = vmatpush.bf16.msra.mxu0 %v6367
    %6947 = vmatpush.bf16.msra.mxu0 %v6363
    %6948 = vmatpush.bf16.msra.mxu0 %v6359
    %6949 = vmatpush.bf16.msra.mxu0 %v6355
    %6950 = vmatmul.bf16.gmra.mxu0 %v5250
    %v6951 = vpop.f32.mrf.mxu0
    %v6952 = vadd.f32 %v6938, %v6951
    %v6953 = vpop.f32.mrf.mxu0
    %v6954 = vadd.f32 %v6940, %v6953
    %6955 = vdwg.mxu0
    %6956 = vmatpush.bf16.msra.mxu0 %v6415
    %6957 = vmatpush.bf16.msra.mxu0 %v6411
    %6958 = vmatpush.bf16.msra.mxu0 %v6407
    %6959 = vmatpush.bf16.msra.mxu0 %v6403
    %6960 = vmatpush.bf16.msra.mxu0 %v6399
    %6961 = vmatpush.bf16.msra.mxu0 %v6395
    %6962 = vmatpush.bf16.msra.mxu0 %v6391
    %6963 = vmatpush.bf16.msra.mxu0 %v6387
    %6964 = vmatmul.bf16.gmra.mxu0 %v5251
    %v6965 = vpop.f32.mrf.mxu0
    %v6966 = vadd.f32 %v6952, %v6965
    %v6967 = vpop.f32.mrf.mxu0
    %v6968 = vadd.f32 %v6954, %v6967
    %6969 = vdwg.mxu0
    %6970 = vmatpush.bf16.msra.mxu0 %v6447
    %6971 = vmatpush.bf16.msra.mxu0 %v6443
    %6972 = vmatpush.bf16.msra.mxu0 %v6439
    %6973 = vmatpush.bf16.msra.mxu0 %v6435
    %6974 = vmatpush.bf16.msra.mxu0 %v6431
    %6975 = vmatpush.bf16.msra.mxu0 %v6427
    %6976 = vmatpush.bf16.msra.mxu0 %v6423
    %6977 = vmatpush.bf16.msra.mxu0 %v6419
    %6978 = vmatmul.bf16.gmra.mxu0 %v5252
    %v6979 = vpop.f32.mrf.mxu0
    %v6980 = vadd.f32 %v6966, %v6979
    %v6981 = vpop.f32.mrf.mxu0
    %v6982 = vadd.f32 %v6968, %v6981
    %6983 = vdwg.mxu0
    %6984 = vmatpush.bf16.msra.mxu0 %v6479
    %6985 = vmatpush.bf16.msra.mxu0 %v6475
    %6986 = vmatpush.bf16.msra.mxu0 %v6471
    %6987 = vmatpush.bf16.msra.mxu0 %v6467
    %6988 = vmatpush.bf16.msra.mxu0 %v6463
    %6989 = vmatpush.bf16.msra.mxu0 %v6459
    %6990 = vmatpush.bf16.msra.mxu0 %v6455
    %6991 = vmatpush.bf16.msra.mxu0 %v6451
    %6992 = vmatmul.bf16.gmra.mxu0 %v5253
    %v6993 = vpop.f32.mrf.mxu0
    %v6994 = vadd.f32 %v6980, %v6993
    %v6995 = vpop.f32.mrf.mxu0
    %v6996 = vadd.f32 %v6982, %v6995
    %6997 = vdwg.mxu0
    %6998 = vmatpush.bf16.msra.mxu0 %v6511
    %6999 = vmatpush.bf16.msra.mxu0 %v6507
    %7000 = vmatpush.bf16.msra.mxu0 %v6503
    %7001 = vmatpush.bf16.msra.mxu0 %v6499
    %7002 = vmatpush.bf16.msra.mxu0 %v6495
    %7003 = vmatpush.bf16.msra.mxu0 %v6491
    %7004 = vmatpush.bf16.msra.mxu0 %v6487
    %7005 = vmatpush.bf16.msra.mxu0 %v6483
    %7006 = vmatmul.bf16.gmra.mxu0 %v5254
    %v7007 = vpop.f32.mrf.mxu0
    %v7008 = vadd.f32 %v6994, %v7007
    %v7009 = vpop.f32.mrf.mxu0
    %v7010 = vadd.f32 %v6996, %v7009
    %7011 = vdwg.mxu0
    %7012 = vmatpush.bf16.msra.mxu0 %v6543
    %7013 = vmatpush.bf16.msra.mxu0 %v6539
    %7014 = vmatpush.bf16.msra.mxu0 %v6535
    %7015 = vmatpush.bf16.msra.mxu0 %v6531
    %7016 = vmatpush.bf16.msra.mxu0 %v6527
    %7017 = vmatpush.bf16.msra.mxu0 %v6523
    %7018 = vmatpush.bf16.msra.mxu0 %v6519
    %7019 = vmatpush.bf16.msra.mxu0 %v6515
    %7020 = vmatmul.bf16.gmra.mxu0 %v5255
    %v7021 = vpop.f32.mrf.mxu0
    %v7022 = vadd.f32 %v7008, %v7021
    %v7023 = vpop.f32.mrf.mxu0
    %v7024 = vadd.f32 %v7010, %v7023
    %7025 = vdwg.mxu0
    %7026 = vmatpush.bf16.msra.mxu0 %v6320
    %7027 = vmatpush.bf16.msra.mxu0 %v6316
    %7028 = vmatpush.bf16.msra.mxu0 %v6312
    %7029 = vmatpush.bf16.msra.mxu0 %v6308
    %7030 = vmatpush.bf16.msra.mxu0 %v6304
    %7031 = vmatpush.bf16.msra.mxu0 %v6300
    %7032 = vmatpush.bf16.msra.mxu0 %v6296
    %7033 = vmatpush.bf16.msra.mxu0 %v6292
    %7034 = vmatmul.bf16.gmra.mxu0 %v5248
    %v7035 = vpop.f32.mrf.mxu0
    %v7036 = vadd.f32 %v5516, %v7035
    %v7037 = vpop.f32.mrf.mxu0
    %v7038 = vadd.f32 %v5516, %v7037
    %7039 = vdwg.mxu0
    %7040 = vmatpush.bf16.msra.mxu0 %v6352
    %7041 = vmatpush.bf16.msra.mxu0 %v6348
    %7042 = vmatpush.bf16.msra.mxu0 %v6344
    %7043 = vmatpush.bf16.msra.mxu0 %v6340
    %7044 = vmatpush.bf16.msra.mxu0 %v6336
    %7045 = vmatpush.bf16.msra.mxu0 %v6332
    %7046 = vmatpush.bf16.msra.mxu0 %v6328
    %7047 = vmatpush.bf16.msra.mxu0 %v6324
    %7048 = vmatmul.bf16.gmra.mxu0 %v5249
    %v7049 = vpop.f32.mrf.mxu0
    %v7050 = vadd.f32 %v7036, %v7049
    %v7051 = vpop.f32.mrf.mxu0
    %v7052 = vadd.f32 %v7038, %v7051
    %7053 = vdwg.mxu0
    %7054 = vmatpush.bf16.msra.mxu0 %v6384
    %7055 = vmatpush.bf16.msra.mxu0 %v6380
    %7056 = vmatpush.bf16.msra.mxu0 %v6376
    %7057 = vmatpush.bf16.msra.mxu0 %v6372
    %7058 = vmatpush.bf16.msra.mxu0 %v6368
    %7059 = vmatpush.bf16.msra.mxu0 %v6364
    %7060 = vmatpush.bf16.msra.mxu0 %v6360
    %7061 = vmatpush.bf16.msra.mxu0 %v6356
    %7062 = vmatmul.bf16.gmra.mxu0 %v5250
    %v7063 = vpop.f32.mrf.mxu0
    %v7064 = vadd.f32 %v7050, %v7063
    %v7065 = vpop.f32.mrf.mxu0
    %v7066 = vadd.f32 %v7052, %v7065
    %7067 = vdwg.mxu0
    %7068 = vmatpush.bf16.msra.mxu0 %v6416
    %7069 = vmatpush.bf16.msra.mxu0 %v6412
    %7070 = vmatpush.bf16.msra.mxu0 %v6408
    %7071 = vmatpush.bf16.msra.mxu0 %v6404
    %7072 = vmatpush.bf16.msra.mxu0 %v6400
    %7073 = vmatpush.bf16.msra.mxu0 %v6396
    %7074 = vmatpush.bf16.msra.mxu0 %v6392
    %7075 = vmatpush.bf16.msra.mxu0 %v6388
    %7076 = vmatmul.bf16.gmra.mxu0 %v5251
    %v7077 = vpop.f32.mrf.mxu0
    %v7078 = vadd.f32 %v7064, %v7077
    %v7079 = vpop.f32.mrf.mxu0
    %v7080 = vadd.f32 %v7066, %v7079
    %7081 = vdwg.mxu0
    %7082 = vmatpush.bf16.msra.mxu0 %v6448
    %7083 = vmatpush.bf16.msra.mxu0 %v6444
    %7084 = vmatpush.bf16.msra.mxu0 %v6440
    %7085 = vmatpush.bf16.msra.mxu0 %v6436
    %7086 = vmatpush.bf16.msra.mxu0 %v6432
    %7087 = vmatpush.bf16.msra.mxu0 %v6428
    %7088 = vmatpush.bf16.msra.mxu0 %v6424
    %7089 = vmatpush.bf16.msra.mxu0 %v6420
    %7090 = vmatmul.bf16.gmra.mxu0 %v5252
    %v7091 = vpop.f32.mrf.mxu0
    %v7092 = vadd.f32 %v7078, %v7091
    %v7093 = vpop.f32.mrf.mxu0
    %v7094 = vadd.f32 %v7080, %v7093
    %7095 = vdwg.mxu0
    %7096 = vmatpush.bf16.msra.mxu0 %v6480
    %7097 = vmatpush.bf16.msra.mxu0 %v6476
    %7098 = vmatpush.bf16.msra.mxu0 %v6472
    %7099 = vmatpush.bf16.msra.mxu0 %v6468
    %7100 = vmatpush.bf16.msra.mxu0 %v6464
    %7101 = vmatpush.bf16.msra.mxu0 %v6460
    %7102 = vmatpush.bf16.msra.mxu0 %v6456
    %7103 = vmatpush.bf16.msra.mxu0 %v6452
    %7104 = vmatmul.bf16.gmra.mxu0 %v5253
    %v7105 = vpop.f32.mrf.mxu0
    %v7106 = vadd.f32 %v7092, %v7105
    %v7107 = vpop.f32.mrf.mxu0
    %v7108 = vadd.f32 %v7094, %v7107
    %7109 = vdwg.mxu0
    %7110 = vmatpush.bf16.msra.mxu0 %v6512
    %7111 = vmatpush.bf16.msra.mxu0 %v6508
    %7112 = vmatpush.bf16.msra.mxu0 %v6504
    %7113 = vmatpush.bf16.msra.mxu0 %v6500
    %7114 = vmatpush.bf16.msra.mxu0 %v6496
    %7115 = vmatpush.bf16.msra.mxu0 %v6492
    %7116 = vmatpush.bf16.msra.mxu0 %v6488
    %7117 = vmatpush.bf16.msra.mxu0 %v6484
    %7118 = vmatmul.bf16.gmra.mxu0 %v5254
    %v7119 = vpop.f32.mrf.mxu0
    %v7120 = vadd.f32 %v7106, %v7119
    %v7121 = vpop.f32.mrf.mxu0
    %v7122 = vadd.f32 %v7108, %v7121
    %7123 = vdwg.mxu0
    %7124 = vmatpush.bf16.msra.mxu0 %v6544
    %7125 = vmatpush.bf16.msra.mxu0 %v6540
    %7126 = vmatpush.bf16.msra.mxu0 %v6536
    %7127 = vmatpush.bf16.msra.mxu0 %v6532
    %7128 = vmatpush.bf16.msra.mxu0 %v6528
    %7129 = vmatpush.bf16.msra.mxu0 %v6524
    %7130 = vmatpush.bf16.msra.mxu0 %v6520
    %7131 = vmatpush.bf16.msra.mxu0 %v6516
    %7132 = vmatmul.bf16.gmra.mxu0 %v5255
    %v7133 = vpop.f32.mrf.mxu0
    %v7134 = vadd.f32 %v7120, %v7133
    %v7135 = vpop.f32.mrf.mxu0
    %v7136 = vadd.f32 %v7122, %v7135
    %7137 = vdwg.mxu0
    %7138 = vmatpush.bf16.msra.mxu0 %v6321
    %7139 = vmatpush.bf16.msra.mxu0 %v6317
    %7140 = vmatpush.bf16.msra.mxu0 %v6313
    %7141 = vmatpush.bf16.msra.mxu0 %v6309
    %7142 = vmatpush.bf16.msra.mxu0 %v6305
    %7143 = vmatpush.bf16.msra.mxu0 %v6301
    %7144 = vmatpush.bf16.msra.mxu0 %v6297
    %7145 = vmatpush.bf16.msra.mxu0 %v6293
    %7146 = vmatmul.bf16.gmra.mxu0 %v5248
    %v7147 = vpop.f32.mrf.mxu0
    %v7148 = vadd.f32 %v5517, %v7147
    %v7149 = vpop.f32.mrf.mxu0
    %v7150 = vadd.f32 %v5517, %v7149
    %7151 = vdwg.mxu0
    %7152 = vmatpush.bf16.msra.mxu0 %v6353
    %7153 = vmatpush.bf16.msra.mxu0 %v6349
    %7154 = vmatpush.bf16.msra.mxu0 %v6345
    %7155 = vmatpush.bf16.msra.mxu0 %v6341
    %7156 = vmatpush.bf16.msra.mxu0 %v6337
    %7157 = vmatpush.bf16.msra.mxu0 %v6333
    %7158 = vmatpush.bf16.msra.mxu0 %v6329
    %7159 = vmatpush.bf16.msra.mxu0 %v6325
    %7160 = vmatmul.bf16.gmra.mxu0 %v5249
    %v7161 = vpop.f32.mrf.mxu0
    %v7162 = vadd.f32 %v7148, %v7161
    %v7163 = vpop.f32.mrf.mxu0
    %v7164 = vadd.f32 %v7150, %v7163
    %7165 = vdwg.mxu0
    %7166 = vmatpush.bf16.msra.mxu0 %v6385
    %7167 = vmatpush.bf16.msra.mxu0 %v6381
    %7168 = vmatpush.bf16.msra.mxu0 %v6377
    %7169 = vmatpush.bf16.msra.mxu0 %v6373
    %7170 = vmatpush.bf16.msra.mxu0 %v6369
    %7171 = vmatpush.bf16.msra.mxu0 %v6365
    %7172 = vmatpush.bf16.msra.mxu0 %v6361
    %7173 = vmatpush.bf16.msra.mxu0 %v6357
    %7174 = vmatmul.bf16.gmra.mxu0 %v5250
    %v7175 = vpop.f32.mrf.mxu0
    %v7176 = vadd.f32 %v7162, %v7175
    %v7177 = vpop.f32.mrf.mxu0
    %v7178 = vadd.f32 %v7164, %v7177
    %7179 = vdwg.mxu0
    %7180 = vmatpush.bf16.msra.mxu0 %v6417
    %7181 = vmatpush.bf16.msra.mxu0 %v6413
    %7182 = vmatpush.bf16.msra.mxu0 %v6409
    %7183 = vmatpush.bf16.msra.mxu0 %v6405
    %7184 = vmatpush.bf16.msra.mxu0 %v6401
    %7185 = vmatpush.bf16.msra.mxu0 %v6397
    %7186 = vmatpush.bf16.msra.mxu0 %v6393
    %7187 = vmatpush.bf16.msra.mxu0 %v6389
    %7188 = vmatmul.bf16.gmra.mxu0 %v5251
    %v7189 = vpop.f32.mrf.mxu0
    %v7190 = vadd.f32 %v7176, %v7189
    %v7191 = vpop.f32.mrf.mxu0
    %v7192 = vadd.f32 %v7178, %v7191
    %7193 = vdwg.mxu0
    %7194 = vmatpush.bf16.msra.mxu0 %v6449
    %7195 = vmatpush.bf16.msra.mxu0 %v6445
    %7196 = vmatpush.bf16.msra.mxu0 %v6441
    %7197 = vmatpush.bf16.msra.mxu0 %v6437
    %7198 = vmatpush.bf16.msra.mxu0 %v6433
    %7199 = vmatpush.bf16.msra.mxu0 %v6429
    %7200 = vmatpush.bf16.msra.mxu0 %v6425
    %7201 = vmatpush.bf16.msra.mxu0 %v6421
    %7202 = vmatmul.bf16.gmra.mxu0 %v5252
    %v7203 = vpop.f32.mrf.mxu0
    %v7204 = vadd.f32 %v7190, %v7203
    %v7205 = vpop.f32.mrf.mxu0
    %v7206 = vadd.f32 %v7192, %v7205
    %7207 = vdwg.mxu0
    %7208 = vmatpush.bf16.msra.mxu0 %v6481
    %7209 = vmatpush.bf16.msra.mxu0 %v6477
    %7210 = vmatpush.bf16.msra.mxu0 %v6473
    %7211 = vmatpush.bf16.msra.mxu0 %v6469
    %7212 = vmatpush.bf16.msra.mxu0 %v6465
    %7213 = vmatpush.bf16.msra.mxu0 %v6461
    %7214 = vmatpush.bf16.msra.mxu0 %v6457
    %7215 = vmatpush.bf16.msra.mxu0 %v6453
    %7216 = vmatmul.bf16.gmra.mxu0 %v5253
    %v7217 = vpop.f32.mrf.mxu0
    %v7218 = vadd.f32 %v7204, %v7217
    %v7219 = vpop.f32.mrf.mxu0
    %v7220 = vadd.f32 %v7206, %v7219
    %7221 = vdwg.mxu0
    %7222 = vmatpush.bf16.msra.mxu0 %v6513
    %7223 = vmatpush.bf16.msra.mxu0 %v6509
    %7224 = vmatpush.bf16.msra.mxu0 %v6505
    %7225 = vmatpush.bf16.msra.mxu0 %v6501
    %7226 = vmatpush.bf16.msra.mxu0 %v6497
    %7227 = vmatpush.bf16.msra.mxu0 %v6493
    %7228 = vmatpush.bf16.msra.mxu0 %v6489
    %7229 = vmatpush.bf16.msra.mxu0 %v6485
    %7230 = vmatmul.bf16.gmra.mxu0 %v5254
    %v7231 = vpop.f32.mrf.mxu0
    %v7232 = vadd.f32 %v7218, %v7231
    %v7233 = vpop.f32.mrf.mxu0
    %v7234 = vadd.f32 %v7220, %v7233
    %7235 = vdwg.mxu0
    %7236 = vmatpush.bf16.msra.mxu0 %v6545
    %7237 = vmatpush.bf16.msra.mxu0 %v6541
    %7238 = vmatpush.bf16.msra.mxu0 %v6537
    %7239 = vmatpush.bf16.msra.mxu0 %v6533
    %7240 = vmatpush.bf16.msra.mxu0 %v6529
    %7241 = vmatpush.bf16.msra.mxu0 %v6525
    %7242 = vmatpush.bf16.msra.mxu0 %v6521
    %7243 = vmatpush.bf16.msra.mxu0 %v6517
    %7244 = vmatmul.bf16.gmra.mxu0 %v5255
    %v7245 = vpop.f32.mrf.mxu0
    %v7246 = vadd.f32 %v7232, %v7245
    %v7247 = vpop.f32.mrf.mxu0
    %v7248 = vadd.f32 %v7234, %v7247
    %7249 = vdwg.mxu0
    %v7250 = vmax.f32 %v6910, 0.0
    %v7251 = vmax.f32 %v7022, 0.0
    %v7252 = vmax.f32 %v7134, 0.0
    %v7253 = vmax.f32 %v7246, 0.0
    %v7254 = vmax.f32 %v6912, 0.0
    %v7255 = vmax.f32 %v7024, 0.0
    %v7256 = vmax.f32 %v7136, 0.0
    %v7257 = vmax.f32 %v7248, 0.0
    %v7258 = vpack.c.bf16 %v7254, %v7250
    %v7259 = vpack.c.bf16 %v7255, %v7251
    %v7260 = vpack.c.bf16 %v7256, %v7252
    %v7261 = vpack.c.bf16 %v7257, %v7253
    %v7262 = vld [vmem:[#allocation14] sm:$0xf]
    %v7263 = vld [vmem:[#allocation14 + $0x4] sm:$0xf]
    %v7264 = vld [vmem:[#allocation14 + $0x8] sm:$0xf]
    %v7265 = vld [vmem:[#allocation14 + $0xc] sm:$0xf]
    %v7266 = vld [vmem:[#allocation14 + $0x10] sm:$0xf]
    %v7267 = vld [vmem:[#allocation14 + $0x14] sm:$0xf]
    %v7268 = vld [vmem:[#allocation14 + $0x18] sm:$0xf]
    %v7269 = vld [vmem:[#allocation14 + $0x1c] sm:$0xf]
    %v7270 = vld [vmem:[#allocation14 + $0x20] sm:$0xf]
    %v7271 = vld [vmem:[#allocation14 + $0x24] sm:$0xf]
    %v7272 = vld [vmem:[#allocation14 + $0x28] sm:$0xf]
    %v7273 = vld [vmem:[#allocation14 + $0x2c] sm:$0xf]
    %v7274 = vld [vmem:[#allocation14 + $0x30] sm:$0xf]
    %v7275 = vld [vmem:[#allocation14 + $0x34] sm:$0xf]
    %v7276 = vld [vmem:[#allocation14 + $0x38] sm:$0xf]
    %v7277 = vld [vmem:[#allocation14 + $0x3c] sm:$0xf]
    %v7278 = vld [vmem:[#allocation14 + $0x40] sm:$0xf]
    %v7279 = vld [vmem:[#allocation14 + $0x44] sm:$0xf]
    %v7280 = vld [vmem:[#allocation14 + $0x48] sm:$0xf]
    %v7281 = vld [vmem:[#allocation14 + $0x4c] sm:$0xf]
    %v7282 = vld [vmem:[#allocation14 + $0x50] sm:$0xf]
    %v7283 = vld [vmem:[#allocation14 + $0x54] sm:$0xf]
    %v7284 = vld [vmem:[#allocation14 + $0x58] sm:$0xf]
    %v7285 = vld [vmem:[#allocation14 + $0x5c] sm:$0xf]
    %v7286 = vld [vmem:[#allocation14 + $0x60] sm:$0xf]
    %v7287 = vld [vmem:[#allocation14 + $0x64] sm:$0xf]
    %v7288 = vld [vmem:[#allocation14 + $0x68] sm:$0xf]
    %v7289 = vld [vmem:[#allocation14 + $0x6c] sm:$0xf]
    %v7290 = vld [vmem:[#allocation14 + $0x70] sm:$0xf]
    %v7291 = vld [vmem:[#allocation14 + $0x74] sm:$0xf]
    %v7292 = vld [vmem:[#allocation14 + $0x78] sm:$0xf]
    %v7293 = vld [vmem:[#allocation14 + $0x7c] sm:$0xf]
    %v7294 = vld [vmem:[#allocation14 + $0x80] sm:$0xf]
    %v7295 = vld [vmem:[#allocation14 + $0x84] sm:$0xf]
    %v7296 = vld [vmem:[#allocation14 + $0x88] sm:$0xf]
    %v7297 = vld [vmem:[#allocation14 + $0x8c] sm:$0xf]
    %v7298 = vld [vmem:[#allocation14 + $0x90] sm:$0xf]
    %v7299 = vld [vmem:[#allocation14 + $0x94] sm:$0xf]
    %v7300 = vld [vmem:[#allocation14 + $0x98] sm:$0xf]
    %v7301 = vld [vmem:[#allocation14 + $0x9c] sm:$0xf]
    %v7302 = vld [vmem:[#allocation14 + $0xa0] sm:$0xf]
    %v7303 = vld [vmem:[#allocation14 + $0xa4] sm:$0xf]
    %v7304 = vld [vmem:[#allocation14 + $0xa8] sm:$0xf]
    %v7305 = vld [vmem:[#allocation14 + $0xac] sm:$0xf]
    %v7306 = vld [vmem:[#allocation14 + $0xb0] sm:$0xf]
    %v7307 = vld [vmem:[#allocation14 + $0xb4] sm:$0xf]
    %v7308 = vld [vmem:[#allocation14 + $0xb8] sm:$0xf]
    %v7309 = vld [vmem:[#allocation14 + $0xbc] sm:$0xf]
    %v7310 = vld [vmem:[#allocation14 + $0xc0] sm:$0xf]
    %v7311 = vld [vmem:[#allocation14 + $0xc4] sm:$0xf]
    %v7312 = vld [vmem:[#allocation14 + $0xc8] sm:$0xf]
    %v7313 = vld [vmem:[#allocation14 + $0xcc] sm:$0xf]
    %v7314 = vld [vmem:[#allocation14 + $0xd0] sm:$0xf]
    %v7315 = vld [vmem:[#allocation14 + $0xd4] sm:$0xf]
    %v7316 = vld [vmem:[#allocation14 + $0xd8] sm:$0xf]
    %v7317 = vld [vmem:[#allocation14 + $0xdc] sm:$0xf]
    %v7318 = vld [vmem:[#allocation14 + $0xe0] sm:$0xf]
    %v7319 = vld [vmem:[#allocation14 + $0xe4] sm:$0xf]
    %v7320 = vld [vmem:[#allocation14 + $0xe8] sm:$0xf]
    %v7321 = vld [vmem:[#allocation14 + $0xec] sm:$0xf]
    %v7322 = vld [vmem:[#allocation14 + $0xf0] sm:$0xf]
    %v7323 = vld [vmem:[#allocation14 + $0xf4] sm:$0xf]
    %v7324 = vld [vmem:[#allocation14 + $0xf8] sm:$0xf]
    %v7325 = vld [vmem:[#allocation14 + $0xfc] sm:$0xf]
    %v7326 = vld [vmem:[#allocation16] sm:$0x1]
    %v7328 = vperm.slane %v7326, 0
    %v7394 = vunpack.c.l.b16 %v7262
    %v7395 = vunpack.c.l.b16 %v7263
    %v7396 = vunpack.c.l.b16 %v7264
    %v7397 = vunpack.c.l.b16 %v7265
    %v7398 = vunpack.c.l.b16 %v7266
    %v7399 = vunpack.c.l.b16 %v7267
    %v7400 = vunpack.c.l.b16 %v7268
    %v7401 = vunpack.c.l.b16 %v7269
    %v7402 = vunpack.c.l.b16 %v7270
    %v7403 = vunpack.c.l.b16 %v7271
    %v7404 = vunpack.c.l.b16 %v7272
    %v7405 = vunpack.c.l.b16 %v7273
    %v7406 = vunpack.c.l.b16 %v7274
    %v7407 = vunpack.c.l.b16 %v7275
    %v7408 = vunpack.c.l.b16 %v7276
    %v7409 = vunpack.c.l.b16 %v7277
    %v7410 = vunpack.c.l.b16 %v7278
    %v7411 = vunpack.c.l.b16 %v7279
    %v7412 = vunpack.c.l.b16 %v7280
    %v7413 = vunpack.c.l.b16 %v7281
    %v7414 = vunpack.c.l.b16 %v7282
    %v7415 = vunpack.c.l.b16 %v7283
    %v7416 = vunpack.c.l.b16 %v7284
    %v7417 = vunpack.c.l.b16 %v7285
    %v7418 = vunpack.c.l.b16 %v7286
    %v7419 = vunpack.c.l.b16 %v7287
    %v7420 = vunpack.c.l.b16 %v7288
    %v7421 = vunpack.c.l.b16 %v7289
    %v7422 = vunpack.c.l.b16 %v7290
    %v7423 = vunpack.c.l.b16 %v7291
    %v7424 = vunpack.c.l.b16 %v7292
    %v7425 = vunpack.c.l.b16 %v7293
    %v7426 = vunpack.c.l.b16 %v7294
    %v7427 = vunpack.c.l.b16 %v7295
    %v7428 = vunpack.c.l.b16 %v7296
    %v7429 = vunpack.c.l.b16 %v7297
    %v7430 = vunpack.c.l.b16 %v7298
    %v7431 = vunpack.c.l.b16 %v7299
    %v7432 = vunpack.c.l.b16 %v7300
    %v7433 = vunpack.c.l.b16 %v7301
    %v7434 = vunpack.c.l.b16 %v7302
    %v7435 = vunpack.c.l.b16 %v7303
    %v7436 = vunpack.c.l.b16 %v7304
    %v7437 = vunpack.c.l.b16 %v7305
    %v7438 = vunpack.c.l.b16 %v7306
    %v7439 = vunpack.c.l.b16 %v7307
    %v7440 = vunpack.c.l.b16 %v7308
    %v7441 = vunpack.c.l.b16 %v7309
    %v7442 = vunpack.c.l.b16 %v7310
    %v7443 = vunpack.c.l.b16 %v7311
    %v7444 = vunpack.c.l.b16 %v7312
    %v7445 = vunpack.c.l.b16 %v7313
    %v7446 = vunpack.c.l.b16 %v7314
    %v7447 = vunpack.c.l.b16 %v7315
    %v7448 = vunpack.c.l.b16 %v7316
    %v7449 = vunpack.c.l.b16 %v7317
    %v7450 = vunpack.c.l.b16 %v7318
    %v7451 = vunpack.c.l.b16 %v7319
    %v7452 = vunpack.c.l.b16 %v7320
    %v7453 = vunpack.c.l.b16 %v7321
    %v7454 = vunpack.c.l.b16 %v7322
    %v7455 = vunpack.c.l.b16 %v7323
    %v7456 = vunpack.c.l.b16 %v7324
    %v7457 = vunpack.c.l.b16 %v7325
    %v7458 = vpack.c.b16 %v7395, %v7394
    %v7459 = vpack.c.b16 %v7397, %v7396
    %v7460 = vpack.c.b16 %v7399, %v7398
    %v7461 = vpack.c.b16 %v7401, %v7400
    %v7462 = vpack.c.b16 %v7403, %v7402
    %v7463 = vpack.c.b16 %v7405, %v7404
    %v7464 = vpack.c.b16 %v7407, %v7406
    %v7465 = vpack.c.b16 %v7409, %v7408
    %v7466 = vpack.c.b16 %v7411, %v7410
    %v7467 = vpack.c.b16 %v7413, %v7412
    %v7468 = vpack.c.b16 %v7415, %v7414
    %v7469 = vpack.c.b16 %v7417, %v7416
    %v7470 = vpack.c.b16 %v7419, %v7418
    %v7471 = vpack.c.b16 %v7421, %v7420
    %v7472 = vpack.c.b16 %v7423, %v7422
    %v7473 = vpack.c.b16 %v7425, %v7424
    %v7474 = vpack.c.b16 %v7427, %v7426
    %v7475 = vpack.c.b16 %v7429, %v7428
    %v7476 = vpack.c.b16 %v7431, %v7430
    %v7477 = vpack.c.b16 %v7433, %v7432
    %v7478 = vpack.c.b16 %v7435, %v7434
    %v7479 = vpack.c.b16 %v7437, %v7436
    %v7480 = vpack.c.b16 %v7439, %v7438
    %v7481 = vpack.c.b16 %v7441, %v7440
    %v7482 = vpack.c.b16 %v7443, %v7442
    %v7483 = vpack.c.b16 %v7445, %v7444
    %v7484 = vpack.c.b16 %v7447, %v7446
    %v7485 = vpack.c.b16 %v7449, %v7448
    %v7486 = vpack.c.b16 %v7451, %v7450
    %v7487 = vpack.c.b16 %v7453, %v7452
    %v7488 = vpack.c.b16 %v7455, %v7454
    %v7489 = vpack.c.b16 %v7457, %v7456
    %7522 = vmatpush.bf16.msra.mxu0 %v7465
    %7523 = vmatpush.bf16.msra.mxu0 %v7464
    %7524 = vmatpush.bf16.msra.mxu0 %v7463
    %7525 = vmatpush.bf16.msra.mxu0 %v7462
    %7526 = vmatpush.bf16.msra.mxu0 %v7461
    %7527 = vmatpush.bf16.msra.mxu0 %v7460
    %7528 = vmatpush.bf16.msra.mxu0 %v7459
    %7529 = vmatpush.bf16.msra.mxu0 %v7458
    %7530 = vmatmul.bf16.gmra.mxu0 %v7258
    %v7531 = vpop.f32.mrf.mxu0
    %v7532 = vadd.f32 %v7328, %v7531
    %v7533 = vpop.f32.mrf.mxu0
    %v7534 = vadd.f32 %v7328, %v7533
    %7535 = vdwg.mxu0
    %7536 = vmatpush.bf16.msra.mxu0 %v7473
    %7537 = vmatpush.bf16.msra.mxu0 %v7472
    %7538 = vmatpush.bf16.msra.mxu0 %v7471
    %7539 = vmatpush.bf16.msra.mxu0 %v7470
    %7540 = vmatpush.bf16.msra.mxu0 %v7469
    %7541 = vmatpush.bf16.msra.mxu0 %v7468
    %7542 = vmatpush.bf16.msra.mxu0 %v7467
    %7543 = vmatpush.bf16.msra.mxu0 %v7466
    %7544 = vmatmul.bf16.gmra.mxu0 %v7259
    %v7545 = vpop.f32.mrf.mxu0
    %v7546 = vadd.f32 %v7532, %v7545
    %v7547 = vpop.f32.mrf.mxu0
    %v7548 = vadd.f32 %v7534, %v7547
    %7549 = vdwg.mxu0
    %7550 = vmatpush.bf16.msra.mxu0 %v7481
    %7551 = vmatpush.bf16.msra.mxu0 %v7480
    %7552 = vmatpush.bf16.msra.mxu0 %v7479
    %7553 = vmatpush.bf16.msra.mxu0 %v7478
    %7554 = vmatpush.bf16.msra.mxu0 %v7477
    %7555 = vmatpush.bf16.msra.mxu0 %v7476
    %7556 = vmatpush.bf16.msra.mxu0 %v7475
    %7557 = vmatpush.bf16.msra.mxu0 %v7474
    %7558 = vmatmul.bf16.gmra.mxu0 %v7260
    %v7559 = vpop.f32.mrf.mxu0
    %v7560 = vadd.f32 %v7546, %v7559
    %v7561 = vpop.f32.mrf.mxu0
    %v7562 = vadd.f32 %v7548, %v7561
    %7563 = vdwg.mxu0
    %7564 = vmatpush.bf16.msra.mxu0 %v7489
    %7565 = vmatpush.bf16.msra.mxu0 %v7488
    %7566 = vmatpush.bf16.msra.mxu0 %v7487
    %7567 = vmatpush.bf16.msra.mxu0 %v7486
    %7568 = vmatpush.bf16.msra.mxu0 %v7485
    %7569 = vmatpush.bf16.msra.mxu0 %v7484
    %7570 = vmatpush.bf16.msra.mxu0 %v7483
    %7571 = vmatpush.bf16.msra.mxu0 %v7482
    %7572 = vmatmul.bf16.gmra.mxu0 %v7261
    %v7573 = vpop.f32.mrf.mxu0
    %v7574 = vadd.f32 %v7560, %v7573
    %v7575 = vpop.f32.mrf.mxu0
    %v7576 = vadd.f32 %v7562, %v7575
    %7577 = vdwg.mxu0
    %v7578 = vmax.f32 %v7574, 0.0
    %v7579 = vmax.f32 %v7576, 0.0
    %v7580 = vpack.c.bf16 %v7579, %v7578
    %v7581 = vld [vmem:[#allocation17] sm:$0xf]
    %v7582 = vld [vmem:[#allocation17 + $0x4] sm:$0xf]
    %v7583 = vld [vmem:[#allocation17 + $0x8] sm:$0xf]
    %v7584 = vld [vmem:[#allocation17 + $0xc] sm:$0xf]
    %v7585 = vld [vmem:[#allocation17 + $0x10] sm:$0xf]
    %v7586 = vld [vmem:[#allocation17 + $0x14] sm:$0xf]
    %v7587 = vld [vmem:[#allocation17 + $0x18] sm:$0xf]
    %v7588 = vld [vmem:[#allocation17 + $0x1c] sm:$0xf]
    %v7589 = vld [vmem:[#allocation17 + $0x20] sm:$0xf]
    %v7590 = vld [vmem:[#allocation17 + $0x24] sm:$0xf]
    %v7591 = vld [vmem:[#allocation17 + $0x28] sm:$0xf]
    %v7592 = vld [vmem:[#allocation17 + $0x2c] sm:$0xf]
    %v7593 = vld [vmem:[#allocation17 + $0x30] sm:$0xf]
    %v7594 = vld [vmem:[#allocation17 + $0x34] sm:$0xf]
    %v7595 = vld [vmem:[#allocation17 + $0x38] sm:$0xf]
    %v7596 = vld [vmem:[#allocation17 + $0x3c] sm:$0xf]
    %v7597 = vld [vmem:[#allocation19] sm:$0x1]
    %v7599 = vperm.slane %v7597, 0
    %v7617 = vunpack.c.l.b16 %v7581
    %v7618 = vunpack.c.l.b16 %v7582
    %v7619 = vunpack.c.l.b16 %v7583
    %v7620 = vunpack.c.l.b16 %v7584
    %v7621 = vunpack.c.l.b16 %v7585
    %v7622 = vunpack.c.l.b16 %v7586
    %v7623 = vunpack.c.l.b16 %v7587
    %v7624 = vunpack.c.l.b16 %v7588
    %v7625 = vunpack.c.l.b16 %v7589
    %v7626 = vunpack.c.l.b16 %v7590
    %v7627 = vunpack.c.l.b16 %v7591
    %v7628 = vunpack.c.l.b16 %v7592
    %v7629 = vunpack.c.l.b16 %v7593
    %v7630 = vunpack.c.l.b16 %v7594
    %v7631 = vunpack.c.l.b16 %v7595
    %v7632 = vunpack.c.l.b16 %v7596
    %v7633 = vpack.c.b16 %v7618, %v7617
    %v7634 = vpack.c.b16 %v7620, %v7619
    %v7635 = vpack.c.b16 %v7622, %v7621
    %v7636 = vpack.c.b16 %v7624, %v7623
    %v7637 = vpack.c.b16 %v7626, %v7625
    %v7638 = vpack.c.b16 %v7628, %v7627
    %v7639 = vpack.c.b16 %v7630, %v7629
    %v7640 = vpack.c.b16 %v7632, %v7631
    %7649 = vmatpush.bf16.msra.mxu0 %v7640
    %7650 = vmatpush.bf16.msra.mxu0 %v7639
    %7651 = vmatpush.bf16.msra.mxu0 %v7638
    %7652 = vmatpush.bf16.msra.mxu0 %v7637
    %7653 = vmatpush.bf16.msra.mxu0 %v7636
    %7654 = vmatpush.bf16.msra.mxu0 %v7635
    %7655 = vmatpush.bf16.msra.mxu0 %v7634
    %7656 = vmatpush.bf16.msra.mxu0 %v7633
    %7657 = vmatmul.bf16.gmra.mxu0 %v7580
    %v7658 = vpop.f32.mrf.mxu0
    %v7659 = vadd.f32 %v7599, %v7658
    %v7660 = vpop.f32.mrf.mxu0
    %v7661 = vadd.f32 %v7599, %v7660
    %7662 = vdwg.mxu0
    %v7663 = vpack.c.bf16 %v7659, %v7659
    %v7664 = vpack.c.bf16 %v7661, %v7661
    %7665 = vst [vmem:[#allocation20] sm:$0xf] %v7663
    %7666 = vst [vmem:[#allocation20 + $0x4] sm:$0xf] %v7664
    // Predicated region
    $region90: #{tpu_custom_call.1} parent=1 // pred_check
      _
    $region91: #{tpu_custom_call.1} parent=1 // pred_check_branch
      %7668 = sbr.rel (0) target = $region93
    $region92: #{tpu_custom_call.1} parent=1 // pred_region
      %7670 = vsyncadd [#allocation4], 0
      %s7671 = sshll.u32 [#allocation20], 4
      %s7672 = int_to_ptr.vmem [resolvable:$true] %s7671
      %s7673 = sshll.u32 %s11, 4
      %s7674 = int_to_ptr.hbm [resolvable:$true] %s7673
      %7679 = dma.vmem_to_hbm [thread:$0]  %s7672, 128, %s7674, [#allocation4], 64, 64, 4
    $region93: #{tpu_custom_call.1} parent=1 // pred_fallthru
      _
    // Predicated region
    $region94: #{tpu_custom_call.1} parent=1 // pred_check
      _
    $region95: #{tpu_custom_call.1} parent=1 // pred_check_branch
      %7681 = sbr.rel (0) target = $region97
    $region96: #{tpu_custom_call.1} parent=1 // pred_region
      %7683 = dma.done [#allocation4], 128
    $region97: #{tpu_custom_call.1} parent=1 // pred_fallthru
      _
    %7684 = vsyncpa [#allocation3], 1
    %7685 = vsyncpa [#allocation6], 1
    %7686 = vsyncpa [#allocation9], 1
    %7687 = vsyncpa [#allocation12], 1
    %7688 = vsyncpa [#allocation15], 1
    %7689 = vsyncpa [#allocation18], 1
    %7690 = vsyncpa [#allocation4], 1

</llo_original>
